<compile_context>
chip_gen: v7x
topology: tpu7x:2x2x1
jax: 0.10.0
libtpu: 0.0.40
codegen_flags: <defaults>
</compile_context>

<pallas_src>
import functools

import jax
import jax.numpy as jnp
from jax.experimental import pallas as pl
from jax.experimental.pallas import tpu as pltpu

FEATURE_SIZE = 512
EFF_CHANNELS = 1280
STEM_CHANNELS = 32
SEQ_LEN = 8
K_PAD = 32            # im2col K (3*3*3 = 27) zero-padded to 32
ROW_TILE_MAX = 128    # bound on the per-step spatial row tile (VMEM safety)


# ----------------------------------------------------------------------------
# Helpers
# ----------------------------------------------------------------------------
def _silu(v, use_bf16):
    if use_bf16:
        v = v.astype(jnp.bfloat16)
    return v * jax.nn.sigmoid(v)


def _use_bf16_silu():
    """bf16 transcendentals only on chips with bf16 EUP/VPU (v6e / v7x)."""
    try:
        kind = jax.devices()[0].device_kind.lower()
    except Exception:
        return False
    return ("v6" in kind) or ("v7" in kind) or ("7x" in kind)


def _pick_row_tile(hwbin, max_tile=ROW_TILE_MAX):
    """Return (row_tile, padded_rows); row_tile is a multiple of 8 <= max_tile."""
    hw8 = ((hwbin + 7) // 8) * 8
    if hw8 <= max_tile:
        return hw8, hw8
    for r in range(max_tile, 7, -8):          # prefer an exact divisor
        if hwbin % r == 0:
            return r, hwbin
    padded = ((hwbin + max_tile - 1) // max_tile) * max_tile
    return max_tile, padded


# ----------------------------------------------------------------------------
# Fused Pallas kernel
# ----------------------------------------------------------------------------
def _fused_backbone_kernel(p_ref, ws_ref, bs_ref, wh_ref, bh_ref,
                           wp_ref, bp_ref, o_ref, acc_ref,
                           *, inv_count, n_pad, use_bf16_silu):
    """Stem conv + 1x1 head conv + adaptive avg pool + Linear + ReLU.

    Grid: (batch [parallel], spatial row tile [reduction]).
      p_ref  : [SEQ_LEN, R, K_PAD]  bf16 im2col patches (this row tile, 8 w-bins)
      ws_ref : [K_PAD, 32]          bf16 stem weight
      bs_ref : [1, 32]              f32  stem bias
      wh_ref : [32, 1280]           bf16 head weight
      bh_ref : [1, 1280]            f32  head bias
      wp_ref : [1280, 512]          bf16 projection weight
      bp_ref : [1, 512]             f32  projection bias
      o_ref  : [SEQ_LEN, 512]       f32  output block (written on last r)
      acc_ref: [SEQ_LEN, 1280]      f32  pooled-sum accumulator (VMEM scratch)
    """
    r = pl.program_id(1)

    @pl.when(r == 0)
    def _init():
        acc_ref[...] = jnp.zeros_like(acc_ref)

    S, R, K = p_ref.shape
    x = p_ref[...].reshape(S * R, K)                               # bf16
    stem = jnp.dot(x, ws_ref[...],
                   preferred_element_type=jnp.float32) + bs_ref[...]
    stem = _silu(stem, use_bf16_silu)                              # [S*R, 32]
    feat = jnp.dot(stem.astype(jnp.bfloat16), wh_ref[...],
                   preferred_element_type=jnp.float32) + bh_ref[...]
    feat = _silu(feat, use_bf16_silu)                              # [S*R, 1280]
    acc_ref[...] += feat.astype(jnp.float32).reshape(S, R, -1).sum(axis=1)

    @pl.when(r == pl.num_programs(1) - 1)
    def _finalize():
        pooled = acc_ref[...]
        if n_pad > 0:
            # Zero-padded im2col rows are NOT neutral: each contributes the
            # constant SiLU(SiLU(b_stem) @ w_head + b_head).  Subtract it
            # (same op/dtype path as the main body -> exact cancellation).
            s0 = _silu(bs_ref[...], use_bf16_silu)
            f0 = jnp.dot(s0.astype(jnp.bfloat16), wh_ref[...],
                         preferred_element_type=jnp.float32) + bh_ref[...]
            f0 = _silu(f0, use_bf16_silu).astype(jnp.float32)
            pooled = pooled - float(n_pad) * f0
        pooled = (pooled * inv_count).astype(jnp.bfloat16)         # [S, 1280]
        # TODO(synk): nn.Dropout is identity in eval/inference mode; training
        # mode dropout is not implemented.
        y = jnp.dot(pooled, wp_ref[...],
                    preferred_element_type=jnp.float32) + bp_ref[...]
        o_ref[...] = jnp.maximum(y, 0.0).astype(o_ref.dtype)


def _fused_backbone_call(patches, hwbin, row_tile, params, *, use_bf16_silu):
    """patches [B, 8, hw_padded, K_PAD] bf16 -> [B, 8, FEATURE_SIZE] f32."""
    B, S, hw_padded, K = patches.shape
    n_row_tiles = hw_padded // row_tile
    kernel = functools.partial(
        _fused_backbone_kernel,
        inv_count=1.0 / float(hwbin),
        n_pad=hw_padded - hwbin,
        use_bf16_silu=use_bf16_silu)
    return pl.pallas_call(
        kernel,
        out_shape=jax.ShapeDtypeStruct((B, S, FEATURE_SIZE), jnp.float32),
        grid=(B, n_row_tiles),
        in_specs=[
            pl.BlockSpec((None, S, row_tile, K), lambda b, r: (b, 0, r, 0)),
            pl.BlockSpec((K_PAD, STEM_CHANNELS), lambda b, r: (0, 0)),
            pl.BlockSpec((1, STEM_CHANNELS), lambda b, r: (0, 0)),
            pl.BlockSpec((STEM_CHANNELS, EFF_CHANNELS), lambda b, r: (0, 0)),
            pl.BlockSpec((1, EFF_CHANNELS), lambda b, r: (0, 0)),
            pl.BlockSpec((EFF_CHANNELS, FEATURE_SIZE), lambda b, r: (0, 0)),
            pl.BlockSpec((1, FEATURE_SIZE), lambda b, r: (0, 0)),
        ],
        out_specs=pl.BlockSpec((None, S, FEATURE_SIZE), lambda b, r: (b, 0, 0)),
        scratch_shapes=[pltpu.VMEM((S, EFF_CHANNELS), jnp.float32)],
        compiler_params=pltpu.CompilerParams(
            dimension_semantics=("parallel", "arbitrary"),
            vmem_limit_bytes=32 * 1024 * 1024),
    )(patches, params["w_stem"], params["b_stem"],
      params["w_head"], params["b_head"],
      params["w_proj"], params["b_proj"])


# ----------------------------------------------------------------------------
# im2col + w-bin regrouping (small 32-wide tensor, done in bf16)
# ----------------------------------------------------------------------------
def _extract_patches_binned(x_nhwc):
    """im2col (3x3 / stride 2 / pad 1), K padded to 32, grouped by w-bin.

    Returns (patches [B, 8, hw_padded, K_PAD] bf16, hwbin, row_tile).
    """
    B, H, W, C = x_nhwc.shape
    assert 9 * C <= K_PAD
    Ho, Wo = H // 2, W // 2
    assert Wo % SEQ_LEN == 0, "adaptive pool implemented for W' divisible by 8"
    # TODO(synk): PyTorch AdaptiveAvgPool2d produces uneven bins when the
    # width is not divisible by 8; only the divisible case is handled.
    Wk = Wo // SEQ_LEN
    hwbin = Ho * Wk
    row_tile, hw_padded = _pick_row_tile(hwbin)

    x = x_nhwc.astype(jnp.bfloat16)                    # cast before im2col
    xp = jnp.pad(x, ((0, 0), (1, 1), (1, 1), (0, 0)))
    cols = [xp[:, dy:dy + 2 * Ho:2, dx:dx + 2 * Wo:2, :]
            for dy in range(3) for dx in range(3)]
    patches = jnp.concatenate(cols, axis=-1)           # [B, Ho, Wo, 27] bf16
    patches = jnp.pad(patches,
                      ((0, 0), (0, 0), (0, 0), (0, K_PAD - 9 * C)))
    patches = (patches.reshape(B, Ho, SEQ_LEN, Wk, K_PAD)
                      .transpose(0, 2, 1, 3, 4)
                      .reshape(B, SEQ_LEN, hwbin, K_PAD))
    if hw_padded > hwbin:
        patches = jnp.pad(patches,
                          ((0, 0), (0, 0), (0, hw_padded - hwbin), (0, 0)))
    return patches, hwbin, row_tile


def efficientnet_backbone_forward(x_nchw, params):
    """[B, 3, H, W] (NCHW) -> [B, 8, feature_size]."""
    x = jnp.transpose(x_nchw, (0, 2, 3, 1))            # NHWC
    patches, hwbin, row_tile = _extract_patches_binned(x)
    return _fused_backbone_call(patches, hwbin, row_tile, params,
                                use_bf16_silu=_use_bf16_silu())


# ----------------------------------------------------------------------------
# Deterministic synthetic parameters (bf16 weights, f32 biases)
# ----------------------------------------------------------------------------
def init_params(key):
    k1, k2, k3, k4, k5, k6 = jax.random.split(key, 6)

    def lin(kw, kb, fan_in, fan_out, pad_to=None):
        s = 1.0 / jnp.sqrt(fan_in)
        w = jax.random.uniform(kw, (fan_in, fan_out), jnp.float32, -s, s)
        b = jax.random.uniform(kb, (1, fan_out), jnp.float32, -s, s)
        if pad_to is not None and pad_to > fan_in:
            w = jnp.pad(w, ((0, pad_to - fan_in), (0, 0)))   # zero padded rows
        return w.astype(jnp.bfloat16), b

    w_stem, b_stem = lin(k1, k2, 27, STEM_CHANNELS, pad_to=K_PAD)  # 3x3x3 -> 32
    w_head, b_head = lin(k3, k4, STEM_CHANNELS, EFF_CHANNELS)      # 32 -> 1280
    w_proj, b_proj = lin(k5, k6, EFF_CHANNELS, FEATURE_SIZE)       # 1280 -> 512
    return dict(w_stem=w_stem, b_stem=b_stem, w_head=w_head, b_head=b_head,
                w_proj=w_proj, b_proj=b_proj)


# ----------------------------------------------------------------------------
# Pure-JAX (f32) reference for a sanity check
# ----------------------------------------------------------------------------
def _ref_forward(x_nchw, params):
    x = jnp.transpose(x_nchw, (0, 2, 3, 1)).astype(jnp.float32)
    B, H, W, C = x.shape
    Ho, Wo = H // 2, W // 2
    xp = jnp.pad(x, ((0, 0), (1, 1), (1, 1), (0, 0)))
    cols = [xp[:, dy:dy + 2 * Ho:2, dx:dx + 2 * Wo:2, :]
            for dy in range(3) for dx in range(3)]
    patches = jnp.concatenate(cols, axis=-1)
    patches = jnp.pad(patches,
                      ((0, 0), (0, 0), (0, 0), (0, K_PAD - 9 * C)))
    silu = lambda v: v * jax.nn.sigmoid(v)
    ws = params["w_stem"].astype(jnp.float32)
    wh = params["w_head"].astype(jnp.float32)
    wp = params["w_proj"].astype(jnp.float32)
    stem = silu(patches.reshape(-1, K_PAD) @ ws + params["b_stem"])
    feat = silu(stem @ wh + params["b_head"]).reshape(B, Ho, Wo, EFF_CHANNELS)
    Wk = Wo // SEQ_LEN
    bins = (feat.reshape(B, Ho, SEQ_LEN, Wk, EFF_CHANNELS)
                .transpose(0, 2, 1, 3, 4)
                .reshape(B, SEQ_LEN, Ho * Wk, EFF_CHANNELS))
    pooled = bins.mean(axis=2)
    y = pooled.reshape(B * SEQ_LEN, EFF_CHANNELS) @ wp + params["b_proj"]
    return jnp.maximum(y, 0.0).reshape(B, SEQ_LEN, FEATURE_SIZE)


if __name__ == "__main__":
    key = jax.random.PRNGKey(0)
    kx, kp = jax.random.split(key)
    # Small input consistent with the module: [batch, 3, H, W]
    x = jax.random.normal(kx, (2, 3, 16, 16), dtype=jnp.float32)
    params = init_params(kp)

    out = jax.block_until_ready(
        jax.jit(efficientnet_backbone_forward)(x, params))
    assert out.shape == (2, SEQ_LEN, FEATURE_SIZE), out.shape

    ref = jax.block_until_ready(_ref_forward(x, params))
    err = float(jnp.max(jnp.abs(out - ref)))
    scale = float(jnp.max(jnp.abs(ref))) + 1.0
    assert err <= 3e-2 * scale, (err, scale)

    print("KERNEL_OK")
</pallas_src>

<mosaic_0001>
module attributes {stable_mosaic.version = 11 : i64} {
  func.func @_fused_backbone_kernel(%arg0: i32, %arg1: i32, %arg2: memref<1x8x8x32xbf16, #tpu.memory_space<vmem>>, %arg3: memref<32x32xbf16, #tpu.memory_space<vmem>>, %arg4: memref<1x32xf32, #tpu.memory_space<vmem>>, %arg5: memref<32x1280xbf16, #tpu.memory_space<vmem>>, %arg6: memref<1x1280xf32, #tpu.memory_space<vmem>>, %arg7: memref<1280x512xbf16, #tpu.memory_space<vmem>>, %arg8: memref<1x512xf32, #tpu.memory_space<vmem>>, %arg9: memref<1x8x512xf32, #tpu.memory_space<vmem>>, %arg10: memref<8x1280xf32, #tpu.memory_space<vmem>>) attributes {dimension_semantics = [#tpu.dimension_semantics<parallel>, #tpu.dimension_semantics<arbitrary>], iteration_bounds = array<i64: 2, 1>, scalar_prefetch = 0 : i64, scratch_operands = 1 : i64, tpu.core_type = #tpu.core_type<tc>, window_params = [{transform_indices = @transform_0, window_bounds = array<i64: 1, 8, 8, 32>}, {pipeline_mode = #tpu.pipeline_mode<synchronous>, transform_indices = @transform_1, window_bounds = array<i64: 32, 32>}, {pipeline_mode = #tpu.pipeline_mode<synchronous>, transform_indices = @transform_2, window_bounds = array<i64: 1, 32>}, {pipeline_mode = #tpu.pipeline_mode<synchronous>, transform_indices = @transform_3, window_bounds = array<i64: 32, 1280>}, {pipeline_mode = #tpu.pipeline_mode<synchronous>, transform_indices = @transform_4, window_bounds = array<i64: 1, 1280>}, {pipeline_mode = #tpu.pipeline_mode<synchronous>, transform_indices = @transform_5, window_bounds = array<i64: 1280, 512>}, {pipeline_mode = #tpu.pipeline_mode<synchronous>, transform_indices = @transform_6, window_bounds = array<i64: 1, 512>}, {transform_indices = @transform_7, window_bounds = array<i64: 1, 8, 512>}]} {
    %c0_i32 = arith.constant 0 : i32
    %0 = arith.cmpi eq, %arg1, %c0_i32 : i32
    %1 = arith.extui %0 : i1 to i32
    %c0_i32_0 = arith.constant 0 : i32
    %2 = arith.cmpi ne, %1, %c0_i32_0 : i32
    scf.if %2 {
      %cst_22 = arith.constant 0.000000e+00 : f32
      %37 = vector.broadcast %cst_22 : f32 to vector<8x1280xf32>
      %c0_23 = arith.constant 0 : index
      %c0_24 = arith.constant 0 : index
      %38 = vector.load %arg10[%c0_23, %c0_24] : memref<8x1280xf32, #tpu.memory_space<vmem>>, vector<8x1280xf32>
      tpu.vector_store %arg10[%c0_23, %c0_24], %37 {strides = array<i32>} : memref<8x1280xf32, #tpu.memory_space<vmem>>, vector<8x1280xf32>,
    } else {
    }
    %c0 = arith.constant 0 : index
    %c0_1 = arith.constant 0 : index
    %c0_2 = arith.constant 0 : index
    %c0_3 = arith.constant 0 : index
    %3 = vector.load %arg2[%c0, %c0_1, %c0_2, %c0_3] : memref<1x8x8x32xbf16, #tpu.memory_space<vmem>>, vector<1x8x8x32xbf16>
    %4 = vector.shape_cast %3 : vector<1x8x8x32xbf16> to vector<8x8x32xbf16>
    %5 = vector.shape_cast %4 : vector<8x8x32xbf16> to vector<64x32xbf16>
    %c0_4 = arith.constant 0 : index
    %c0_5 = arith.constant 0 : index
    %6 = vector.load %arg3[%c0_4, %c0_5] : memref<32x32xbf16, #tpu.memory_space<vmem>>, vector<32x32xbf16>
    %cst = arith.constant dense<0.000000e+00> : vector<64x32xf32>
    %7 = tpu.matmul %5, %6, %cst {dimension_numbers = #tpu.dot_dimension_numbers<[1], [0], [0], [1], [0, 0, 1, 1], [], []>} : vector<64x32xbf16>, vector<32x32xbf16>, vector<64x32xf32> -> vector<64x32xf32>
    %c0_6 = arith.constant 0 : index
    %c0_7 = arith.constant 0 : index
    %8 = vector.load %arg4[%c0_6, %c0_7] : memref<1x32xf32, #tpu.memory_space<vmem>>, vector<1x32xf32>
    %9 = vector.broadcast %8 : vector<1x32xf32> to vector<64x32xf32>
    %10 = arith.addf %7, %9 : vector<64x32xf32>
    %11 = arith.negf %10 : vector<64x32xf32>
    %12 = math.exp %11 : vector<64x32xf32>
    %cst_8 = arith.constant 1.000000e+00 : f32
    %13 = vector.broadcast %cst_8 : f32 to vector<64x32xf32>
    %14 = arith.addf %13, %12 : vector<64x32xf32>
    %15 = arith.divf %13, %14 : vector<64x32xf32>
    %16 = arith.mulf %10, %15 : vector<64x32xf32>
    %17 = arith.truncf %16 : vector<64x32xf32> to vector<64x32xbf16>
    %c0_9 = arith.constant 0 : index
    %c0_10 = arith.constant 0 : index
    %18 = vector.load %arg5[%c0_9, %c0_10] : memref<32x1280xbf16, #tpu.memory_space<vmem>>, vector<32x1280xbf16>
    %cst_11 = arith.constant dense<0.000000e+00> : vector<64x1280xf32>
    %19 = tpu.matmul %17, %18, %cst_11 {dimension_numbers = #tpu.dot_dimension_numbers<[1], [0], [0], [1], [0, 0, 1, 1], [], []>} : vector<64x32xbf16>, vector<32x1280xbf16>, vector<64x1280xf32> -> vector<64x1280xf32>
    %c0_12 = arith.constant 0 : index
    %c0_13 = arith.constant 0 : index
    %20 = vector.load %arg6[%c0_12, %c0_13] : memref<1x1280xf32, #tpu.memory_space<vmem>>, vector<1x1280xf32>
    %21 = vector.broadcast %20 : vector<1x1280xf32> to vector<64x1280xf32>
    %22 = arith.addf %19, %21 : vector<64x1280xf32>
    %23 = arith.negf %22 : vector<64x1280xf32>
    %24 = math.exp %23 : vector<64x1280xf32>
    %cst_14 = arith.constant 1.000000e+00 : f32
    %25 = vector.broadcast %cst_14 : f32 to vector<64x1280xf32>
    %26 = arith.addf %25, %24 : vector<64x1280xf32>
    %27 = arith.divf %25, %26 : vector<64x1280xf32>
    %28 = arith.mulf %22, %27 : vector<64x1280xf32>
    %c0_15 = arith.constant 0 : index
    %c0_16 = arith.constant 0 : index
    %29 = vector.load %arg10[%c0_15, %c0_16] : memref<8x1280xf32, #tpu.memory_space<vmem>>, vector<8x1280xf32>
    %30 = vector.shape_cast %28 : vector<64x1280xf32> to vector<8x8x1280xf32>
    %cst_17 = arith.constant dense<0.000000e+00> : vector<8x1280xf32>
    %31 = vector.multi_reduction <add>, %30, %cst_17 [1] : vector<8x8x1280xf32> to vector<8x1280xf32>
    %32 = arith.addf %29, %31 : vector<8x1280xf32>
    %c0_18 = arith.constant 0 : index
    %c0_19 = arith.constant 0 : index
    %33 = vector.load %arg10[%c0_18, %c0_19] : memref<8x1280xf32, #tpu.memory_space<vmem>>, vector<8x1280xf32>
    tpu.vector_store %arg10[%c0_18, %c0_19], %32 {strides = array<i32>} : memref<8x1280xf32, #tpu.memory_space<vmem>>, vector<8x1280xf32>,
    %c0_i32_20 = arith.constant 0 : i32
    %34 = arith.cmpi eq, %arg1, %c0_i32_20 : i32
    %35 = arith.extui %34 : i1 to i32
    %c0_i32_21 = arith.constant 0 : i32
    %36 = arith.cmpi ne, %35, %c0_i32_21 : i32
    scf.if %36 {
      %c0_22 = arith.constant 0 : index
      %c0_23 = arith.constant 0 : index
      %37 = vector.load %arg10[%c0_22, %c0_23] : memref<8x1280xf32, #tpu.memory_space<vmem>>, vector<8x1280xf32>
      %cst_24 = arith.constant 1.250000e-01 : f32
      %38 = vector.broadcast %cst_24 : f32 to vector<8x1280xf32>
      %39 = arith.mulf %37, %38 : vector<8x1280xf32>
      %40 = arith.truncf %39 : vector<8x1280xf32> to vector<8x1280xbf16>
      %c0_25 = arith.constant 0 : index
      %c0_26 = arith.constant 0 : index
      %41 = vector.load %arg7[%c0_25, %c0_26] : memref<1280x512xbf16, #tpu.memory_space<vmem>>, vector<1280x512xbf16>
      %cst_27 = arith.constant dense<0.000000e+00> : vector<8x512xf32>
      %42 = tpu.matmul %40, %41, %cst_27 {dimension_numbers = #tpu.dot_dimension_numbers<[1], [0], [0], [1], [0, 0, 1, 1], [], []>} : vector<8x1280xbf16>, vector<1280x512xbf16>, vector<8x512xf32> -> vector<8x512xf32>
      %c0_28 = arith.constant 0 : index
      %c0_29 = arith.constant 0 : index
      %43 = vector.load %arg8[%c0_28, %c0_29] : memref<1x512xf32, #tpu.memory_space<vmem>>, vector<1x512xf32>
      %44 = vector.broadcast %43 : vector<1x512xf32> to vector<8x512xf32>
      %45 = arith.addf %42, %44 : vector<8x512xf32>
      %cst_30 = arith.constant 0.000000e+00 : f32
      %46 = vector.broadcast %cst_30 : f32 to vector<8x512xf32>
      %47 = arith.maximumf %45, %46 : vector<8x512xf32>
      %c0_31 = arith.constant 0 : index
      %c0_32 = arith.constant 0 : index
      %c0_33 = arith.constant 0 : index
      %48 = vector.load %arg9[%c0_31, %c0_32, %c0_33] : memref<1x8x512xf32, #tpu.memory_space<vmem>>, vector<1x8x512xf32>
      %49 = vector.shape_cast %48 : vector<1x8x512xf32> to vector<8x512xf32>
      %50 = vector.shape_cast %47 : vector<8x512xf32> to vector<1x8x512xf32>
      tpu.vector_store %arg9[%c0_31, %c0_32, %c0_33], %50 {strides = array<i32>} : memref<1x8x512xf32, #tpu.memory_space<vmem>>, vector<1x8x512xf32>,
    } else {
    }
    return
  }
  func.func @transform_0(%arg0: i32, %arg1: i32) -> (i32, i32, i32, i32) {
    %c0_i32 = arith.constant 0 : i32
    %c0_i32_0 = arith.constant 0 : i32
    %c0_i32_1 = arith.constant 0 : i32
    return %arg0, %c0_i32, %arg1, %c0_i32_0 : i32, i32, i32, i32
  }
  func.func @transform_1(%arg0: i32, %arg1: i32) -> (i32, i32) {
    %c0_i32 = arith.constant 0 : i32
    %c0_i32_0 = arith.constant 0 : i32
    %c0_i32_1 = arith.constant 0 : i32
    return %c0_i32, %c0_i32_0 : i32, i32
  }
  func.func @transform_2(%arg0: i32, %arg1: i32) -> (i32, i32) {
    %c0_i32 = arith.constant 0 : i32
    %c0_i32_0 = arith.constant 0 : i32
    %c0_i32_1 = arith.constant 0 : i32
    return %c0_i32, %c0_i32_0 : i32, i32
  }
  func.func @transform_3(%arg0: i32, %arg1: i32) -> (i32, i32) {
    %c0_i32 = arith.constant 0 : i32
    %c0_i32_0 = arith.constant 0 : i32
    %c0_i32_1 = arith.constant 0 : i32
    return %c0_i32, %c0_i32_0 : i32, i32
  }
  func.func @transform_4(%arg0: i32, %arg1: i32) -> (i32, i32) {
    %c0_i32 = arith.constant 0 : i32
    %c0_i32_0 = arith.constant 0 : i32
    %c0_i32_1 = arith.constant 0 : i32
    return %c0_i32, %c0_i32_0 : i32, i32
  }
  func.func @transform_5(%arg0: i32, %arg1: i32) -> (i32, i32) {
    %c0_i32 = arith.constant 0 : i32
    %c0_i32_0 = arith.constant 0 : i32
    %c0_i32_1 = arith.constant 0 : i32
    return %c0_i32, %c0_i32_0 : i32, i32
  }
  func.func @transform_6(%arg0: i32, %arg1: i32) -> (i32, i32) {
    %c0_i32 = arith.constant 0 : i32
    %c0_i32_0 = arith.constant 0 : i32
    %c0_i32_1 = arith.constant 0 : i32
    return %c0_i32, %c0_i32_0 : i32, i32
  }
  func.func @transform_7(%arg0: i32, %arg1: i32) -> (i32, i32, i32) {
    %c0_i32 = arith.constant 0 : i32
    %c0_i32_0 = arith.constant 0 : i32
    %c0_i32_1 = arith.constant 0 : i32
    return %arg0, %c0_i32, %c0_i32_0 : i32, i32, i32
  }
}

</mosaic_0001>

<llo_original>
// kernel: efficientnet_backbone_forward.1
$region0: #{efficientnet_backbone_forward.1}
  #allocation0 [shape = 'u32[]', space=smem, size = 0x4, offset = 0x4, fixed_abs, tag = 'smem constant byte address 0x4 - core index']
  #allocation1 [shape = 'u32[144,128]{1,0:T(1,128)}', space=vmem, size = 0x12000, scoped, tag = 'internal scratch']
  #allocation2 [shape = 'f32[8,1280]{1,0:T(8,128)}', space=vmem, size = 0xa000, scoped, tag = 'scratch operand']
  %s0 = inlined_call_operand.vmem [shape: bf16[2,8,8,32], index: 0, kind: input, shape index: {}]
  %s1 = inlined_call_operand.vmem [shape: bf16[32,32], index: 1, kind: input, shape index: {}]
  %s2 = inlined_call_operand.vmem [shape: f32[1,32], index: 2, kind: input, shape index: {}]
  %s3 = inlined_call_operand.vmem [shape: bf16[32,1280], index: 3, kind: input, shape index: {}]
  %s4 = inlined_call_operand.vmem [shape: f32[1,1280], index: 4, kind: input, shape index: {}]
  %s5 = inlined_call_operand.vmem [shape: bf16[1280,512], index: 5, kind: input, shape index: {}]
  %s6 = inlined_call_operand.vmem [shape: f32[1,512], index: 6, kind: input, shape index: {}]
  %s7 = inlined_call_operand.hbm [shape: f32[2,8,512], index: 7, kind: output, shape index: {}]
  %s8 = sld [smem:[#allocation0]]
  $region69: #{efficientnet_backbone_forward.1} parent=0
    _
  %s10 = ssub.s32 1, %s8
  %s11 = scalar_select 0, %s10, %s8
  $region1: #{efficientnet_backbone_forward.1} parent=0
    #allocation3 [shape = 'u8[32768]{0}', space=vmem, size = 0x8000, scoped, tag = 'output window, operand 0']
    #allocation4 [shape = 's32[2]{0}', space=sflag, size = 0x8, scoped, tag = 'scoped memory for efficientnet_backbone_forward.1']
    %12 = vsyncpa [#allocation4], 0
    %s13 = scalar_lea.sflag [#allocation4], 1
    %14 = vsyncpa %s13, 0
    loop: start=0, step=1, limit=4
    $region2: #{efficientnet_backbone_forward.1} parent=1 // loop_pre_header
      _
    $region3: #{efficientnet_backbone_forward.1} parent=1 // loop_header
      %s16 = sphi 0, %s20
      %p17 = scmp.ge.s32.totalorder %s16, 4
      %s23 = sphi 0, %s35
      %s24 = sphi 0, %s31
      %s25 = sphi 0, %s23
      %s26 = sphi 0, %s24
      %s27 = sphi 0, %s25
      %s28 = sphi 0, %s26
      %s40 = sphi 0, %s42
      %s43 = sphi 0, %s40
      %s44 = sphi 0, %s43
      %s60 = sphi 0, %s44
      %s64 = sphi 0, %s64
      %s66 = sphi 0, %s64
      %s67 = sphi 0, %s66
      %s81 = sphi 0, %s67
      %s85 = sphi 0, %s85
      %s87 = sphi 0, %s85
      %s88 = sphi 0, %s87
      %s102 = sphi 0, %s88
      %s106 = sphi 0, %s106
      %s108 = sphi 0, %s106
      %s109 = sphi 0, %s108
      %s123 = sphi 0, %s109
      %s127 = sphi 0, %s127
      %s129 = sphi 0, %s127
      %s130 = sphi 0, %s129
      %s144 = sphi 0, %s130
      %s148 = sphi 0, %s148
      %s150 = sphi 0, %s148
      %s151 = sphi 0, %s150
      %s165 = sphi 0, %s151
      %s169 = sphi 0, %s169
      %s171 = sphi 0, %s169
      %s172 = sphi 0, %s171
      %s186 = sphi 0, %s172
      %s192 = sphi 0, %s194
      %s195 = sphi 0, %s192
      %s196 = sphi 0, %s195
      %s212 = sphi 0, %s196
    $region4: #{efficientnet_backbone_forward.1} parent=1 // loop_header_branch
      %19 = sbr.rel (%p17) target = $region8
    $region5: #{efficientnet_backbone_forward.1} parent=1 // loop_body
      %s21 = ssub.s32 %s16, 1
      %s22 = ssub.s32 %s16, 2
      %s29 = sadd.s32 1, %s24
      %p30 = scmp.ge.s32.totalorder %s29, 1
      %s31 = scalar_select %p30, 0, %s29
      %s32 = sadd.s32 1, %s23
      %s33 = scalar_select %p30, %s32, %s23
      %p34 = scmp.ge.s32.totalorder %s33, 2
      %s35 = scalar_select %p34, 0, %s33
      %s36 = ssub.s32 %s23, %s35
      %s37 = ssub.s32 %s24, %s31
      %s38 = sor.u32 %s36, %s37
      %p39 = scmp.eq.s32.totalorder %s38, 0
      %s41 = sadd.s32 %s40, 1
      %s42 = scalar_select %p39, %s40, %s41
      %p45 = pneg %p39
      %p46 = scmp.eq.s32.totalorder %s16, 1
      %p47 = por %p45, %p46
      %p48 = scmp.ne.s32.totalorder %s40, %s43
      %p49 = scmp.eq.s32.totalorder %s16, 0
      %p50 = por %p48, %p49
      %p51 = scmp.ne.s32.totalorder %s40, %s43
      %p52 = scmp.eq.s32.totalorder %s21, 1
      %p53 = por %p51, %p52
      %p54 = scmp.ne.s32.totalorder %s43, %s44
      %p55 = scmp.eq.s32.totalorder %s21, 0
      %p56 = por %p54, %p55
      %p57 = scmp.ne.s32.totalorder %s43, %s44
      %p58 = scmp.eq.s32.totalorder %s22, 1
      %p59 = por %p57, %p58
      %p61 = scmp.ne.s32.totalorder %s44, %s60
      %p62 = scmp.eq.s32.totalorder %s22, 0
      %p63 = por %p61, %p62
      %s65 = sadd.s32 %s64, 1
      %p68 = scmp.eq.s32.totalorder %s16, 1
      %p69 = scmp.ne.s32.totalorder %s64, %s66
      %p70 = scmp.eq.s32.totalorder %s16, 0
      %p71 = por %p69, %p70
      %p72 = scmp.ne.s32.totalorder %s64, %s66
      %p73 = scmp.eq.s32.totalorder %s21, 1
      %p74 = por %p72, %p73
      %p75 = scmp.ne.s32.totalorder %s66, %s67
      %p76 = scmp.eq.s32.totalorder %s21, 0
      %p77 = por %p75, %p76
      %p78 = scmp.ne.s32.totalorder %s66, %s67
      %p79 = scmp.eq.s32.totalorder %s22, 1
      %p80 = por %p78, %p79
      %p82 = scmp.ne.s32.totalorder %s67, %s81
      %p83 = scmp.eq.s32.totalorder %s22, 0
      %p84 = por %p82, %p83
      %s86 = sadd.s32 %s85, 1
      %p89 = scmp.eq.s32.totalorder %s16, 1
      %p90 = scmp.ne.s32.totalorder %s85, %s87
      %p91 = scmp.eq.s32.totalorder %s16, 0
      %p92 = por %p90, %p91
      %p93 = scmp.ne.s32.totalorder %s85, %s87
      %p94 = scmp.eq.s32.totalorder %s21, 1
      %p95 = por %p93, %p94
      %p96 = scmp.ne.s32.totalorder %s87, %s88
      %p97 = scmp.eq.s32.totalorder %s21, 0
      %p98 = por %p96, %p97
      %p99 = scmp.ne.s32.totalorder %s87, %s88
      %p100 = scmp.eq.s32.totalorder %s22, 1
      %p101 = por %p99, %p100
      %p103 = scmp.ne.s32.totalorder %s88, %s102
      %p104 = scmp.eq.s32.totalorder %s22, 0
      %p105 = por %p103, %p104
      %s107 = sadd.s32 %s106, 1
      %p110 = scmp.eq.s32.totalorder %s16, 1
      %p111 = scmp.ne.s32.totalorder %s106, %s108
      %p112 = scmp.eq.s32.totalorder %s16, 0
      %p113 = por %p111, %p112
      %p114 = scmp.ne.s32.totalorder %s106, %s108
      %p115 = scmp.eq.s32.totalorder %s21, 1
      %p116 = por %p114, %p115
      %p117 = scmp.ne.s32.totalorder %s108, %s109
      %p118 = scmp.eq.s32.totalorder %s21, 0
      %p119 = por %p117, %p118
      %p120 = scmp.ne.s32.totalorder %s108, %s109
      %p121 = scmp.eq.s32.totalorder %s22, 1
      %p122 = por %p120, %p121
      %p124 = scmp.ne.s32.totalorder %s109, %s123
      %p125 = scmp.eq.s32.totalorder %s22, 0
      %p126 = por %p124, %p125
      %s128 = sadd.s32 %s127, 1
      %p131 = scmp.eq.s32.totalorder %s16, 1
      %p132 = scmp.ne.s32.totalorder %s127, %s129
      %p133 = scmp.eq.s32.totalorder %s16, 0
      %p134 = por %p132, %p133
      %p135 = scmp.ne.s32.totalorder %s127, %s129
      %p136 = scmp.eq.s32.totalorder %s21, 1
      %p137 = por %p135, %p136
      %p138 = scmp.ne.s32.totalorder %s129, %s130
      %p139 = scmp.eq.s32.totalorder %s21, 0
      %p140 = por %p138, %p139
      %p141 = scmp.ne.s32.totalorder %s129, %s130
      %p142 = scmp.eq.s32.totalorder %s22, 1
      %p143 = por %p141, %p142
      %p145 = scmp.ne.s32.totalorder %s130, %s144
      %p146 = scmp.eq.s32.totalorder %s22, 0
      %p147 = por %p145, %p146
      %s149 = sadd.s32 %s148, 1
      %p152 = scmp.eq.s32.totalorder %s16, 1
      %p153 = scmp.ne.s32.totalorder %s148, %s150
      %p154 = scmp.eq.s32.totalorder %s16, 0
      %p155 = por %p153, %p154
      %p156 = scmp.ne.s32.totalorder %s148, %s150
      %p157 = scmp.eq.s32.totalorder %s21, 1
      %p158 = por %p156, %p157
      %p159 = scmp.ne.s32.totalorder %s150, %s151
      %p160 = scmp.eq.s32.totalorder %s21, 0
      %p161 = por %p159, %p160
      %p162 = scmp.ne.s32.totalorder %s150, %s151
      %p163 = scmp.eq.s32.totalorder %s22, 1
      %p164 = por %p162, %p163
      %p166 = scmp.ne.s32.totalorder %s151, %s165
      %p167 = scmp.eq.s32.totalorder %s22, 0
      %p168 = por %p166, %p167
      %s170 = sadd.s32 %s169, 1
      %p173 = scmp.eq.s32.totalorder %s16, 1
      %p174 = scmp.ne.s32.totalorder %s169, %s171
      %p175 = scmp.eq.s32.totalorder %s16, 0
      %p176 = por %p174, %p175
      %p177 = scmp.ne.s32.totalorder %s169, %s171
      %p178 = scmp.eq.s32.totalorder %s21, 1
      %p179 = por %p177, %p178
      %p180 = scmp.ne.s32.totalorder %s171, %s172
      %p181 = scmp.eq.s32.totalorder %s21, 0
      %p182 = por %p180, %p181
      %p183 = scmp.ne.s32.totalorder %s171, %s172
      %p184 = scmp.eq.s32.totalorder %s22, 1
      %p185 = por %p183, %p184
      %p187 = scmp.ne.s32.totalorder %s172, %s186
      %p188 = scmp.eq.s32.totalorder %s22, 0
      %p189 = por %p187, %p188
      %s190 = ssub.s32 %s23, %s35
      %p191 = scmp.eq.s32.totalorder %s190, 0
      %s193 = sadd.s32 %s192, 1
      %s194 = scalar_select %p191, %s192, %s193
      %p197 = pneg %p191
      %p198 = scmp.eq.s32.totalorder %s16, 1
      %p199 = por %p197, %p198
      %p200 = scmp.ne.s32.totalorder %s192, %s195
      %p201 = scmp.eq.s32.totalorder %s16, 0
      %p202 = por %p200, %p201
      %p203 = scmp.ne.s32.totalorder %s192, %s195
      %p204 = scmp.eq.s32.totalorder %s21, 1
      %p205 = por %p203, %p204
      %p206 = scmp.ne.s32.totalorder %s195, %s196
      %p207 = scmp.eq.s32.totalorder %s21, 0
      %p208 = por %p206, %p207
      %p209 = scmp.ne.s32.totalorder %s195, %s196
      %p210 = scmp.eq.s32.totalorder %s22, 1
      %p211 = por %p209, %p210
      %p213 = scmp.ne.s32.totalorder %s196, %s212
      %p214 = scmp.eq.s32.totalorder %s22, 0
      %p215 = por %p213, %p214
      %p216 = scmp.le.s32.totalorder 1, %s16
      %p217 = scmp.lt.s32.totalorder %s16, 3
      %p218 = pnand %p216, %p217
      %p219 = pneg %p218
      // Predicated region
      $region9: #{efficientnet_backbone_forward.1} parent=5 // pred_check
        _
      $region10: #{efficientnet_backbone_forward.1} parent=5 // pred_check_branch
        %221 = sbr.rel (%p218) target = $region12
      $region11: #{efficientnet_backbone_forward.1} parent=5 // pred_region
        %s222 = ssub.s32 %s16, 1
        // Predicated region
        $region13: #{efficientnet_backbone_forward.1} parent=11 // pred_check
          %p223 = pneg %p77
        $region14: #{efficientnet_backbone_forward.1} parent=11 // pred_check_branch
          %225 = sbr.rel (%p223) target = $region16
        $region15: #{efficientnet_backbone_forward.1} parent=11 // pred_region
          _
        $region16: #{efficientnet_backbone_forward.1} parent=11 // pred_fallthru
          _
        // Predicated region
        $region17: #{efficientnet_backbone_forward.1} parent=11 // pred_check
          %p226 = pneg %p98
        $region18: #{efficientnet_backbone_forward.1} parent=11 // pred_check_branch
          %228 = sbr.rel (%p226) target = $region20
        $region19: #{efficientnet_backbone_forward.1} parent=11 // pred_region
          _
        $region20: #{efficientnet_backbone_forward.1} parent=11 // pred_fallthru
          _
        // Predicated region
        $region21: #{efficientnet_backbone_forward.1} parent=11 // pred_check
          %p229 = pneg %p119
        $region22: #{efficientnet_backbone_forward.1} parent=11 // pred_check_branch
          %231 = sbr.rel (%p229) target = $region24
        $region23: #{efficientnet_backbone_forward.1} parent=11 // pred_region
          _
        $region24: #{efficientnet_backbone_forward.1} parent=11 // pred_fallthru
          _
        // Predicated region
        $region25: #{efficientnet_backbone_forward.1} parent=11 // pred_check
          %p232 = pneg %p140
        $region26: #{efficientnet_backbone_forward.1} parent=11 // pred_check_branch
          %234 = sbr.rel (%p232) target = $region28
        $region27: #{efficientnet_backbone_forward.1} parent=11 // pred_region
          _
        $region28: #{efficientnet_backbone_forward.1} parent=11 // pred_fallthru
          _
        // Predicated region
        $region29: #{efficientnet_backbone_forward.1} parent=11 // pred_check
          %p235 = pneg %p161
        $region30: #{efficientnet_backbone_forward.1} parent=11 // pred_check_branch
          %237 = sbr.rel (%p235) target = $region32
        $region31: #{efficientnet_backbone_forward.1} parent=11 // pred_region
          _
        $region32: #{efficientnet_backbone_forward.1} parent=11 // pred_fallthru
          _
        // Predicated region
        $region33: #{efficientnet_backbone_forward.1} parent=11 // pred_check
          %p238 = pneg %p182
        $region34: #{efficientnet_backbone_forward.1} parent=11 // pred_check_branch
          %240 = sbr.rel (%p238) target = $region36
        $region35: #{efficientnet_backbone_forward.1} parent=11 // pred_region
          _
        $region36: #{efficientnet_backbone_forward.1} parent=11 // pred_fallthru
          _
      $region12: #{efficientnet_backbone_forward.1} parent=5 // pred_fallthru
        _
      %p241 = scmp.lt.s32.totalorder %s16, 2
      // Predicated region
      $region37: #{efficientnet_backbone_forward.1} parent=5 // pred_check
        %p242 = pneg %p241
      $region38: #{efficientnet_backbone_forward.1} parent=5 // pred_check_branch
        %244 = sbr.rel (%p242) target = $region40
      $region39: #{efficientnet_backbone_forward.1} parent=5 // pred_region
        // Predicated region
        $region41: #{efficientnet_backbone_forward.1} parent=39 // pred_check
          %p245 = pneg %p50
        $region42: #{efficientnet_backbone_forward.1} parent=39 // pred_check_branch
          %247 = sbr.rel (%p245) target = $region44
        $region43: #{efficientnet_backbone_forward.1} parent=39 // pred_region
          %p248 = scmp.lt.s32.totalorder %s23, 1
          %s249 = scalar_select %p248, %s23, 1
          %p250 = scmp.lt.s32.totalorder %s24, 0
          %s251 = scalar_select %p250, %s24, 0
          %s252 = smul.addr %s249, 8
          %s253 = sadd.s32 %s251, %s252
          %s254 = smul.addr %s253, 4
          %s255 = scalar_lea.vmem %s0, %s254
        $region44: #{efficientnet_backbone_forward.1} parent=39 // pred_fallthru
          _
      $region40: #{efficientnet_backbone_forward.1} parent=5 // pred_fallthru
        _
      %p256 = scmp.le.s32.totalorder 1, %s16
      %p257 = scmp.lt.s32.totalorder %s16, 3
      %p258 = pnand %p256, %p257
      %p259 = pneg %p258
      // Predicated region
      $region45: #{efficientnet_backbone_forward.1} parent=5 // pred_check
        _
      $region46: #{efficientnet_backbone_forward.1} parent=5 // pred_check_branch
        %261 = sbr.rel (%p258) target = $region48
      $region47: #{efficientnet_backbone_forward.1} parent=5 // pred_region
        %s262 = ssub.s32 %s16, 1
        %p263 = scmp.lt.s32.totalorder %s25, 1
        %s264 = scalar_select %p263, %s25, 1
        %p265 = scmp.lt.s32.totalorder %s26, 0
        %s266 = scalar_select %p265, %s26, 0
        %s267 = smul.addr %s264, 8
        %s268 = sadd.s32 %s266, %s267
        %s269 = smul.addr %s268, 4
        %s270 = scalar_lea.vmem %s0, %s269
        %p271 = pneg %p56
        %p272 = pneg %p53
        %p273 = pneg %p77
        %p274 = pneg %p74
        %p275 = pneg %p98
        %p276 = pneg %p95
        %p277 = pneg %p119
        %p278 = pneg %p116
        %p279 = pneg %p140
        %p280 = pneg %p137
        %p281 = pneg %p161
        %p282 = pneg %p158
        %p283 = pneg %p182
        %p284 = pneg %p179
        %p285 = pneg %p208
        %p286 = pneg %p205
        %s287 = sand.u32 %s195, 1
        %s288 = scalar_lea.sflag [#allocation4], %s287
        %s289 = sand.u32 %s195, 1
        %s290 = smul.addr %s289, 32
        %s291 = scalar_lea.vmem [#allocation3], %s290
        %p292 = scmp.lt.s32.totalorder %s25, 1
        %s293 = scalar_select %p292, %s25, 1
        %p294 = scmp.lt.s32.totalorder %s26, 0
        %s295 = scalar_select %p294, %s26, 0
        %s296 = smul.addr %s293, 8
        %s297 = sadd.s32 %s295, %s296
        %s298 = smul.addr %s297, 4
        %s299 = scalar_lea.vmem %s0, %s298
        %p301 = scmp.eq.s32.totalorder %s26, 0
        // Predicated region
        $region49: #{efficientnet_backbone_forward.1} parent=47 // pred_check
          %p302 = pneg %p301
        $region50: #{efficientnet_backbone_forward.1} parent=47 // pred_check_branch
          %304 = sbr.rel (%p302) target = $region52
        $region51: #{efficientnet_backbone_forward.1} parent=47 // pred_region
          %305 = vst [vmem:[#allocation2] sm:$0xff] 0.0
          %306 = vst [vmem:[#allocation2 + $0x8] sm:$0xff] 0.0
          %307 = vst [vmem:[#allocation2 + $0x10] sm:$0xff] 0.0
          %308 = vst [vmem:[#allocation2 + $0x18] sm:$0xff] 0.0
          %309 = vst [vmem:[#allocation2 + $0x20] sm:$0xff] 0.0
          %310 = vst [vmem:[#allocation2 + $0x28] sm:$0xff] 0.0
          %311 = vst [vmem:[#allocation2 + $0x30] sm:$0xff] 0.0
          %312 = vst [vmem:[#allocation2 + $0x38] sm:$0xff] 0.0
          %313 = vst [vmem:[#allocation2 + $0x40] sm:$0xff] 0.0
          %314 = vst [vmem:[#allocation2 + $0x48] sm:$0xff] 0.0
        $region52: #{efficientnet_backbone_forward.1} parent=47 // pred_fallthru
          _
        %v315 = vld [vmem:[%s299] sm:$0xf]
        %v316 = vld [vmem:[%s299 + $0x4] sm:$0xf]
        %v317 = vld [vmem:[%s299 + $0x8] sm:$0xf]
        %v318 = vld [vmem:[%s299 + $0xc] sm:$0xf]
        %v319 = vld [vmem:[%s299 + $0x10] sm:$0xf]
        %v320 = vld [vmem:[%s299 + $0x14] sm:$0xf]
        %v321 = vld [vmem:[%s299 + $0x18] sm:$0xf]
        %v322 = vld [vmem:[%s299 + $0x1c] sm:$0xf]
        %v323 = vld [vmem:[%s1] sm:$0xf]
        %v324 = vld [vmem:[%s1 + $0x4] sm:$0xf]
        %v325 = vld [vmem:[%s1 + $0x8] sm:$0xf]
        %v326 = vld [vmem:[%s1 + $0xc] sm:$0xf]
        %v327 = vld [vmem:[%s2] sm:$0x1]
        %v329 = vlaneseq
        %v330 = vshrl.u32 %v329, 7
        %v331 = vsub.s32 0, %v330
        %v332 = vrot.slane %v327, %v331
        %v342 = vunpack.c.l.b16 %v315
        %v343 = vunpack.c.l.b16 %v316
        %v344 = vunpack.c.l.b16 %v317
        %v345 = vunpack.c.l.b16 %v318
        %v346 = vunpack.c.l.b16 %v319
        %v347 = vunpack.c.l.b16 %v320
        %v348 = vunpack.c.l.b16 %v321
        %v349 = vunpack.c.l.b16 %v322
        %v350 = vpack.c.b16 %v343, %v342
        %v351 = vpack.c.b16 %v345, %v344
        %v352 = vpack.c.b16 %v347, %v346
        %v353 = vpack.c.b16 %v349, %v348
        %v358 = vunpack.c.l.b16 %v323
        %v359 = vunpack.c.l.b16 %v324
        %v360 = vunpack.c.l.b16 %v325
        %v361 = vunpack.c.l.b16 %v326
        %v362 = vpack.c.b16 %v359, %v358
        %v363 = vpack.c.b16 %v361, %v360
        %vm366 = vcmask 261120
        %v368 = vsel %vm366, %v350, 0
        %v371 = vsel %vm366, %v351, 0
        %v374 = vsel %vm366, %v352, 0
        %v377 = vsel %vm366, %v353, 0
        %379 = vmatprep.subr.bf16.mxu0 0
        %380 = vmatpush1.bf16.msra.mxu0 %v362
        %381 = vmatprep.subr.bf16.mxu0 0
        %382 = vmatpush1.bf16.msra.mxu0 %v363
        %383 = vmatprep.subr.bf16.mxu0 0
        %384 = vmatpush1.bf16.msra.mxu0 0
        %385 = vmatprep.subr.bf16.mxu0 0
        %386 = vmatpush1.bf16.msra.mxu0 0
        %387 = vmatprep.subr.bf16.mxu0 0
        %388 = vmatpush1.bf16.msra.mxu0 0
        %389 = vmatprep.subr.bf16.mxu0 0
        %390 = vmatpush1.bf16.msra.mxu0 0
        %391 = vmatprep.subr.bf16.mxu0 0
        %392 = vmatpush1.bf16.msra.mxu0 0
        %393 = vmatprep.subr.bf16.mxu0 0
        %394 = vmatpush1.bf16.msra.mxu0 0
        %395 = vmatprep.subr.bf16.mxu0 0
        %396 = vmatpush1.bf16.msra.mxu0 0
        %397 = vmatprep.subr.bf16.mxu0 0
        %398 = vmatpush1.bf16.msra.mxu0 0
        %399 = vmatprep.subr.bf16.mxu0 0
        %400 = vmatpush1.bf16.msra.mxu0 0
        %401 = vmatprep.subr.bf16.mxu0 0
        %402 = vmatpush1.bf16.msra.mxu0 0
        %403 = vmatprep.subr.bf16.mxu0 0
        %404 = vmatpush1.bf16.msra.mxu0 0
        %405 = vmatprep.subr.bf16.mxu0 0
        %406 = vmatpush1.bf16.msra.mxu0 0
        %407 = vmatprep.subr.bf16.mxu0 0
        %408 = vmatpush1.bf16.msra.mxu0 0
        %409 = vmatprep.subr.bf16.mxu0 0
        %410 = vmatpush1.bf16.msra.mxu0 0
        %411 = vmatprep.mubr.bf16.mxu0 0
        %412 = vmatmul.mubr.bf16.gmra.mrb[0].mxu0 %v368
        %v413 = vpop.f32.mrb[0].mxu0
        %v414 = vadd.f32 %v332, %v413
        %v415 = vpop.f32.mrb[0].mxu0
        %v416 = vpop.f32.mrb[0].mxu0
        %v417 = vadd.f32 %v332, %v416
        %v418 = vpop.f32.mrb[0].mxu0
        %419 = vmatprep.mubr.bf16.mxu0 0
        %420 = vmatmul.mubr.bf16.gmra.mrb[0].mxu0 %v371
        %v421 = vpop.f32.mrb[0].mxu0
        %v422 = vadd.f32 %v332, %v421
        %v423 = vpop.f32.mrb[0].mxu0
        %v424 = vpop.f32.mrb[0].mxu0
        %v425 = vadd.f32 %v332, %v424
        %v426 = vpop.f32.mrb[0].mxu0
        %427 = vmatprep.mubr.bf16.mxu0 0
        %428 = vmatmul.mubr.bf16.gmra.mrb[0].mxu0 %v374
        %v429 = vpop.f32.mrb[0].mxu0
        %v430 = vadd.f32 %v332, %v429
        %v431 = vpop.f32.mrb[0].mxu0
        %v432 = vpop.f32.mrb[0].mxu0
        %v433 = vadd.f32 %v332, %v432
        %v434 = vpop.f32.mrb[0].mxu0
        %435 = vmatprep.mubr.bf16.mxu0 0
        %436 = vmatmul.mubr.bf16.gmra.mrb[0].mxu0 %v377
        %v437 = vpop.f32.mrb[0].mxu0
        %v438 = vadd.f32 %v332, %v437
        %v439 = vpop.f32.mrb[0].mxu0
        %v440 = vpop.f32.mrb[0].mxu0
        %v441 = vadd.f32 %v332, %v440
        %v442 = vpop.f32.mrb[0].mxu0
        %443 = vdwg.mxu0
        %v444 = vxor.u32 %v414, 2147483648
        %v445 = vxor.u32 %v417, 2147483648
        %v446 = vxor.u32 %v422, 2147483648
        %v447 = vxor.u32 %v425, 2147483648
        %v448 = vxor.u32 %v430, 2147483648
        %v449 = vxor.u32 %v433, 2147483648
        %v450 = vxor.u32 %v438, 2147483648
        %v451 = vxor.u32 %v441, 2147483648
        %v452 = vmul.f32 %v444, 1.442695
        %v453 = vpow.pop %v452
        %v454 = vmul.f32 %v445, 1.442695
        %v455 = vpow.pop %v454
        %v456 = vmul.f32 %v446, 1.442695
        %v457 = vpow.pop %v456
        %v458 = vmul.f32 %v447, 1.442695
        %v459 = vpow.pop %v458
        %v460 = vmul.f32 %v448, 1.442695
        %v461 = vpow.pop %v460
        %v462 = vmul.f32 %v449, 1.442695
        %v463 = vpow.pop %v462
        %v464 = vmul.f32 %v450, 1.442695
        %v465 = vpow.pop %v464
        %v466 = vmul.f32 %v451, 1.442695
        %v467 = vpow.pop %v466
        %v468 = vadd.f32 %v453, 1.0
        %v469 = vadd.f32 %v455, 1.0
        %v470 = vadd.f32 %v457, 1.0
        %v471 = vadd.f32 %v459, 1.0
        %v472 = vadd.f32 %v461, 1.0
        %v473 = vadd.f32 %v463, 1.0
        %v474 = vadd.f32 %v465, 1.0
        %v475 = vadd.f32 %v467, 1.0
        %v476 = vrcp.pop %v468
        %v477 = vmul.f32 1.0, %v476
        %v478 = vrcp.pop %v469
        %v479 = vmul.f32 1.0, %v478
        %v480 = vrcp.pop %v470
        %v481 = vmul.f32 1.0, %v480
        %v482 = vrcp.pop %v471
        %v483 = vmul.f32 1.0, %v482
        %v484 = vrcp.pop %v472
        %v485 = vmul.f32 1.0, %v484
        %v486 = vrcp.pop %v473
        %v487 = vmul.f32 1.0, %v486
        %v488 = vrcp.pop %v474
        %v489 = vmul.f32 1.0, %v488
        %v490 = vrcp.pop %v475
        %v491 = vmul.f32 1.0, %v490
        %v492 = vmul.f32 %v414, %v477
        %v493 = vmul.f32 %v417, %v479
        %v494 = vmul.f32 %v422, %v481
        %v495 = vmul.f32 %v425, %v483
        %v496 = vmul.f32 %v430, %v485
        %v497 = vmul.f32 %v433, %v487
        %v498 = vmul.f32 %v438, %v489
        %v499 = vmul.f32 %v441, %v491
        %v500 = vpack.c.bf16 %v493, %v492
        %v501 = vpack.c.bf16 %v495, %v494
        %v502 = vpack.c.bf16 %v497, %v496
        %v503 = vpack.c.bf16 %v499, %v498
        %v504 = vld [vmem:[%s3] sm:$0xff]
        %v505 = vld [vmem:[%s3 + $0x8] sm:$0xff]
        %v506 = vld [vmem:[%s3 + $0x10] sm:$0xff]
        %v507 = vld [vmem:[%s3 + $0x18] sm:$0xff]
        %v508 = vld [vmem:[%s3 + $0x20] sm:$0xff]
        %v509 = vld [vmem:[%s3 + $0x28] sm:$0xff]
        %v510 = vld [vmem:[%s3 + $0x30] sm:$0xff]
        %v511 = vld [vmem:[%s3 + $0x38] sm:$0xff]
        %v512 = vld [vmem:[%s3 + $0x40] sm:$0xff]
        %v513 = vld [vmem:[%s3 + $0x48] sm:$0xff]
        %v514 = vld [vmem:[%s3 + $0x50] sm:$0xff]
        %v515 = vld [vmem:[%s3 + $0x58] sm:$0xff]
        %v516 = vld [vmem:[%s3 + $0x60] sm:$0xff]
        %v517 = vld [vmem:[%s3 + $0x68] sm:$0xff]
        %v518 = vld [vmem:[%s3 + $0x70] sm:$0xff]
        %v519 = vld [vmem:[%s3 + $0x78] sm:$0xff]
        %v520 = vld [vmem:[%s3 + $0x80] sm:$0xff]
        %v521 = vld [vmem:[%s3 + $0x88] sm:$0xff]
        %v522 = vld [vmem:[%s3 + $0x90] sm:$0xff]
        %v523 = vld [vmem:[%s3 + $0x98] sm:$0xff]
        %v524 = vld [vmem:[%s4] sm:$0xff]
        %v525 = vld [vmem:[%s4 + $0x8] sm:$0x3]
        %v528 = vlaneseq
        %v529 = vshrl.u32 %v528, 7
        %v530 = vsub.s32 0, %v529
        %v531 = vrot.slane %v524, %v530
        %v532 = vlaneseq
        %v533 = vshrl.u32 %v532, 7
        %v534 = vsub.s32 1, %v533
        %v535 = vrot.slane %v524, %v534
        %v536 = vlaneseq
        %v537 = vshrl.u32 %v536, 7
        %v538 = vsub.s32 2, %v537
        %v539 = vrot.slane %v524, %v538
        %v540 = vlaneseq
        %v541 = vshrl.u32 %v540, 7
        %v542 = vsub.s32 3, %v541
        %v543 = vrot.slane %v524, %v542
        %v544 = vlaneseq
        %v545 = vshrl.u32 %v544, 7
        %v546 = vsub.s32 4, %v545
        %v547 = vrot.slane %v524, %v546
        %v548 = vlaneseq
        %v549 = vshrl.u32 %v548, 7
        %v550 = vsub.s32 5, %v549
        %v551 = vrot.slane %v524, %v550
        %v552 = vlaneseq
        %v553 = vshrl.u32 %v552, 7
        %v554 = vsub.s32 6, %v553
        %v555 = vrot.slane %v524, %v554
        %v556 = vlaneseq
        %v557 = vshrl.u32 %v556, 7
        %v558 = vsub.s32 7, %v557
        %v559 = vrot.slane %v524, %v558
        %v560 = vlaneseq
        %v561 = vshrl.u32 %v560, 7
        %v562 = vsub.s32 0, %v561
        %v563 = vrot.slane %v525, %v562
        %v564 = vlaneseq
        %v565 = vshrl.u32 %v564, 7
        %v566 = vsub.s32 1, %v565
        %v567 = vrot.slane %v525, %v566
        %v598 = vunpack.c.l.b16 %v504
        %v599 = vunpack.c.h.b16 %v504
        %v600 = vunpack.c.l.b16 %v505
        %v601 = vunpack.c.h.b16 %v505
        %v602 = vunpack.c.l.b16 %v506
        %v603 = vunpack.c.h.b16 %v506
        %v604 = vunpack.c.l.b16 %v507
        %v605 = vunpack.c.h.b16 %v507
        %v606 = vunpack.c.l.b16 %v508
        %v607 = vunpack.c.h.b16 %v508
        %v608 = vunpack.c.l.b16 %v509
        %v609 = vunpack.c.h.b16 %v509
        %v610 = vunpack.c.l.b16 %v510
        %v611 = vunpack.c.h.b16 %v510
        %v612 = vunpack.c.l.b16 %v511
        %v613 = vunpack.c.h.b16 %v511
        %v614 = vunpack.c.l.b16 %v512
        %v615 = vunpack.c.h.b16 %v512
        %v616 = vunpack.c.l.b16 %v513
        %v617 = vunpack.c.h.b16 %v513
        %v618 = vunpack.c.l.b16 %v514
        %v619 = vunpack.c.h.b16 %v514
        %v620 = vunpack.c.l.b16 %v515
        %v621 = vunpack.c.h.b16 %v515
        %v622 = vunpack.c.l.b16 %v516
        %v623 = vunpack.c.h.b16 %v516
        %v624 = vunpack.c.l.b16 %v517
        %v625 = vunpack.c.h.b16 %v517
        %v626 = vunpack.c.l.b16 %v518
        %v627 = vunpack.c.h.b16 %v518
        %v628 = vunpack.c.l.b16 %v519
        %v629 = vunpack.c.h.b16 %v519
        %v630 = vunpack.c.l.b16 %v520
        %v631 = vunpack.c.h.b16 %v520
        %v632 = vunpack.c.l.b16 %v521
        %v633 = vunpack.c.h.b16 %v521
        %v634 = vunpack.c.l.b16 %v522
        %v635 = vunpack.c.h.b16 %v522
        %v636 = vunpack.c.l.b16 %v523
        %v637 = vunpack.c.h.b16 %v523
        %v638 = vpack.c.b16 %v608, %v598
        %v639 = vpack.c.b16 %v609, %v599
        %v640 = vpack.c.b16 %v610, %v600
        %v641 = vpack.c.b16 %v611, %v601
        %v642 = vpack.c.b16 %v612, %v602
        %v643 = vpack.c.b16 %v613, %v603
        %v644 = vpack.c.b16 %v614, %v604
        %v645 = vpack.c.b16 %v615, %v605
        %v646 = vpack.c.b16 %v616, %v606
        %v647 = vpack.c.b16 %v617, %v607
        %v648 = vpack.c.b16 %v628, %v618
        %v649 = vpack.c.b16 %v629, %v619
        %v650 = vpack.c.b16 %v630, %v620
        %v651 = vpack.c.b16 %v631, %v621
        %v652 = vpack.c.b16 %v632, %v622
        %v653 = vpack.c.b16 %v633, %v623
        %v654 = vpack.c.b16 %v634, %v624
        %v655 = vpack.c.b16 %v635, %v625
        %v656 = vpack.c.b16 %v636, %v626
        %v657 = vpack.c.b16 %v637, %v627
        %v679 = vsel %vm366, %v500, 0
        %v682 = vsel %vm366, %v501, 0
        %v685 = vsel %vm366, %v502, 0
        %v688 = vsel %vm366, %v503, 0
        %690 = vmatprep.subr.bf16.mxu0 %v639
        %691 = vmatpush1.bf16.msra.mxu0 %v638
        %692 = vmatprep.subr.bf16.mxu0 %v649
        %693 = vmatpush1.bf16.msra.mxu0 %v648
        %694 = vmatprep.subr.bf16.mxu0 0
        %695 = vmatpush1.bf16.msra.mxu0 0
        %696 = vmatprep.subr.bf16.mxu0 0
        %697 = vmatpush1.bf16.msra.mxu0 0
        %698 = vmatprep.subr.bf16.mxu0 0
        %699 = vmatpush1.bf16.msra.mxu0 0
        %700 = vmatprep.subr.bf16.mxu0 0
        %701 = vmatpush1.bf16.msra.mxu0 0
        %702 = vmatprep.subr.bf16.mxu0 0
        %703 = vmatpush1.bf16.msra.mxu0 0
        %704 = vmatprep.subr.bf16.mxu0 0
        %705 = vmatpush1.bf16.msra.mxu0 0
        %706 = vmatprep.subr.bf16.mxu0 0
        %707 = vmatpush1.bf16.msra.mxu0 0
        %708 = vmatprep.subr.bf16.mxu0 0
        %709 = vmatpush1.bf16.msra.mxu0 0
        %710 = vmatprep.subr.bf16.mxu0 0
        %711 = vmatpush1.bf16.msra.mxu0 0
        %712 = vmatprep.subr.bf16.mxu0 0
        %713 = vmatpush1.bf16.msra.mxu0 0
        %714 = vmatprep.subr.bf16.mxu0 0
        %715 = vmatpush1.bf16.msra.mxu0 0
        %716 = vmatprep.subr.bf16.mxu0 0
        %717 = vmatpush1.bf16.msra.mxu0 0
        %718 = vmatprep.subr.bf16.mxu0 0
        %719 = vmatpush1.bf16.msra.mxu0 0
        %720 = vmatprep.subr.bf16.mxu0 0
        %721 = vmatpush1.bf16.msra.mxu0 0
        %722 = vmatprep.mubr.bf16.mxu0 0
        %723 = vmatmul.mubr.bf16.gmra.mrb[0].mxu0 %v679
        %v724 = vpop.f32.mrb[0].mxu0
        %v725 = vadd.f32 %v531, %v724
        %v726 = vpop.f32.mrb[0].mxu0
        %v727 = vadd.f32 %v535, %v726
        %v728 = vpop.f32.mrb[0].mxu0
        %v729 = vadd.f32 %v531, %v728
        %v730 = vpop.f32.mrb[0].mxu0
        %v731 = vadd.f32 %v535, %v730
        %732 = vmatprep.mubr.bf16.mxu0 0
        %733 = vmatmul.mubr.bf16.gmra.mrb[0].mxu0 %v682
        %v734 = vpop.f32.mrb[0].mxu0
        %v735 = vadd.f32 %v531, %v734
        %v736 = vpop.f32.mrb[0].mxu0
        %v737 = vadd.f32 %v535, %v736
        %v738 = vpop.f32.mrb[0].mxu0
        %v739 = vadd.f32 %v531, %v738
        %v740 = vpop.f32.mrb[0].mxu0
        %v741 = vadd.f32 %v535, %v740
        %742 = vmatprep.mubr.bf16.mxu0 0
        %743 = vmatmul.mubr.bf16.gmra.mrb[0].mxu0 %v685
        %v744 = vpop.f32.mrb[0].mxu0
        %v745 = vadd.f32 %v531, %v744
        %v746 = vpop.f32.mrb[0].mxu0
        %v747 = vadd.f32 %v535, %v746
        %v748 = vpop.f32.mrb[0].mxu0
        %v749 = vadd.f32 %v531, %v748
        %v750 = vpop.f32.mrb[0].mxu0
        %v751 = vadd.f32 %v535, %v750
        %752 = vmatprep.mubr.bf16.mxu0 0
        %753 = vmatmul.mubr.bf16.gmra.mrb[0].mxu0 %v688
        %v754 = vpop.f32.mrb[0].mxu0
        %v755 = vadd.f32 %v531, %v754
        %v756 = vpop.f32.mrb[0].mxu0
        %v757 = vadd.f32 %v535, %v756
        %v758 = vpop.f32.mrb[0].mxu0
        %v759 = vadd.f32 %v531, %v758
        %v760 = vpop.f32.mrb[0].mxu0
        %v761 = vadd.f32 %v535, %v760
        %762 = vdwg.mxu0
        %763 = vmatprep.subr.bf16.mxu0 %v641
        %764 = vmatpush1.bf16.msra.mxu0 %v640
        %765 = vmatprep.subr.bf16.mxu0 %v651
        %766 = vmatpush1.bf16.msra.mxu0 %v650
        %767 = vmatprep.subr.bf16.mxu0 0
        %768 = vmatpush1.bf16.msra.mxu0 0
        %769 = vmatprep.subr.bf16.mxu0 0
        %770 = vmatpush1.bf16.msra.mxu0 0
        %771 = vmatprep.subr.bf16.mxu0 0
        %772 = vmatpush1.bf16.msra.mxu0 0
        %773 = vmatprep.subr.bf16.mxu0 0
        %774 = vmatpush1.bf16.msra.mxu0 0
        %775 = vmatprep.subr.bf16.mxu0 0
        %776 = vmatpush1.bf16.msra.mxu0 0
        %777 = vmatprep.subr.bf16.mxu0 0
        %778 = vmatpush1.bf16.msra.mxu0 0
        %779 = vmatprep.subr.bf16.mxu0 0
        %780 = vmatpush1.bf16.msra.mxu0 0
        %781 = vmatprep.subr.bf16.mxu0 0
        %782 = vmatpush1.bf16.msra.mxu0 0
        %783 = vmatprep.subr.bf16.mxu0 0
        %784 = vmatpush1.bf16.msra.mxu0 0
        %785 = vmatprep.subr.bf16.mxu0 0
        %786 = vmatpush1.bf16.msra.mxu0 0
        %787 = vmatprep.subr.bf16.mxu0 0
        %788 = vmatpush1.bf16.msra.mxu0 0
        %789 = vmatprep.subr.bf16.mxu0 0
        %790 = vmatpush1.bf16.msra.mxu0 0
        %791 = vmatprep.subr.bf16.mxu0 0
        %792 = vmatpush1.bf16.msra.mxu0 0
        %793 = vmatprep.subr.bf16.mxu0 0
        %794 = vmatpush1.bf16.msra.mxu0 0
        %795 = vmatprep.mubr.bf16.mxu0 0
        %796 = vmatmul.mubr.bf16.gmra.mrb[0].mxu0 %v679
        %v797 = vpop.f32.mrb[0].mxu0
        %v798 = vadd.f32 %v539, %v797
        %v799 = vpop.f32.mrb[0].mxu0
        %v800 = vadd.f32 %v543, %v799
        %v801 = vpop.f32.mrb[0].mxu0
        %v802 = vadd.f32 %v539, %v801
        %v803 = vpop.f32.mrb[0].mxu0
        %v804 = vadd.f32 %v543, %v803
        %805 = vmatprep.mubr.bf16.mxu0 0
        %806 = vmatmul.mubr.bf16.gmra.mrb[0].mxu0 %v682
        %v807 = vpop.f32.mrb[0].mxu0
        %v808 = vadd.f32 %v539, %v807
        %v809 = vpop.f32.mrb[0].mxu0
        %v810 = vadd.f32 %v543, %v809
        %v811 = vpop.f32.mrb[0].mxu0
        %v812 = vadd.f32 %v539, %v811
        %v813 = vpop.f32.mrb[0].mxu0
        %v814 = vadd.f32 %v543, %v813
        %815 = vmatprep.mubr.bf16.mxu0 0
        %816 = vmatmul.mubr.bf16.gmra.mrb[0].mxu0 %v685
        %v817 = vpop.f32.mrb[0].mxu0
        %v818 = vadd.f32 %v539, %v817
        %v819 = vpop.f32.mrb[0].mxu0
        %v820 = vadd.f32 %v543, %v819
        %v821 = vpop.f32.mrb[0].mxu0
        %v822 = vadd.f32 %v539, %v821
        %v823 = vpop.f32.mrb[0].mxu0
        %v824 = vadd.f32 %v543, %v823
        %825 = vmatprep.mubr.bf16.mxu0 0
        %826 = vmatmul.mubr.bf16.gmra.mrb[0].mxu0 %v688
        %v827 = vpop.f32.mrb[0].mxu0
        %v828 = vadd.f32 %v539, %v827
        %v829 = vpop.f32.mrb[0].mxu0
        %v830 = vadd.f32 %v543, %v829
        %v831 = vpop.f32.mrb[0].mxu0
        %v832 = vadd.f32 %v539, %v831
        %v833 = vpop.f32.mrb[0].mxu0
        %v834 = vadd.f32 %v543, %v833
        %835 = vdwg.mxu0
        %836 = vmatprep.subr.bf16.mxu0 %v643
        %837 = vmatpush1.bf16.msra.mxu0 %v642
        %838 = vmatprep.subr.bf16.mxu0 %v653
        %839 = vmatpush1.bf16.msra.mxu0 %v652
        %840 = vmatprep.subr.bf16.mxu0 0
        %841 = vmatpush1.bf16.msra.mxu0 0
        %842 = vmatprep.subr.bf16.mxu0 0
        %843 = vmatpush1.bf16.msra.mxu0 0
        %844 = vmatprep.subr.bf16.mxu0 0
        %845 = vmatpush1.bf16.msra.mxu0 0
        %846 = vmatprep.subr.bf16.mxu0 0
        %847 = vmatpush1.bf16.msra.mxu0 0
        %848 = vmatprep.subr.bf16.mxu0 0
        %849 = vmatpush1.bf16.msra.mxu0 0
        %850 = vmatprep.subr.bf16.mxu0 0
        %851 = vmatpush1.bf16.msra.mxu0 0
        %852 = vmatprep.subr.bf16.mxu0 0
        %853 = vmatpush1.bf16.msra.mxu0 0
        %854 = vmatprep.subr.bf16.mxu0 0
        %855 = vmatpush1.bf16.msra.mxu0 0
        %856 = vmatprep.subr.bf16.mxu0 0
        %857 = vmatpush1.bf16.msra.mxu0 0
        %858 = vmatprep.subr.bf16.mxu0 0
        %859 = vmatpush1.bf16.msra.mxu0 0
        %860 = vmatprep.subr.bf16.mxu0 0
        %861 = vmatpush1.bf16.msra.mxu0 0
        %862 = vmatprep.subr.bf16.mxu0 0
        %863 = vmatpush1.bf16.msra.mxu0 0
        %864 = vmatprep.subr.bf16.mxu0 0
        %865 = vmatpush1.bf16.msra.mxu0 0
        %866 = vmatprep.subr.bf16.mxu0 0
        %867 = vmatpush1.bf16.msra.mxu0 0
        %868 = vmatprep.mubr.bf16.mxu0 0
        %869 = vmatmul.mubr.bf16.gmra.mrb[0].mxu0 %v679
        %v870 = vpop.f32.mrb[0].mxu0
        %v871 = vadd.f32 %v547, %v870
        %v872 = vpop.f32.mrb[0].mxu0
        %v873 = vadd.f32 %v551, %v872
        %v874 = vpop.f32.mrb[0].mxu0
        %v875 = vadd.f32 %v547, %v874
        %v876 = vpop.f32.mrb[0].mxu0
        %v877 = vadd.f32 %v551, %v876
        %878 = vmatprep.mubr.bf16.mxu0 0
        %879 = vmatmul.mubr.bf16.gmra.mrb[0].mxu0 %v682
        %v880 = vpop.f32.mrb[0].mxu0
        %v881 = vadd.f32 %v547, %v880
        %v882 = vpop.f32.mrb[0].mxu0
        %v883 = vadd.f32 %v551, %v882
        %v884 = vpop.f32.mrb[0].mxu0
        %v885 = vadd.f32 %v547, %v884
        %v886 = vpop.f32.mrb[0].mxu0
        %v887 = vadd.f32 %v551, %v886
        %888 = vmatprep.mubr.bf16.mxu0 0
        %889 = vmatmul.mubr.bf16.gmra.mrb[0].mxu0 %v685
        %v890 = vpop.f32.mrb[0].mxu0
        %v891 = vadd.f32 %v547, %v890
        %v892 = vpop.f32.mrb[0].mxu0
        %v893 = vadd.f32 %v551, %v892
        %v894 = vpop.f32.mrb[0].mxu0
        %v895 = vadd.f32 %v547, %v894
        %v896 = vpop.f32.mrb[0].mxu0
        %v897 = vadd.f32 %v551, %v896
        %898 = vmatprep.mubr.bf16.mxu0 0
        %899 = vmatmul.mubr.bf16.gmra.mrb[0].mxu0 %v688
        %v900 = vpop.f32.mrb[0].mxu0
        %v901 = vadd.f32 %v547, %v900
        %v902 = vpop.f32.mrb[0].mxu0
        %v903 = vadd.f32 %v551, %v902
        %v904 = vpop.f32.mrb[0].mxu0
        %v905 = vadd.f32 %v547, %v904
        %v906 = vpop.f32.mrb[0].mxu0
        %v907 = vadd.f32 %v551, %v906
        %908 = vdwg.mxu0
        %909 = vmatprep.subr.bf16.mxu0 %v645
        %910 = vmatpush1.bf16.msra.mxu0 %v644
        %911 = vmatprep.subr.bf16.mxu0 %v655
        %912 = vmatpush1.bf16.msra.mxu0 %v654
        %913 = vmatprep.subr.bf16.mxu0 0
        %914 = vmatpush1.bf16.msra.mxu0 0
        %915 = vmatprep.subr.bf16.mxu0 0
        %916 = vmatpush1.bf16.msra.mxu0 0
        %917 = vmatprep.subr.bf16.mxu0 0
        %918 = vmatpush1.bf16.msra.mxu0 0
        %919 = vmatprep.subr.bf16.mxu0 0
        %920 = vmatpush1.bf16.msra.mxu0 0
        %921 = vmatprep.subr.bf16.mxu0 0
        %922 = vmatpush1.bf16.msra.mxu0 0
        %923 = vmatprep.subr.bf16.mxu0 0
        %924 = vmatpush1.bf16.msra.mxu0 0
        %925 = vmatprep.subr.bf16.mxu0 0
        %926 = vmatpush1.bf16.msra.mxu0 0
        %927 = vmatprep.subr.bf16.mxu0 0
        %928 = vmatpush1.bf16.msra.mxu0 0
        %929 = vmatprep.subr.bf16.mxu0 0
        %930 = vmatpush1.bf16.msra.mxu0 0
        %931 = vmatprep.subr.bf16.mxu0 0
        %932 = vmatpush1.bf16.msra.mxu0 0
        %933 = vmatprep.subr.bf16.mxu0 0
        %934 = vmatpush1.bf16.msra.mxu0 0
        %935 = vmatprep.subr.bf16.mxu0 0
        %936 = vmatpush1.bf16.msra.mxu0 0
        %937 = vmatprep.subr.bf16.mxu0 0
        %938 = vmatpush1.bf16.msra.mxu0 0
        %939 = vmatprep.subr.bf16.mxu0 0
        %940 = vmatpush1.bf16.msra.mxu0 0
        %941 = vmatprep.mubr.bf16.mxu0 0
        %942 = vmatmul.mubr.bf16.gmra.mrb[0].mxu0 %v679
        %v943 = vpop.f32.mrb[0].mxu0
        %v944 = vadd.f32 %v555, %v943
        %v945 = vpop.f32.mrb[0].mxu0
        %v946 = vadd.f32 %v559, %v945
        %v947 = vpop.f32.mrb[0].mxu0
        %v948 = vadd.f32 %v555, %v947
        %v949 = vpop.f32.mrb[0].mxu0
        %v950 = vadd.f32 %v559, %v949
        %951 = vmatprep.mubr.bf16.mxu0 0
        %952 = vmatmul.mubr.bf16.gmra.mrb[0].mxu0 %v682
        %v953 = vpop.f32.mrb[0].mxu0
        %v954 = vadd.f32 %v555, %v953
        %v955 = vpop.f32.mrb[0].mxu0
        %v956 = vadd.f32 %v559, %v955
        %v957 = vpop.f32.mrb[0].mxu0
        %v958 = vadd.f32 %v555, %v957
        %v959 = vpop.f32.mrb[0].mxu0
        %v960 = vadd.f32 %v559, %v959
        %961 = vmatprep.mubr.bf16.mxu0 0
        %962 = vmatmul.mubr.bf16.gmra.mrb[0].mxu0 %v685
        %v963 = vpop.f32.mrb[0].mxu0
        %v964 = vadd.f32 %v555, %v963
        %v965 = vpop.f32.mrb[0].mxu0
        %v966 = vadd.f32 %v559, %v965
        %v967 = vpop.f32.mrb[0].mxu0
        %v968 = vadd.f32 %v555, %v967
        %v969 = vpop.f32.mrb[0].mxu0
        %v970 = vadd.f32 %v559, %v969
        %971 = vmatprep.mubr.bf16.mxu0 0
        %972 = vmatmul.mubr.bf16.gmra.mrb[0].mxu0 %v688
        %v973 = vpop.f32.mrb[0].mxu0
        %v974 = vadd.f32 %v555, %v973
        %v975 = vpop.f32.mrb[0].mxu0
        %v976 = vadd.f32 %v559, %v975
        %v977 = vpop.f32.mrb[0].mxu0
        %v978 = vadd.f32 %v555, %v977
        %v979 = vpop.f32.mrb[0].mxu0
        %v980 = vadd.f32 %v559, %v979
        %981 = vdwg.mxu0
        %982 = vmatprep.subr.bf16.mxu0 %v647
        %983 = vmatpush1.bf16.msra.mxu0 %v646
        %984 = vmatprep.subr.bf16.mxu0 %v657
        %985 = vmatpush1.bf16.msra.mxu0 %v656
        %986 = vmatprep.subr.bf16.mxu0 0
        %987 = vmatpush1.bf16.msra.mxu0 0
        %988 = vmatprep.subr.bf16.mxu0 0
        %989 = vmatpush1.bf16.msra.mxu0 0
        %990 = vmatprep.subr.bf16.mxu0 0
        %991 = vmatpush1.bf16.msra.mxu0 0
        %992 = vmatprep.subr.bf16.mxu0 0
        %993 = vmatpush1.bf16.msra.mxu0 0
        %994 = vmatprep.subr.bf16.mxu0 0
        %995 = vmatpush1.bf16.msra.mxu0 0
        %996 = vmatprep.subr.bf16.mxu0 0
        %997 = vmatpush1.bf16.msra.mxu0 0
        %998 = vmatprep.subr.bf16.mxu0 0
        %999 = vmatpush1.bf16.msra.mxu0 0
        %1000 = vmatprep.subr.bf16.mxu0 0
        %1001 = vmatpush1.bf16.msra.mxu0 0
        %1002 = vmatprep.subr.bf16.mxu0 0
        %1003 = vmatpush1.bf16.msra.mxu0 0
        %1004 = vmatprep.subr.bf16.mxu0 0
        %1005 = vmatpush1.bf16.msra.mxu0 0
        %1006 = vmatprep.subr.bf16.mxu0 0
        %1007 = vmatpush1.bf16.msra.mxu0 0
        %1008 = vmatprep.subr.bf16.mxu0 0
        %1009 = vmatpush1.bf16.msra.mxu0 0
        %1010 = vmatprep.subr.bf16.mxu0 0
        %1011 = vmatpush1.bf16.msra.mxu0 0
        %1012 = vmatprep.subr.bf16.mxu0 0
        %1013 = vmatpush1.bf16.msra.mxu0 0
        %1014 = vmatprep.mubr.bf16.mxu0 0
        %1015 = vmatmul.mubr.bf16.gmra.mrb[0].mxu0 %v679
        %v1016 = vpop.f32.mrb[0].mxu0
        %v1017 = vadd.f32 %v563, %v1016
        %v1018 = vpop.f32.mrb[0].mxu0
        %v1019 = vadd.f32 %v567, %v1018
        %v1020 = vpop.f32.mrb[0].mxu0
        %v1021 = vadd.f32 %v563, %v1020
        %v1022 = vpop.f32.mrb[0].mxu0
        %v1023 = vadd.f32 %v567, %v1022
        %1024 = vmatprep.mubr.bf16.mxu0 0
        %1025 = vmatmul.mubr.bf16.gmra.mrb[0].mxu0 %v682
        %v1026 = vpop.f32.mrb[0].mxu0
        %v1027 = vadd.f32 %v563, %v1026
        %v1028 = vpop.f32.mrb[0].mxu0
        %v1029 = vadd.f32 %v567, %v1028
        %v1030 = vpop.f32.mrb[0].mxu0
        %v1031 = vadd.f32 %v563, %v1030
        %v1032 = vpop.f32.mrb[0].mxu0
        %v1033 = vadd.f32 %v567, %v1032
        %1034 = vmatprep.mubr.bf16.mxu0 0
        %1035 = vmatmul.mubr.bf16.gmra.mrb[0].mxu0 %v685
        %v1036 = vpop.f32.mrb[0].mxu0
        %v1037 = vadd.f32 %v563, %v1036
        %v1038 = vpop.f32.mrb[0].mxu0
        %v1039 = vadd.f32 %v567, %v1038
        %v1040 = vpop.f32.mrb[0].mxu0
        %v1041 = vadd.f32 %v563, %v1040
        %v1042 = vpop.f32.mrb[0].mxu0
        %v1043 = vadd.f32 %v567, %v1042
        %1044 = vmatprep.mubr.bf16.mxu0 0
        %1045 = vmatmul.mubr.bf16.gmra.mrb[0].mxu0 %v688
        %v1046 = vpop.f32.mrb[0].mxu0
        %v1047 = vadd.f32 %v563, %v1046
        %v1048 = vpop.f32.mrb[0].mxu0
        %v1049 = vadd.f32 %v567, %v1048
        %v1050 = vpop.f32.mrb[0].mxu0
        %v1051 = vadd.f32 %v563, %v1050
        %v1052 = vpop.f32.mrb[0].mxu0
        %v1053 = vadd.f32 %v567, %v1052
        %1054 = vdwg.mxu0
        %v1055 = vxor.u32 %v725, 2147483648
        %v1056 = vxor.u32 %v727, 2147483648
        %v1057 = vxor.u32 %v798, 2147483648
        %v1058 = vxor.u32 %v800, 2147483648
        %v1059 = vxor.u32 %v871, 2147483648
        %v1060 = vxor.u32 %v873, 2147483648
        %v1061 = vxor.u32 %v944, 2147483648
        %v1062 = vxor.u32 %v946, 2147483648
        %v1063 = vxor.u32 %v1017, 2147483648
        %v1064 = vxor.u32 %v1019, 2147483648
        %v1065 = vxor.u32 %v729, 2147483648
        %v1066 = vxor.u32 %v731, 2147483648
        %v1067 = vxor.u32 %v802, 2147483648
        %v1068 = vxor.u32 %v804, 2147483648
        %v1069 = vxor.u32 %v875, 2147483648
        %v1070 = vxor.u32 %v877, 2147483648
        %v1071 = vxor.u32 %v948, 2147483648
        %v1072 = vxor.u32 %v950, 2147483648
        %v1073 = vxor.u32 %v1021, 2147483648
        %v1074 = vxor.u32 %v1023, 2147483648
        %v1075 = vxor.u32 %v735, 2147483648
        %v1076 = vxor.u32 %v737, 2147483648
        %v1077 = vxor.u32 %v808, 2147483648
        %v1078 = vxor.u32 %v810, 2147483648
        %v1079 = vxor.u32 %v881, 2147483648
        %v1080 = vxor.u32 %v883, 2147483648
        %v1081 = vxor.u32 %v954, 2147483648
        %v1082 = vxor.u32 %v956, 2147483648
        %v1083 = vxor.u32 %v1027, 2147483648
        %v1084 = vxor.u32 %v1029, 2147483648
        %v1085 = vxor.u32 %v739, 2147483648
        %v1086 = vxor.u32 %v741, 2147483648
        %v1087 = vxor.u32 %v812, 2147483648
        %v1088 = vxor.u32 %v814, 2147483648
        %v1089 = vxor.u32 %v885, 2147483648
        %v1090 = vxor.u32 %v887, 2147483648
        %v1091 = vxor.u32 %v958, 2147483648
        %v1092 = vxor.u32 %v960, 2147483648
        %v1093 = vxor.u32 %v1031, 2147483648
        %v1094 = vxor.u32 %v1033, 2147483648
        %v1095 = vxor.u32 %v745, 2147483648
        %v1096 = vxor.u32 %v747, 2147483648
        %v1097 = vxor.u32 %v818, 2147483648
        %v1098 = vxor.u32 %v820, 2147483648
        %v1099 = vxor.u32 %v891, 2147483648
        %v1100 = vxor.u32 %v893, 2147483648
        %v1101 = vxor.u32 %v964, 2147483648
        %v1102 = vxor.u32 %v966, 2147483648
        %v1103 = vxor.u32 %v1037, 2147483648
        %v1104 = vxor.u32 %v1039, 2147483648
        %v1105 = vxor.u32 %v749, 2147483648
        %v1106 = vxor.u32 %v751, 2147483648
        %v1107 = vxor.u32 %v822, 2147483648
        %v1108 = vxor.u32 %v824, 2147483648
        %v1109 = vxor.u32 %v895, 2147483648
        %v1110 = vxor.u32 %v897, 2147483648
        %v1111 = vxor.u32 %v968, 2147483648
        %v1112 = vxor.u32 %v970, 2147483648
        %v1113 = vxor.u32 %v1041, 2147483648
        %v1114 = vxor.u32 %v1043, 2147483648
        %v1115 = vxor.u32 %v755, 2147483648
        %v1116 = vxor.u32 %v757, 2147483648
        %v1117 = vxor.u32 %v828, 2147483648
        %v1118 = vxor.u32 %v830, 2147483648
        %v1119 = vxor.u32 %v901, 2147483648
        %v1120 = vxor.u32 %v903, 2147483648
        %v1121 = vxor.u32 %v974, 2147483648
        %v1122 = vxor.u32 %v976, 2147483648
        %v1123 = vxor.u32 %v1047, 2147483648
        %v1124 = vxor.u32 %v1049, 2147483648
        %v1125 = vxor.u32 %v759, 2147483648
        %v1126 = vxor.u32 %v761, 2147483648
        %v1127 = vxor.u32 %v832, 2147483648
        %v1128 = vxor.u32 %v834, 2147483648
        %v1129 = vxor.u32 %v905, 2147483648
        %v1130 = vxor.u32 %v907, 2147483648
        %v1131 = vxor.u32 %v978, 2147483648
        %v1132 = vxor.u32 %v980, 2147483648
        %v1133 = vxor.u32 %v1051, 2147483648
        %v1134 = vxor.u32 %v1053, 2147483648
        %v1135 = vmul.f32 %v1055, 1.442695
        %v1136 = vpow.pop %v1135
        %v1137 = vmul.f32 %v1056, 1.442695
        %v1138 = vpow.pop %v1137
        %v1139 = vmul.f32 %v1057, 1.442695
        %v1140 = vpow.pop %v1139
        %v1141 = vmul.f32 %v1058, 1.442695
        %v1142 = vpow.pop %v1141
        %v1143 = vmul.f32 %v1059, 1.442695
        %v1144 = vpow.pop %v1143
        %v1145 = vmul.f32 %v1060, 1.442695
        %v1146 = vpow.pop %v1145
        %v1147 = vmul.f32 %v1061, 1.442695
        %v1148 = vpow.pop %v1147
        %v1149 = vmul.f32 %v1062, 1.442695
        %v1150 = vpow.pop %v1149
        %v1151 = vmul.f32 %v1063, 1.442695
        %v1152 = vpow.pop %v1151
        %v1153 = vmul.f32 %v1064, 1.442695
        %v1154 = vpow.pop %v1153
        %v1155 = vmul.f32 %v1065, 1.442695
        %v1156 = vpow.pop %v1155
        %v1157 = vmul.f32 %v1066, 1.442695
        %v1158 = vpow.pop %v1157
        %v1159 = vmul.f32 %v1067, 1.442695
        %v1160 = vpow.pop %v1159
        %v1161 = vmul.f32 %v1068, 1.442695
        %v1162 = vpow.pop %v1161
        %v1163 = vmul.f32 %v1069, 1.442695
        %v1164 = vpow.pop %v1163
        %v1165 = vmul.f32 %v1070, 1.442695
        %v1166 = vpow.pop %v1165
        %v1167 = vmul.f32 %v1071, 1.442695
        %v1168 = vpow.pop %v1167
        %v1169 = vmul.f32 %v1072, 1.442695
        %v1170 = vpow.pop %v1169
        %v1171 = vmul.f32 %v1073, 1.442695
        %v1172 = vpow.pop %v1171
        %v1173 = vmul.f32 %v1074, 1.442695
        %v1174 = vpow.pop %v1173
        %v1175 = vmul.f32 %v1075, 1.442695
        %v1176 = vpow.pop %v1175
        %v1177 = vmul.f32 %v1076, 1.442695
        %v1178 = vpow.pop %v1177
        %v1179 = vmul.f32 %v1077, 1.442695
        %v1180 = vpow.pop %v1179
        %v1181 = vmul.f32 %v1078, 1.442695
        %v1182 = vpow.pop %v1181
        %v1183 = vmul.f32 %v1079, 1.442695
        %v1184 = vpow.pop %v1183
        %v1185 = vmul.f32 %v1080, 1.442695
        %v1186 = vpow.pop %v1185
        %v1187 = vmul.f32 %v1081, 1.442695
        %v1188 = vpow.pop %v1187
        %v1189 = vmul.f32 %v1082, 1.442695
        %v1190 = vpow.pop %v1189
        %v1191 = vmul.f32 %v1083, 1.442695
        %v1192 = vpow.pop %v1191
        %v1193 = vmul.f32 %v1084, 1.442695
        %v1194 = vpow.pop %v1193
        %v1195 = vmul.f32 %v1085, 1.442695
        %v1196 = vpow.pop %v1195
        %v1197 = vmul.f32 %v1086, 1.442695
        %v1198 = vpow.pop %v1197
        %v1199 = vmul.f32 %v1087, 1.442695
        %v1200 = vpow.pop %v1199
        %v1201 = vmul.f32 %v1088, 1.442695
        %v1202 = vpow.pop %v1201
        %v1203 = vmul.f32 %v1089, 1.442695
        %v1204 = vpow.pop %v1203
        %v1205 = vmul.f32 %v1090, 1.442695
        %v1206 = vpow.pop %v1205
        %v1207 = vmul.f32 %v1091, 1.442695
        %v1208 = vpow.pop %v1207
        %v1209 = vmul.f32 %v1092, 1.442695
        %v1210 = vpow.pop %v1209
        %v1211 = vmul.f32 %v1093, 1.442695
        %v1212 = vpow.pop %v1211
        %v1213 = vmul.f32 %v1094, 1.442695
        %v1214 = vpow.pop %v1213
        %v1215 = vmul.f32 %v1095, 1.442695
        %v1216 = vpow.pop %v1215
        %v1217 = vmul.f32 %v1096, 1.442695
        %v1218 = vpow.pop %v1217
        %v1219 = vmul.f32 %v1097, 1.442695
        %v1220 = vpow.pop %v1219
        %v1221 = vmul.f32 %v1098, 1.442695
        %v1222 = vpow.pop %v1221
        %v1223 = vmul.f32 %v1099, 1.442695
        %v1224 = vpow.pop %v1223
        %v1225 = vmul.f32 %v1100, 1.442695
        %v1226 = vpow.pop %v1225
        %v1227 = vmul.f32 %v1101, 1.442695
        %v1228 = vpow.pop %v1227
        %v1229 = vmul.f32 %v1102, 1.442695
        %v1230 = vpow.pop %v1229
        %v1231 = vmul.f32 %v1103, 1.442695
        %v1232 = vpow.pop %v1231
        %v1233 = vmul.f32 %v1104, 1.442695
        %v1234 = vpow.pop %v1233
        %v1235 = vmul.f32 %v1105, 1.442695
        %v1236 = vpow.pop %v1235
        %v1237 = vmul.f32 %v1106, 1.442695
        %v1238 = vpow.pop %v1237
        %v1239 = vmul.f32 %v1107, 1.442695
        %v1240 = vpow.pop %v1239
        %v1241 = vmul.f32 %v1108, 1.442695
        %v1242 = vpow.pop %v1241
        %v1243 = vmul.f32 %v1109, 1.442695
        %v1244 = vpow.pop %v1243
        %v1245 = vmul.f32 %v1110, 1.442695
        %v1246 = vpow.pop %v1245
        %v1247 = vmul.f32 %v1111, 1.442695
        %v1248 = vpow.pop %v1247
        %v1249 = vmul.f32 %v1112, 1.442695
        %v1250 = vpow.pop %v1249
        %v1251 = vmul.f32 %v1113, 1.442695
        %v1252 = vpow.pop %v1251
        %v1253 = vmul.f32 %v1114, 1.442695
        %v1254 = vpow.pop %v1253
        %v1255 = vmul.f32 %v1115, 1.442695
        %v1256 = vpow.pop %v1255
        %v1257 = vmul.f32 %v1116, 1.442695
        %v1258 = vpow.pop %v1257
        %v1259 = vmul.f32 %v1117, 1.442695
        %v1260 = vpow.pop %v1259
        %v1261 = vmul.f32 %v1118, 1.442695
        %v1262 = vpow.pop %v1261
        %v1263 = vmul.f32 %v1119, 1.442695
        %v1264 = vpow.pop %v1263
        %v1265 = vmul.f32 %v1120, 1.442695
        %v1266 = vpow.pop %v1265
        %v1267 = vmul.f32 %v1121, 1.442695
        %v1268 = vpow.pop %v1267
        %v1269 = vmul.f32 %v1122, 1.442695
        %v1270 = vpow.pop %v1269
        %v1271 = vmul.f32 %v1123, 1.442695
        %v1272 = vpow.pop %v1271
        %v1273 = vmul.f32 %v1124, 1.442695
        %v1274 = vpow.pop %v1273
        %v1275 = vmul.f32 %v1125, 1.442695
        %v1276 = vpow.pop %v1275
        %v1277 = vmul.f32 %v1126, 1.442695
        %v1278 = vpow.pop %v1277
        %v1279 = vmul.f32 %v1127, 1.442695
        %v1280 = vpow.pop %v1279
        %v1281 = vmul.f32 %v1128, 1.442695
        %v1282 = vpow.pop %v1281
        %v1283 = vmul.f32 %v1129, 1.442695
        %v1284 = vpow.pop %v1283
        %v1285 = vmul.f32 %v1130, 1.442695
        %v1286 = vpow.pop %v1285
        %v1287 = vmul.f32 %v1131, 1.442695
        %v1288 = vpow.pop %v1287
        %v1289 = vmul.f32 %v1132, 1.442695
        %v1290 = vpow.pop %v1289
        %v1291 = vmul.f32 %v1133, 1.442695
        %v1292 = vpow.pop %v1291
        %v1293 = vmul.f32 %v1134, 1.442695
        %v1294 = vpow.pop %v1293
        %v1295 = vadd.f32 %v1136, 1.0
        %v1296 = vadd.f32 %v1138, 1.0
        %v1297 = vadd.f32 %v1140, 1.0
        %v1298 = vadd.f32 %v1142, 1.0
        %v1299 = vadd.f32 %v1144, 1.0
        %v1300 = vadd.f32 %v1146, 1.0
        %v1301 = vadd.f32 %v1148, 1.0
        %v1302 = vadd.f32 %v1150, 1.0
        %v1303 = vadd.f32 %v1152, 1.0
        %v1304 = vadd.f32 %v1154, 1.0
        %v1305 = vadd.f32 %v1156, 1.0
        %v1306 = vadd.f32 %v1158, 1.0
        %v1307 = vadd.f32 %v1160, 1.0
        %v1308 = vadd.f32 %v1162, 1.0
        %v1309 = vadd.f32 %v1164, 1.0
        %v1310 = vadd.f32 %v1166, 1.0
        %v1311 = vadd.f32 %v1168, 1.0
        %v1312 = vadd.f32 %v1170, 1.0
        %v1313 = vadd.f32 %v1172, 1.0
        %v1314 = vadd.f32 %v1174, 1.0
        %v1315 = vadd.f32 %v1176, 1.0
        %v1316 = vadd.f32 %v1178, 1.0
        %v1317 = vadd.f32 %v1180, 1.0
        %v1318 = vadd.f32 %v1182, 1.0
        %v1319 = vadd.f32 %v1184, 1.0
        %v1320 = vadd.f32 %v1186, 1.0
        %v1321 = vadd.f32 %v1188, 1.0
        %v1322 = vadd.f32 %v1190, 1.0
        %v1323 = vadd.f32 %v1192, 1.0
        %v1324 = vadd.f32 %v1194, 1.0
        %v1325 = vadd.f32 %v1196, 1.0
        %v1326 = vadd.f32 %v1198, 1.0
        %v1327 = vadd.f32 %v1200, 1.0
        %v1328 = vadd.f32 %v1202, 1.0
        %v1329 = vadd.f32 %v1204, 1.0
        %v1330 = vadd.f32 %v1206, 1.0
        %v1331 = vadd.f32 %v1208, 1.0
        %v1332 = vadd.f32 %v1210, 1.0
        %v1333 = vadd.f32 %v1212, 1.0
        %v1334 = vadd.f32 %v1214, 1.0
        %v1335 = vadd.f32 %v1216, 1.0
        %v1336 = vadd.f32 %v1218, 1.0
        %v1337 = vadd.f32 %v1220, 1.0
        %v1338 = vadd.f32 %v1222, 1.0
        %v1339 = vadd.f32 %v1224, 1.0
        %v1340 = vadd.f32 %v1226, 1.0
        %v1341 = vadd.f32 %v1228, 1.0
        %v1342 = vadd.f32 %v1230, 1.0
        %v1343 = vadd.f32 %v1232, 1.0
        %v1344 = vadd.f32 %v1234, 1.0
        %v1345 = vadd.f32 %v1236, 1.0
        %v1346 = vadd.f32 %v1238, 1.0
        %v1347 = vadd.f32 %v1240, 1.0
        %v1348 = vadd.f32 %v1242, 1.0
        %v1349 = vadd.f32 %v1244, 1.0
        %v1350 = vadd.f32 %v1246, 1.0
        %v1351 = vadd.f32 %v1248, 1.0
        %v1352 = vadd.f32 %v1250, 1.0
        %v1353 = vadd.f32 %v1252, 1.0
        %v1354 = vadd.f32 %v1254, 1.0
        %v1355 = vadd.f32 %v1256, 1.0
        %v1356 = vadd.f32 %v1258, 1.0
        %v1357 = vadd.f32 %v1260, 1.0
        %v1358 = vadd.f32 %v1262, 1.0
        %v1359 = vadd.f32 %v1264, 1.0
        %v1360 = vadd.f32 %v1266, 1.0
        %v1361 = vadd.f32 %v1268, 1.0
        %v1362 = vadd.f32 %v1270, 1.0
        %v1363 = vadd.f32 %v1272, 1.0
        %v1364 = vadd.f32 %v1274, 1.0
        %v1365 = vadd.f32 %v1276, 1.0
        %v1366 = vadd.f32 %v1278, 1.0
        %v1367 = vadd.f32 %v1280, 1.0
        %v1368 = vadd.f32 %v1282, 1.0
        %v1369 = vadd.f32 %v1284, 1.0
        %v1370 = vadd.f32 %v1286, 1.0
        %v1371 = vadd.f32 %v1288, 1.0
        %v1372 = vadd.f32 %v1290, 1.0
        %v1373 = vadd.f32 %v1292, 1.0
        %v1374 = vadd.f32 %v1294, 1.0
        %v1375 = vrcp.pop %v1295
        %v1376 = vmul.f32 1.0, %v1375
        %v1377 = vrcp.pop %v1296
        %v1378 = vmul.f32 1.0, %v1377
        %v1379 = vrcp.pop %v1297
        %v1380 = vmul.f32 1.0, %v1379
        %v1381 = vrcp.pop %v1298
        %v1382 = vmul.f32 1.0, %v1381
        %v1383 = vrcp.pop %v1299
        %v1384 = vmul.f32 1.0, %v1383
        %v1385 = vrcp.pop %v1300
        %v1386 = vmul.f32 1.0, %v1385
        %v1387 = vrcp.pop %v1301
        %v1388 = vmul.f32 1.0, %v1387
        %v1389 = vrcp.pop %v1302
        %v1390 = vmul.f32 1.0, %v1389
        %v1391 = vrcp.pop %v1303
        %v1392 = vmul.f32 1.0, %v1391
        %v1393 = vrcp.pop %v1304
        %v1394 = vmul.f32 1.0, %v1393
        %v1395 = vrcp.pop %v1305
        %v1396 = vmul.f32 1.0, %v1395
        %v1397 = vrcp.pop %v1306
        %v1398 = vmul.f32 1.0, %v1397
        %v1399 = vrcp.pop %v1307
        %v1400 = vmul.f32 1.0, %v1399
        %v1401 = vrcp.pop %v1308
        %v1402 = vmul.f32 1.0, %v1401
        %v1403 = vrcp.pop %v1309
        %v1404 = vmul.f32 1.0, %v1403
        %v1405 = vrcp.pop %v1310
        %v1406 = vmul.f32 1.0, %v1405
        %v1407 = vrcp.pop %v1311
        %v1408 = vmul.f32 1.0, %v1407
        %v1409 = vrcp.pop %v1312
        %v1410 = vmul.f32 1.0, %v1409
        %v1411 = vrcp.pop %v1313
        %v1412 = vmul.f32 1.0, %v1411
        %v1413 = vrcp.pop %v1314
        %v1414 = vmul.f32 1.0, %v1413
        %v1415 = vrcp.pop %v1315
        %v1416 = vmul.f32 1.0, %v1415
        %v1417 = vrcp.pop %v1316
        %v1418 = vmul.f32 1.0, %v1417
        %v1419 = vrcp.pop %v1317
        %v1420 = vmul.f32 1.0, %v1419
        %v1421 = vrcp.pop %v1318
        %v1422 = vmul.f32 1.0, %v1421
        %v1423 = vrcp.pop %v1319
        %v1424 = vmul.f32 1.0, %v1423
        %v1425 = vrcp.pop %v1320
        %v1426 = vmul.f32 1.0, %v1425
        %v1427 = vrcp.pop %v1321
        %v1428 = vmul.f32 1.0, %v1427
        %v1429 = vrcp.pop %v1322
        %v1430 = vmul.f32 1.0, %v1429
        %v1431 = vrcp.pop %v1323
        %v1432 = vmul.f32 1.0, %v1431
        %v1433 = vrcp.pop %v1324
        %v1434 = vmul.f32 1.0, %v1433
        %v1435 = vrcp.pop %v1325
        %v1436 = vmul.f32 1.0, %v1435
        %v1437 = vrcp.pop %v1326
        %v1438 = vmul.f32 1.0, %v1437
        %v1439 = vrcp.pop %v1327
        %v1440 = vmul.f32 1.0, %v1439
        %v1441 = vrcp.pop %v1328
        %v1442 = vmul.f32 1.0, %v1441
        %v1443 = vrcp.pop %v1329
        %v1444 = vmul.f32 1.0, %v1443
        %v1445 = vrcp.pop %v1330
        %v1446 = vmul.f32 1.0, %v1445
        %v1447 = vrcp.pop %v1331
        %v1448 = vmul.f32 1.0, %v1447
        %v1449 = vrcp.pop %v1332
        %v1450 = vmul.f32 1.0, %v1449
        %v1451 = vrcp.pop %v1333
        %v1452 = vmul.f32 1.0, %v1451
        %v1453 = vrcp.pop %v1334
        %v1454 = vmul.f32 1.0, %v1453
        %v1455 = vrcp.pop %v1335
        %v1456 = vmul.f32 1.0, %v1455
        %v1457 = vrcp.pop %v1336
        %v1458 = vmul.f32 1.0, %v1457
        %v1459 = vrcp.pop %v1337
        %v1460 = vmul.f32 1.0, %v1459
        %v1461 = vrcp.pop %v1338
        %v1462 = vmul.f32 1.0, %v1461
        %v1463 = vrcp.pop %v1339
        %v1464 = vmul.f32 1.0, %v1463
        %v1465 = vrcp.pop %v1340
        %v1466 = vmul.f32 1.0, %v1465
        %v1467 = vrcp.pop %v1341
        %v1468 = vmul.f32 1.0, %v1467
        %v1469 = vrcp.pop %v1342
        %v1470 = vmul.f32 1.0, %v1469
        %v1471 = vrcp.pop %v1343
        %v1472 = vmul.f32 1.0, %v1471
        %v1473 = vrcp.pop %v1344
        %v1474 = vmul.f32 1.0, %v1473
        %v1475 = vrcp.pop %v1345
        %v1476 = vmul.f32 1.0, %v1475
        %v1477 = vrcp.pop %v1346
        %v1478 = vmul.f32 1.0, %v1477
        %v1479 = vrcp.pop %v1347
        %v1480 = vmul.f32 1.0, %v1479
        %v1481 = vrcp.pop %v1348
        %v1482 = vmul.f32 1.0, %v1481
        %v1483 = vrcp.pop %v1349
        %v1484 = vmul.f32 1.0, %v1483
        %v1485 = vrcp.pop %v1350
        %v1486 = vmul.f32 1.0, %v1485
        %v1487 = vrcp.pop %v1351
        %v1488 = vmul.f32 1.0, %v1487
        %v1489 = vrcp.pop %v1352
        %v1490 = vmul.f32 1.0, %v1489
        %v1491 = vrcp.pop %v1353
        %v1492 = vmul.f32 1.0, %v1491
        %v1493 = vrcp.pop %v1354
        %v1494 = vmul.f32 1.0, %v1493
        %v1495 = vrcp.pop %v1355
        %v1496 = vmul.f32 1.0, %v1495
        %v1497 = vrcp.pop %v1356
        %v1498 = vmul.f32 1.0, %v1497
        %v1499 = vrcp.pop %v1357
        %v1500 = vmul.f32 1.0, %v1499
        %v1501 = vrcp.pop %v1358
        %v1502 = vmul.f32 1.0, %v1501
        %v1503 = vrcp.pop %v1359
        %v1504 = vmul.f32 1.0, %v1503
        %v1505 = vrcp.pop %v1360
        %v1506 = vmul.f32 1.0, %v1505
        %v1507 = vrcp.pop %v1361
        %v1508 = vmul.f32 1.0, %v1507
        %v1509 = vrcp.pop %v1362
        %v1510 = vmul.f32 1.0, %v1509
        %v1511 = vrcp.pop %v1363
        %v1512 = vmul.f32 1.0, %v1511
        %v1513 = vrcp.pop %v1364
        %v1514 = vmul.f32 1.0, %v1513
        %v1515 = vrcp.pop %v1365
        %v1516 = vmul.f32 1.0, %v1515
        %v1517 = vrcp.pop %v1366
        %v1518 = vmul.f32 1.0, %v1517
        %v1519 = vrcp.pop %v1367
        %v1520 = vmul.f32 1.0, %v1519
        %v1521 = vrcp.pop %v1368
        %v1522 = vmul.f32 1.0, %v1521
        %v1523 = vrcp.pop %v1369
        %v1524 = vmul.f32 1.0, %v1523
        %v1525 = vrcp.pop %v1370
        %v1526 = vmul.f32 1.0, %v1525
        %v1527 = vrcp.pop %v1371
        %v1528 = vmul.f32 1.0, %v1527
        %v1529 = vrcp.pop %v1372
        %v1530 = vmul.f32 1.0, %v1529
        %v1531 = vrcp.pop %v1373
        %v1532 = vmul.f32 1.0, %v1531
        %v1533 = vrcp.pop %v1374
        %v1534 = vmul.f32 1.0, %v1533
        %v1535 = vmul.f32 %v725, %v1376
        %v1536 = vmul.f32 %v727, %v1378
        %v1537 = vmul.f32 %v798, %v1380
        %v1538 = vmul.f32 %v800, %v1382
        %v1539 = vmul.f32 %v871, %v1384
        %v1540 = vmul.f32 %v873, %v1386
        %v1541 = vmul.f32 %v944, %v1388
        %v1542 = vmul.f32 %v946, %v1390
        %v1543 = vmul.f32 %v1017, %v1392
        %v1544 = vmul.f32 %v1019, %v1394
        %v1545 = vmul.f32 %v729, %v1396
        %v1546 = vmul.f32 %v731, %v1398
        %v1547 = vmul.f32 %v802, %v1400
        %v1548 = vmul.f32 %v804, %v1402
        %v1549 = vmul.f32 %v875, %v1404
        %v1550 = vmul.f32 %v877, %v1406
        %v1551 = vmul.f32 %v948, %v1408
        %v1552 = vmul.f32 %v950, %v1410
        %v1553 = vmul.f32 %v1021, %v1412
        %v1554 = vmul.f32 %v1023, %v1414
        %v1555 = vmul.f32 %v735, %v1416
        %v1556 = vmul.f32 %v737, %v1418
        %v1557 = vmul.f32 %v808, %v1420
        %v1558 = vmul.f32 %v810, %v1422
        %v1559 = vmul.f32 %v881, %v1424
        %v1560 = vmul.f32 %v883, %v1426
        %v1561 = vmul.f32 %v954, %v1428
        %v1562 = vmul.f32 %v956, %v1430
        %v1563 = vmul.f32 %v1027, %v1432
        %v1564 = vmul.f32 %v1029, %v1434
        %v1565 = vmul.f32 %v739, %v1436
        %v1566 = vmul.f32 %v741, %v1438
        %v1567 = vmul.f32 %v812, %v1440
        %v1568 = vmul.f32 %v814, %v1442
        %v1569 = vmul.f32 %v885, %v1444
        %v1570 = vmul.f32 %v887, %v1446
        %v1571 = vmul.f32 %v958, %v1448
        %v1572 = vmul.f32 %v960, %v1450
        %v1573 = vmul.f32 %v1031, %v1452
        %v1574 = vmul.f32 %v1033, %v1454
        %v1575 = vmul.f32 %v745, %v1456
        %v1576 = vmul.f32 %v747, %v1458
        %v1577 = vmul.f32 %v818, %v1460
        %v1578 = vmul.f32 %v820, %v1462
        %v1579 = vmul.f32 %v891, %v1464
        %v1580 = vmul.f32 %v893, %v1466
        %v1581 = vmul.f32 %v964, %v1468
        %v1582 = vmul.f32 %v966, %v1470
        %v1583 = vmul.f32 %v1037, %v1472
        %v1584 = vmul.f32 %v1039, %v1474
        %v1585 = vmul.f32 %v749, %v1476
        %v1586 = vmul.f32 %v751, %v1478
        %v1587 = vmul.f32 %v822, %v1480
        %v1588 = vmul.f32 %v824, %v1482
        %v1589 = vmul.f32 %v895, %v1484
        %v1590 = vmul.f32 %v897, %v1486
        %v1591 = vmul.f32 %v968, %v1488
        %v1592 = vmul.f32 %v970, %v1490
        %v1593 = vmul.f32 %v1041, %v1492
        %v1594 = vmul.f32 %v1043, %v1494
        %v1595 = vmul.f32 %v755, %v1496
        %v1596 = vmul.f32 %v757, %v1498
        %v1597 = vmul.f32 %v828, %v1500
        %v1598 = vmul.f32 %v830, %v1502
        %v1599 = vmul.f32 %v901, %v1504
        %v1600 = vmul.f32 %v903, %v1506
        %v1601 = vmul.f32 %v974, %v1508
        %v1602 = vmul.f32 %v976, %v1510
        %v1603 = vmul.f32 %v1047, %v1512
        %v1604 = vmul.f32 %v1049, %v1514
        %v1605 = vmul.f32 %v759, %v1516
        %v1606 = vmul.f32 %v761, %v1518
        %v1607 = vmul.f32 %v832, %v1520
        %v1608 = vmul.f32 %v834, %v1522
        %v1609 = vmul.f32 %v905, %v1524
        %v1610 = vmul.f32 %v907, %v1526
        %v1611 = vmul.f32 %v978, %v1528
        %v1612 = vmul.f32 %v980, %v1530
        %v1613 = vmul.f32 %v1051, %v1532
        %v1614 = vmul.f32 %v1053, %v1534
        %v1615 = vld [vmem:[#allocation2] sm:$0xff]
        %v1616 = vld [vmem:[#allocation2 + $0x8] sm:$0xff]
        %v1617 = vld [vmem:[#allocation2 + $0x10] sm:$0xff]
        %v1618 = vld [vmem:[#allocation2 + $0x18] sm:$0xff]
        %v1619 = vld [vmem:[#allocation2 + $0x20] sm:$0xff]
        %v1620 = vld [vmem:[#allocation2 + $0x28] sm:$0xff]
        %v1621 = vld [vmem:[#allocation2 + $0x30] sm:$0xff]
        %v1622 = vld [vmem:[#allocation2 + $0x38] sm:$0xff]
        %v1623 = vld [vmem:[#allocation2 + $0x40] sm:$0xff]
        %v1624 = vld [vmem:[#allocation2 + $0x48] sm:$0xff]
        %v1625 = vrot.slane %v1535, 4
        %v1626 = vadd.f32 %v1535, %v1625
        %v1627 = vrot.slane %v1626, 2
        %v1628 = vadd.f32 %v1626, %v1627
        %v1629 = vrot.slane %v1628, 1
        %v1630 = vadd.f32 %v1628, %v1629
        %v1631 = vrot.slane %v1536, 4
        %v1632 = vadd.f32 %v1536, %v1631
        %v1633 = vrot.slane %v1632, 2
        %v1634 = vadd.f32 %v1632, %v1633
        %v1635 = vrot.slane %v1634, 1
        %v1636 = vadd.f32 %v1634, %v1635
        %v1637 = vrot.slane %v1537, 4
        %v1638 = vadd.f32 %v1537, %v1637
        %v1639 = vrot.slane %v1638, 2
        %v1640 = vadd.f32 %v1638, %v1639
        %v1641 = vrot.slane %v1640, 1
        %v1642 = vadd.f32 %v1640, %v1641
        %v1643 = vrot.slane %v1538, 4
        %v1644 = vadd.f32 %v1538, %v1643
        %v1645 = vrot.slane %v1644, 2
        %v1646 = vadd.f32 %v1644, %v1645
        %v1647 = vrot.slane %v1646, 1
        %v1648 = vadd.f32 %v1646, %v1647
        %v1649 = vrot.slane %v1539, 4
        %v1650 = vadd.f32 %v1539, %v1649
        %v1651 = vrot.slane %v1650, 2
        %v1652 = vadd.f32 %v1650, %v1651
        %v1653 = vrot.slane %v1652, 1
        %v1654 = vadd.f32 %v1652, %v1653
        %v1655 = vrot.slane %v1540, 4
        %v1656 = vadd.f32 %v1540, %v1655
        %v1657 = vrot.slane %v1656, 2
        %v1658 = vadd.f32 %v1656, %v1657
        %v1659 = vrot.slane %v1658, 1
        %v1660 = vadd.f32 %v1658, %v1659
        %v1661 = vrot.slane %v1541, 4
        %v1662 = vadd.f32 %v1541, %v1661
        %v1663 = vrot.slane %v1662, 2
        %v1664 = vadd.f32 %v1662, %v1663
        %v1665 = vrot.slane %v1664, 1
        %v1666 = vadd.f32 %v1664, %v1665
        %v1667 = vrot.slane %v1542, 4
        %v1668 = vadd.f32 %v1542, %v1667
        %v1669 = vrot.slane %v1668, 2
        %v1670 = vadd.f32 %v1668, %v1669
        %v1671 = vrot.slane %v1670, 1
        %v1672 = vadd.f32 %v1670, %v1671
        %v1673 = vrot.slane %v1543, 4
        %v1674 = vadd.f32 %v1543, %v1673
        %v1675 = vrot.slane %v1674, 2
        %v1676 = vadd.f32 %v1674, %v1675
        %v1677 = vrot.slane %v1676, 1
        %v1678 = vadd.f32 %v1676, %v1677
        %v1679 = vrot.slane %v1544, 4
        %v1680 = vadd.f32 %v1544, %v1679
        %v1681 = vrot.slane %v1680, 2
        %v1682 = vadd.f32 %v1680, %v1681
        %v1683 = vrot.slane %v1682, 1
        %v1684 = vadd.f32 %v1682, %v1683
        %v1685 = vrot.slane %v1545, 4
        %v1686 = vadd.f32 %v1545, %v1685
        %v1687 = vrot.slane %v1686, 2
        %v1688 = vadd.f32 %v1686, %v1687
        %v1689 = vrot.slane %v1688, 1
        %v1690 = vadd.f32 %v1688, %v1689
        %v1691 = vrot.slane %v1546, 4
        %v1692 = vadd.f32 %v1546, %v1691
        %v1693 = vrot.slane %v1692, 2
        %v1694 = vadd.f32 %v1692, %v1693
        %v1695 = vrot.slane %v1694, 1
        %v1696 = vadd.f32 %v1694, %v1695
        %v1697 = vrot.slane %v1547, 4
        %v1698 = vadd.f32 %v1547, %v1697
        %v1699 = vrot.slane %v1698, 2
        %v1700 = vadd.f32 %v1698, %v1699
        %v1701 = vrot.slane %v1700, 1
        %v1702 = vadd.f32 %v1700, %v1701
        %v1703 = vrot.slane %v1548, 4
        %v1704 = vadd.f32 %v1548, %v1703
        %v1705 = vrot.slane %v1704, 2
        %v1706 = vadd.f32 %v1704, %v1705
        %v1707 = vrot.slane %v1706, 1
        %v1708 = vadd.f32 %v1706, %v1707
        %v1709 = vrot.slane %v1549, 4
        %v1710 = vadd.f32 %v1549, %v1709
        %v1711 = vrot.slane %v1710, 2
        %v1712 = vadd.f32 %v1710, %v1711
        %v1713 = vrot.slane %v1712, 1
        %v1714 = vadd.f32 %v1712, %v1713
        %v1715 = vrot.slane %v1550, 4
        %v1716 = vadd.f32 %v1550, %v1715
        %v1717 = vrot.slane %v1716, 2
        %v1718 = vadd.f32 %v1716, %v1717
        %v1719 = vrot.slane %v1718, 1
        %v1720 = vadd.f32 %v1718, %v1719
        %v1721 = vrot.slane %v1551, 4
        %v1722 = vadd.f32 %v1551, %v1721
        %v1723 = vrot.slane %v1722, 2
        %v1724 = vadd.f32 %v1722, %v1723
        %v1725 = vrot.slane %v1724, 1
        %v1726 = vadd.f32 %v1724, %v1725
        %v1727 = vrot.slane %v1552, 4
        %v1728 = vadd.f32 %v1552, %v1727
        %v1729 = vrot.slane %v1728, 2
        %v1730 = vadd.f32 %v1728, %v1729
        %v1731 = vrot.slane %v1730, 1
        %v1732 = vadd.f32 %v1730, %v1731
        %v1733 = vrot.slane %v1553, 4
        %v1734 = vadd.f32 %v1553, %v1733
        %v1735 = vrot.slane %v1734, 2
        %v1736 = vadd.f32 %v1734, %v1735
        %v1737 = vrot.slane %v1736, 1
        %v1738 = vadd.f32 %v1736, %v1737
        %v1739 = vrot.slane %v1554, 4
        %v1740 = vadd.f32 %v1554, %v1739
        %v1741 = vrot.slane %v1740, 2
        %v1742 = vadd.f32 %v1740, %v1741
        %v1743 = vrot.slane %v1742, 1
        %v1744 = vadd.f32 %v1742, %v1743
        %v1745 = vrot.slane %v1555, 4
        %v1746 = vadd.f32 %v1555, %v1745
        %v1747 = vrot.slane %v1746, 2
        %v1748 = vadd.f32 %v1746, %v1747
        %v1749 = vrot.slane %v1748, 1
        %v1750 = vadd.f32 %v1748, %v1749
        %v1751 = vrot.slane %v1556, 4
        %v1752 = vadd.f32 %v1556, %v1751
        %v1753 = vrot.slane %v1752, 2
        %v1754 = vadd.f32 %v1752, %v1753
        %v1755 = vrot.slane %v1754, 1
        %v1756 = vadd.f32 %v1754, %v1755
        %v1757 = vrot.slane %v1557, 4
        %v1758 = vadd.f32 %v1557, %v1757
        %v1759 = vrot.slane %v1758, 2
        %v1760 = vadd.f32 %v1758, %v1759
        %v1761 = vrot.slane %v1760, 1
        %v1762 = vadd.f32 %v1760, %v1761
        %v1763 = vrot.slane %v1558, 4
        %v1764 = vadd.f32 %v1558, %v1763
        %v1765 = vrot.slane %v1764, 2
        %v1766 = vadd.f32 %v1764, %v1765
        %v1767 = vrot.slane %v1766, 1
        %v1768 = vadd.f32 %v1766, %v1767
        %v1769 = vrot.slane %v1559, 4
        %v1770 = vadd.f32 %v1559, %v1769
        %v1771 = vrot.slane %v1770, 2
        %v1772 = vadd.f32 %v1770, %v1771
        %v1773 = vrot.slane %v1772, 1
        %v1774 = vadd.f32 %v1772, %v1773
        %v1775 = vrot.slane %v1560, 4
        %v1776 = vadd.f32 %v1560, %v1775
        %v1777 = vrot.slane %v1776, 2
        %v1778 = vadd.f32 %v1776, %v1777
        %v1779 = vrot.slane %v1778, 1
        %v1780 = vadd.f32 %v1778, %v1779
        %v1781 = vrot.slane %v1561, 4
        %v1782 = vadd.f32 %v1561, %v1781
        %v1783 = vrot.slane %v1782, 2
        %v1784 = vadd.f32 %v1782, %v1783
        %v1785 = vrot.slane %v1784, 1
        %v1786 = vadd.f32 %v1784, %v1785
        %v1787 = vrot.slane %v1562, 4
        %v1788 = vadd.f32 %v1562, %v1787
        %v1789 = vrot.slane %v1788, 2
        %v1790 = vadd.f32 %v1788, %v1789
        %v1791 = vrot.slane %v1790, 1
        %v1792 = vadd.f32 %v1790, %v1791
        %v1793 = vrot.slane %v1563, 4
        %v1794 = vadd.f32 %v1563, %v1793
        %v1795 = vrot.slane %v1794, 2
        %v1796 = vadd.f32 %v1794, %v1795
        %v1797 = vrot.slane %v1796, 1
        %v1798 = vadd.f32 %v1796, %v1797
        %v1799 = vrot.slane %v1564, 4
        %v1800 = vadd.f32 %v1564, %v1799
        %v1801 = vrot.slane %v1800, 2
        %v1802 = vadd.f32 %v1800, %v1801
        %v1803 = vrot.slane %v1802, 1
        %v1804 = vadd.f32 %v1802, %v1803
        %v1805 = vrot.slane %v1565, 4
        %v1806 = vadd.f32 %v1565, %v1805
        %v1807 = vrot.slane %v1806, 2
        %v1808 = vadd.f32 %v1806, %v1807
        %v1809 = vrot.slane %v1808, 1
        %v1810 = vadd.f32 %v1808, %v1809
        %v1811 = vrot.slane %v1566, 4
        %v1812 = vadd.f32 %v1566, %v1811
        %v1813 = vrot.slane %v1812, 2
        %v1814 = vadd.f32 %v1812, %v1813
        %v1815 = vrot.slane %v1814, 1
        %v1816 = vadd.f32 %v1814, %v1815
        %v1817 = vrot.slane %v1567, 4
        %v1818 = vadd.f32 %v1567, %v1817
        %v1819 = vrot.slane %v1818, 2
        %v1820 = vadd.f32 %v1818, %v1819
        %v1821 = vrot.slane %v1820, 1
        %v1822 = vadd.f32 %v1820, %v1821
        %v1823 = vrot.slane %v1568, 4
        %v1824 = vadd.f32 %v1568, %v1823
        %v1825 = vrot.slane %v1824, 2
        %v1826 = vadd.f32 %v1824, %v1825
        %v1827 = vrot.slane %v1826, 1
        %v1828 = vadd.f32 %v1826, %v1827
        %v1829 = vrot.slane %v1569, 4
        %v1830 = vadd.f32 %v1569, %v1829
        %v1831 = vrot.slane %v1830, 2
        %v1832 = vadd.f32 %v1830, %v1831
        %v1833 = vrot.slane %v1832, 1
        %v1834 = vadd.f32 %v1832, %v1833
        %v1835 = vrot.slane %v1570, 4
        %v1836 = vadd.f32 %v1570, %v1835
        %v1837 = vrot.slane %v1836, 2
        %v1838 = vadd.f32 %v1836, %v1837
        %v1839 = vrot.slane %v1838, 1
        %v1840 = vadd.f32 %v1838, %v1839
        %v1841 = vrot.slane %v1571, 4
        %v1842 = vadd.f32 %v1571, %v1841
        %v1843 = vrot.slane %v1842, 2
        %v1844 = vadd.f32 %v1842, %v1843
        %v1845 = vrot.slane %v1844, 1
        %v1846 = vadd.f32 %v1844, %v1845
        %v1847 = vrot.slane %v1572, 4
        %v1848 = vadd.f32 %v1572, %v1847
        %v1849 = vrot.slane %v1848, 2
        %v1850 = vadd.f32 %v1848, %v1849
        %v1851 = vrot.slane %v1850, 1
        %v1852 = vadd.f32 %v1850, %v1851
        %v1853 = vrot.slane %v1573, 4
        %v1854 = vadd.f32 %v1573, %v1853
        %v1855 = vrot.slane %v1854, 2
        %v1856 = vadd.f32 %v1854, %v1855
        %v1857 = vrot.slane %v1856, 1
        %v1858 = vadd.f32 %v1856, %v1857
        %v1859 = vrot.slane %v1574, 4
        %v1860 = vadd.f32 %v1574, %v1859
        %v1861 = vrot.slane %v1860, 2
        %v1862 = vadd.f32 %v1860, %v1861
        %v1863 = vrot.slane %v1862, 1
        %v1864 = vadd.f32 %v1862, %v1863
        %v1865 = vrot.slane %v1575, 4
        %v1866 = vadd.f32 %v1575, %v1865
        %v1867 = vrot.slane %v1866, 2
        %v1868 = vadd.f32 %v1866, %v1867
        %v1869 = vrot.slane %v1868, 1
        %v1870 = vadd.f32 %v1868, %v1869
        %v1871 = vrot.slane %v1576, 4
        %v1872 = vadd.f32 %v1576, %v1871
        %v1873 = vrot.slane %v1872, 2
        %v1874 = vadd.f32 %v1872, %v1873
        %v1875 = vrot.slane %v1874, 1
        %v1876 = vadd.f32 %v1874, %v1875
        %v1877 = vrot.slane %v1577, 4
        %v1878 = vadd.f32 %v1577, %v1877
        %v1879 = vrot.slane %v1878, 2
        %v1880 = vadd.f32 %v1878, %v1879
        %v1881 = vrot.slane %v1880, 1
        %v1882 = vadd.f32 %v1880, %v1881
        %v1883 = vrot.slane %v1578, 4
        %v1884 = vadd.f32 %v1578, %v1883
        %v1885 = vrot.slane %v1884, 2
        %v1886 = vadd.f32 %v1884, %v1885
        %v1887 = vrot.slane %v1886, 1
        %v1888 = vadd.f32 %v1886, %v1887
        %v1889 = vrot.slane %v1579, 4
        %v1890 = vadd.f32 %v1579, %v1889
        %v1891 = vrot.slane %v1890, 2
        %v1892 = vadd.f32 %v1890, %v1891
        %v1893 = vrot.slane %v1892, 1
        %v1894 = vadd.f32 %v1892, %v1893
        %v1895 = vrot.slane %v1580, 4
        %v1896 = vadd.f32 %v1580, %v1895
        %v1897 = vrot.slane %v1896, 2
        %v1898 = vadd.f32 %v1896, %v1897
        %v1899 = vrot.slane %v1898, 1
        %v1900 = vadd.f32 %v1898, %v1899
        %v1901 = vrot.slane %v1581, 4
        %v1902 = vadd.f32 %v1581, %v1901
        %v1903 = vrot.slane %v1902, 2
        %v1904 = vadd.f32 %v1902, %v1903
        %v1905 = vrot.slane %v1904, 1
        %v1906 = vadd.f32 %v1904, %v1905
        %v1907 = vrot.slane %v1582, 4
        %v1908 = vadd.f32 %v1582, %v1907
        %v1909 = vrot.slane %v1908, 2
        %v1910 = vadd.f32 %v1908, %v1909
        %v1911 = vrot.slane %v1910, 1
        %v1912 = vadd.f32 %v1910, %v1911
        %v1913 = vrot.slane %v1583, 4
        %v1914 = vadd.f32 %v1583, %v1913
        %v1915 = vrot.slane %v1914, 2
        %v1916 = vadd.f32 %v1914, %v1915
        %v1917 = vrot.slane %v1916, 1
        %v1918 = vadd.f32 %v1916, %v1917
        %v1919 = vrot.slane %v1584, 4
        %v1920 = vadd.f32 %v1584, %v1919
        %v1921 = vrot.slane %v1920, 2
        %v1922 = vadd.f32 %v1920, %v1921
        %v1923 = vrot.slane %v1922, 1
        %v1924 = vadd.f32 %v1922, %v1923
        %v1925 = vrot.slane %v1585, 4
        %v1926 = vadd.f32 %v1585, %v1925
        %v1927 = vrot.slane %v1926, 2
        %v1928 = vadd.f32 %v1926, %v1927
        %v1929 = vrot.slane %v1928, 1
        %v1930 = vadd.f32 %v1928, %v1929
        %v1931 = vrot.slane %v1586, 4
        %v1932 = vadd.f32 %v1586, %v1931
        %v1933 = vrot.slane %v1932, 2
        %v1934 = vadd.f32 %v1932, %v1933
        %v1935 = vrot.slane %v1934, 1
        %v1936 = vadd.f32 %v1934, %v1935
        %v1937 = vrot.slane %v1587, 4
        %v1938 = vadd.f32 %v1587, %v1937
        %v1939 = vrot.slane %v1938, 2
        %v1940 = vadd.f32 %v1938, %v1939
        %v1941 = vrot.slane %v1940, 1
        %v1942 = vadd.f32 %v1940, %v1941
        %v1943 = vrot.slane %v1588, 4
        %v1944 = vadd.f32 %v1588, %v1943
        %v1945 = vrot.slane %v1944, 2
        %v1946 = vadd.f32 %v1944, %v1945
        %v1947 = vrot.slane %v1946, 1
        %v1948 = vadd.f32 %v1946, %v1947
        %v1949 = vrot.slane %v1589, 4
        %v1950 = vadd.f32 %v1589, %v1949
        %v1951 = vrot.slane %v1950, 2
        %v1952 = vadd.f32 %v1950, %v1951
        %v1953 = vrot.slane %v1952, 1
        %v1954 = vadd.f32 %v1952, %v1953
        %v1955 = vrot.slane %v1590, 4
        %v1956 = vadd.f32 %v1590, %v1955
        %v1957 = vrot.slane %v1956, 2
        %v1958 = vadd.f32 %v1956, %v1957
        %v1959 = vrot.slane %v1958, 1
        %v1960 = vadd.f32 %v1958, %v1959
        %v1961 = vrot.slane %v1591, 4
        %v1962 = vadd.f32 %v1591, %v1961
        %v1963 = vrot.slane %v1962, 2
        %v1964 = vadd.f32 %v1962, %v1963
        %v1965 = vrot.slane %v1964, 1
        %v1966 = vadd.f32 %v1964, %v1965
        %v1967 = vrot.slane %v1592, 4
        %v1968 = vadd.f32 %v1592, %v1967
        %v1969 = vrot.slane %v1968, 2
        %v1970 = vadd.f32 %v1968, %v1969
        %v1971 = vrot.slane %v1970, 1
        %v1972 = vadd.f32 %v1970, %v1971
        %v1973 = vrot.slane %v1593, 4
        %v1974 = vadd.f32 %v1593, %v1973
        %v1975 = vrot.slane %v1974, 2
        %v1976 = vadd.f32 %v1974, %v1975
        %v1977 = vrot.slane %v1976, 1
        %v1978 = vadd.f32 %v1976, %v1977
        %v1979 = vrot.slane %v1594, 4
        %v1980 = vadd.f32 %v1594, %v1979
        %v1981 = vrot.slane %v1980, 2
        %v1982 = vadd.f32 %v1980, %v1981
        %v1983 = vrot.slane %v1982, 1
        %v1984 = vadd.f32 %v1982, %v1983
        %v1985 = vrot.slane %v1595, 4
        %v1986 = vadd.f32 %v1595, %v1985
        %v1987 = vrot.slane %v1986, 2
        %v1988 = vadd.f32 %v1986, %v1987
        %v1989 = vrot.slane %v1988, 1
        %v1990 = vadd.f32 %v1988, %v1989
        %v1991 = vrot.slane %v1596, 4
        %v1992 = vadd.f32 %v1596, %v1991
        %v1993 = vrot.slane %v1992, 2
        %v1994 = vadd.f32 %v1992, %v1993
        %v1995 = vrot.slane %v1994, 1
        %v1996 = vadd.f32 %v1994, %v1995
        %v1997 = vrot.slane %v1597, 4
        %v1998 = vadd.f32 %v1597, %v1997
        %v1999 = vrot.slane %v1998, 2
        %v2000 = vadd.f32 %v1998, %v1999
        %v2001 = vrot.slane %v2000, 1
        %v2002 = vadd.f32 %v2000, %v2001
        %v2003 = vrot.slane %v1598, 4
        %v2004 = vadd.f32 %v1598, %v2003
        %v2005 = vrot.slane %v2004, 2
        %v2006 = vadd.f32 %v2004, %v2005
        %v2007 = vrot.slane %v2006, 1
        %v2008 = vadd.f32 %v2006, %v2007
        %v2009 = vrot.slane %v1599, 4
        %v2010 = vadd.f32 %v1599, %v2009
        %v2011 = vrot.slane %v2010, 2
        %v2012 = vadd.f32 %v2010, %v2011
        %v2013 = vrot.slane %v2012, 1
        %v2014 = vadd.f32 %v2012, %v2013
        %v2015 = vrot.slane %v1600, 4
        %v2016 = vadd.f32 %v1600, %v2015
        %v2017 = vrot.slane %v2016, 2
        %v2018 = vadd.f32 %v2016, %v2017
        %v2019 = vrot.slane %v2018, 1
        %v2020 = vadd.f32 %v2018, %v2019
        %v2021 = vrot.slane %v1601, 4
        %v2022 = vadd.f32 %v1601, %v2021
        %v2023 = vrot.slane %v2022, 2
        %v2024 = vadd.f32 %v2022, %v2023
        %v2025 = vrot.slane %v2024, 1
        %v2026 = vadd.f32 %v2024, %v2025
        %v2027 = vrot.slane %v1602, 4
        %v2028 = vadd.f32 %v1602, %v2027
        %v2029 = vrot.slane %v2028, 2
        %v2030 = vadd.f32 %v2028, %v2029
        %v2031 = vrot.slane %v2030, 1
        %v2032 = vadd.f32 %v2030, %v2031
        %v2033 = vrot.slane %v1603, 4
        %v2034 = vadd.f32 %v1603, %v2033
        %v2035 = vrot.slane %v2034, 2
        %v2036 = vadd.f32 %v2034, %v2035
        %v2037 = vrot.slane %v2036, 1
        %v2038 = vadd.f32 %v2036, %v2037
        %v2039 = vrot.slane %v1604, 4
        %v2040 = vadd.f32 %v1604, %v2039
        %v2041 = vrot.slane %v2040, 2
        %v2042 = vadd.f32 %v2040, %v2041
        %v2043 = vrot.slane %v2042, 1
        %v2044 = vadd.f32 %v2042, %v2043
        %v2045 = vrot.slane %v1605, 4
        %v2046 = vadd.f32 %v1605, %v2045
        %v2047 = vrot.slane %v2046, 2
        %v2048 = vadd.f32 %v2046, %v2047
        %v2049 = vrot.slane %v2048, 1
        %v2050 = vadd.f32 %v2048, %v2049
        %v2051 = vrot.slane %v1606, 4
        %v2052 = vadd.f32 %v1606, %v2051
        %v2053 = vrot.slane %v2052, 2
        %v2054 = vadd.f32 %v2052, %v2053
        %v2055 = vrot.slane %v2054, 1
        %v2056 = vadd.f32 %v2054, %v2055
        %v2057 = vrot.slane %v1607, 4
        %v2058 = vadd.f32 %v1607, %v2057
        %v2059 = vrot.slane %v2058, 2
        %v2060 = vadd.f32 %v2058, %v2059
        %v2061 = vrot.slane %v2060, 1
        %v2062 = vadd.f32 %v2060, %v2061
        %v2063 = vrot.slane %v1608, 4
        %v2064 = vadd.f32 %v1608, %v2063
        %v2065 = vrot.slane %v2064, 2
        %v2066 = vadd.f32 %v2064, %v2065
        %v2067 = vrot.slane %v2066, 1
        %v2068 = vadd.f32 %v2066, %v2067
        %v2069 = vrot.slane %v1609, 4
        %v2070 = vadd.f32 %v1609, %v2069
        %v2071 = vrot.slane %v2070, 2
        %v2072 = vadd.f32 %v2070, %v2071
        %v2073 = vrot.slane %v2072, 1
        %v2074 = vadd.f32 %v2072, %v2073
        %v2075 = vrot.slane %v1610, 4
        %v2076 = vadd.f32 %v1610, %v2075
        %v2077 = vrot.slane %v2076, 2
        %v2078 = vadd.f32 %v2076, %v2077
        %v2079 = vrot.slane %v2078, 1
        %v2080 = vadd.f32 %v2078, %v2079
        %v2081 = vrot.slane %v1611, 4
        %v2082 = vadd.f32 %v1611, %v2081
        %v2083 = vrot.slane %v2082, 2
        %v2084 = vadd.f32 %v2082, %v2083
        %v2085 = vrot.slane %v2084, 1
        %v2086 = vadd.f32 %v2084, %v2085
        %v2087 = vrot.slane %v1612, 4
        %v2088 = vadd.f32 %v1612, %v2087
        %v2089 = vrot.slane %v2088, 2
        %v2090 = vadd.f32 %v2088, %v2089
        %v2091 = vrot.slane %v2090, 1
        %v2092 = vadd.f32 %v2090, %v2091
        %v2093 = vrot.slane %v1613, 4
        %v2094 = vadd.f32 %v1613, %v2093
        %v2095 = vrot.slane %v2094, 2
        %v2096 = vadd.f32 %v2094, %v2095
        %v2097 = vrot.slane %v2096, 1
        %v2098 = vadd.f32 %v2096, %v2097
        %v2099 = vrot.slane %v1614, 4
        %v2100 = vadd.f32 %v1614, %v2099
        %v2101 = vrot.slane %v2100, 2
        %v2102 = vadd.f32 %v2100, %v2101
        %v2103 = vrot.slane %v2102, 1
        %v2104 = vadd.f32 %v2102, %v2103
        %vm2185 = vcmask 1041409
        %v2186 = vsel %vm2185, %v1690, %v1630
        %vm2187 = vcmask 1042434
        %v2188 = vsel %vm2187, %v1750, %v2186
        %vm2189 = vcmask 1043459
        %v2190 = vsel %vm2189, %v1810, %v2188
        %vm2191 = vcmask 1044484
        %v2192 = vsel %vm2191, %v1870, %v2190
        %vm2193 = vcmask 1045509
        %v2194 = vsel %vm2193, %v1930, %v2192
        %vm2195 = vcmask 1046534
        %v2196 = vsel %vm2195, %v1990, %v2194
        %vm2197 = vcmask 1047559
        %v2198 = vsel %vm2197, %v2050, %v2196
        %v2199 = vsel %vm2185, %v1696, %v1636
        %v2200 = vsel %vm2187, %v1756, %v2199
        %v2201 = vsel %vm2189, %v1816, %v2200
        %v2202 = vsel %vm2191, %v1876, %v2201
        %v2203 = vsel %vm2193, %v1936, %v2202
        %v2204 = vsel %vm2195, %v1996, %v2203
        %v2205 = vsel %vm2197, %v2056, %v2204
        %v2206 = vsel %vm2185, %v1702, %v1642
        %v2207 = vsel %vm2187, %v1762, %v2206
        %v2208 = vsel %vm2189, %v1822, %v2207
        %v2209 = vsel %vm2191, %v1882, %v2208
        %v2210 = vsel %vm2193, %v1942, %v2209
        %v2211 = vsel %vm2195, %v2002, %v2210
        %v2212 = vsel %vm2197, %v2062, %v2211
        %v2213 = vsel %vm2185, %v1708, %v1648
        %v2214 = vsel %vm2187, %v1768, %v2213
        %v2215 = vsel %vm2189, %v1828, %v2214
        %v2216 = vsel %vm2191, %v1888, %v2215
        %v2217 = vsel %vm2193, %v1948, %v2216
        %v2218 = vsel %vm2195, %v2008, %v2217
        %v2219 = vsel %vm2197, %v2068, %v2218
        %v2220 = vsel %vm2185, %v1714, %v1654
        %v2221 = vsel %vm2187, %v1774, %v2220
        %v2222 = vsel %vm2189, %v1834, %v2221
        %v2223 = vsel %vm2191, %v1894, %v2222
        %v2224 = vsel %vm2193, %v1954, %v2223
        %v2225 = vsel %vm2195, %v2014, %v2224
        %v2226 = vsel %vm2197, %v2074, %v2225
        %v2227 = vsel %vm2185, %v1720, %v1660
        %v2228 = vsel %vm2187, %v1780, %v2227
        %v2229 = vsel %vm2189, %v1840, %v2228
        %v2230 = vsel %vm2191, %v1900, %v2229
        %v2231 = vsel %vm2193, %v1960, %v2230
        %v2232 = vsel %vm2195, %v2020, %v2231
        %v2233 = vsel %vm2197, %v2080, %v2232
        %v2234 = vsel %vm2185, %v1726, %v1666
        %v2235 = vsel %vm2187, %v1786, %v2234
        %v2236 = vsel %vm2189, %v1846, %v2235
        %v2237 = vsel %vm2191, %v1906, %v2236
        %v2238 = vsel %vm2193, %v1966, %v2237
        %v2239 = vsel %vm2195, %v2026, %v2238
        %v2240 = vsel %vm2197, %v2086, %v2239
        %v2241 = vsel %vm2185, %v1732, %v1672
        %v2242 = vsel %vm2187, %v1792, %v2241
        %v2243 = vsel %vm2189, %v1852, %v2242
        %v2244 = vsel %vm2191, %v1912, %v2243
        %v2245 = vsel %vm2193, %v1972, %v2244
        %v2246 = vsel %vm2195, %v2032, %v2245
        %v2247 = vsel %vm2197, %v2092, %v2246
        %v2248 = vsel %vm2185, %v1738, %v1678
        %v2249 = vsel %vm2187, %v1798, %v2248
        %v2250 = vsel %vm2189, %v1858, %v2249
        %v2251 = vsel %vm2191, %v1918, %v2250
        %v2252 = vsel %vm2193, %v1978, %v2251
        %v2253 = vsel %vm2195, %v2038, %v2252
        %v2254 = vsel %vm2197, %v2098, %v2253
        %v2255 = vsel %vm2185, %v1744, %v1684
        %v2256 = vsel %vm2187, %v1804, %v2255
        %v2257 = vsel %vm2189, %v1864, %v2256
        %v2258 = vsel %vm2191, %v1924, %v2257
        %v2259 = vsel %vm2193, %v1984, %v2258
        %v2260 = vsel %vm2195, %v2044, %v2259
        %v2261 = vsel %vm2197, %v2104, %v2260
        %v2272 = vadd.f32 %v1615, %v2198
        %v2273 = vadd.f32 %v1616, %v2205
        %v2274 = vadd.f32 %v1617, %v2212
        %v2275 = vadd.f32 %v1618, %v2219
        %v2276 = vadd.f32 %v1619, %v2226
        %v2277 = vadd.f32 %v1620, %v2233
        %v2278 = vadd.f32 %v1621, %v2240
        %v2279 = vadd.f32 %v1622, %v2247
        %v2280 = vadd.f32 %v1623, %v2254
        %v2281 = vadd.f32 %v1624, %v2261
        %2282 = vst [vmem:[#allocation2] sm:$0xff] %v2272
        %2283 = vst [vmem:[#allocation2 + $0x8] sm:$0xff] %v2273
        %2284 = vst [vmem:[#allocation2 + $0x10] sm:$0xff] %v2274
        %2285 = vst [vmem:[#allocation2 + $0x18] sm:$0xff] %v2275
        %2286 = vst [vmem:[#allocation2 + $0x20] sm:$0xff] %v2276
        %2287 = vst [vmem:[#allocation2 + $0x28] sm:$0xff] %v2277
        %2288 = vst [vmem:[#allocation2 + $0x30] sm:$0xff] %v2278
        %2289 = vst [vmem:[#allocation2 + $0x38] sm:$0xff] %v2279
        %2290 = vst [vmem:[#allocation2 + $0x40] sm:$0xff] %v2280
        %2291 = vst [vmem:[#allocation2 + $0x48] sm:$0xff] %v2281
        // Predicated region
        $region53: #{efficientnet_backbone_forward.1} parent=47 // pred_check
          %p2292 = pneg %p301
        $region54: #{efficientnet_backbone_forward.1} parent=47 // pred_check_branch
          %2294 = sbr.rel (%p2292) target = $region56
        $region55: #{efficientnet_backbone_forward.1} parent=47 // pred_region
          %v2295 = vld [vmem:[#allocation2] sm:$0xff]
          %v2296 = vld [vmem:[#allocation2 + $0x8] sm:$0xff]
          %v2297 = vld [vmem:[#allocation2 + $0x10] sm:$0xff]
          %v2298 = vld [vmem:[#allocation2 + $0x18] sm:$0xff]
          %v2299 = vld [vmem:[#allocation2 + $0x20] sm:$0xff]
          %v2300 = vld [vmem:[#allocation2 + $0x28] sm:$0xff]
          %v2301 = vld [vmem:[#allocation2 + $0x30] sm:$0xff]
          %v2302 = vld [vmem:[#allocation2 + $0x38] sm:$0xff]
          %v2303 = vld [vmem:[#allocation2 + $0x40] sm:$0xff]
          %v2304 = vld [vmem:[#allocation2 + $0x48] sm:$0xff]
          %v2305 = vmul.f32 %v2295, 0.125
          %v2306 = vmul.f32 %v2296, 0.125
          %v2307 = vmul.f32 %v2297, 0.125
          %v2308 = vmul.f32 %v2298, 0.125
          %v2309 = vmul.f32 %v2299, 0.125
          %v2310 = vmul.f32 %v2300, 0.125
          %v2311 = vmul.f32 %v2301, 0.125
          %v2312 = vmul.f32 %v2302, 0.125
          %v2313 = vmul.f32 %v2303, 0.125
          %v2314 = vmul.f32 %v2304, 0.125
          %v2315 = vpack.c.bf16 %v2305, %v2305
          %v2316 = vpack.c.bf16 %v2306, %v2306
          %v2317 = vpack.c.bf16 %v2307, %v2307
          %v2318 = vpack.c.bf16 %v2308, %v2308
          %v2319 = vpack.c.bf16 %v2309, %v2309
          %v2320 = vpack.c.bf16 %v2310, %v2310
          %v2321 = vpack.c.bf16 %v2311, %v2311
          %v2322 = vpack.c.bf16 %v2312, %v2312
          %v2323 = vpack.c.bf16 %v2313, %v2313
          %v2324 = vpack.c.bf16 %v2314, %v2314
          %v2325 = vld [vmem:[%s5] sm:$0xff]
          %v2326 = vld [vmem:[%s5 + $0x8] sm:$0xff]
          %v2327 = vld [vmem:[%s5 + $0x10] sm:$0xff]
          %v2328 = vld [vmem:[%s5 + $0x18] sm:$0xff]
          %v2329 = vld [vmem:[%s5 + $0x20] sm:$0xff]
          %v2330 = vld [vmem:[%s5 + $0x28] sm:$0xff]
          %v2331 = vld [vmem:[%s5 + $0x30] sm:$0xff]
          %v2332 = vld [vmem:[%s5 + $0x38] sm:$0xff]
          %v2333 = vld [vmem:[%s5 + $0x40] sm:$0xff]
          %v2334 = vld [vmem:[%s5 + $0x48] sm:$0xff]
          %v2335 = vld [vmem:[%s5 + $0x50] sm:$0xff]
          %v2336 = vld [vmem:[%s5 + $0x58] sm:$0xff]
          %v2337 = vld [vmem:[%s5 + $0x60] sm:$0xff]
          %v2338 = vld [vmem:[%s5 + $0x68] sm:$0xff]
          %v2339 = vld [vmem:[%s5 + $0x70] sm:$0xff]
          %v2340 = vld [vmem:[%s5 + $0x78] sm:$0xff]
          %v2341 = vld [vmem:[%s5 + $0x80] sm:$0xff]
          %v2342 = vld [vmem:[%s5 + $0x88] sm:$0xff]
          %v2343 = vld [vmem:[%s5 + $0x90] sm:$0xff]
          %v2344 = vld [vmem:[%s5 + $0x98] sm:$0xff]
          %v2345 = vld [vmem:[%s5 + $0xa0] sm:$0xff]
          %v2346 = vld [vmem:[%s5 + $0xa8] sm:$0xff]
          %v2347 = vld [vmem:[%s5 + $0xb0] sm:$0xff]
          %v2348 = vld [vmem:[%s5 + $0xb8] sm:$0xff]
          %v2349 = vld [vmem:[%s5 + $0xc0] sm:$0xff]
          %v2350 = vld [vmem:[%s5 + $0xc8] sm:$0xff]
          %v2351 = vld [vmem:[%s5 + $0xd0] sm:$0xff]
          %v2352 = vld [vmem:[%s5 + $0xd8] sm:$0xff]
          %v2353 = vld [vmem:[%s5 + $0xe0] sm:$0xff]
          %v2354 = vld [vmem:[%s5 + $0xe8] sm:$0xff]
          %v2355 = vld [vmem:[%s5 + $0xf0] sm:$0xff]
          %v2356 = vld [vmem:[%s5 + $0xf8] sm:$0xff]
          %v2357 = vld [vmem:[%s5 + $0x100] sm:$0xff]
          %v2358 = vld [vmem:[%s5 + $0x108] sm:$0xff]
          %v2359 = vld [vmem:[%s5 + $0x110] sm:$0xff]
          %v2360 = vld [vmem:[%s5 + $0x118] sm:$0xff]
          %v2361 = vld [vmem:[%s5 + $0x120] sm:$0xff]
          %v2362 = vld [vmem:[%s5 + $0x128] sm:$0xff]
          %v2363 = vld [vmem:[%s5 + $0x130] sm:$0xff]
          %v2364 = vld [vmem:[%s5 + $0x138] sm:$0xff]
          %v2365 = vld [vmem:[%s5 + $0x140] sm:$0xff]
          %v2366 = vld [vmem:[%s5 + $0x148] sm:$0xff]
          %v2367 = vld [vmem:[%s5 + $0x150] sm:$0xff]
          %v2368 = vld [vmem:[%s5 + $0x158] sm:$0xff]
          %v2369 = vld [vmem:[%s5 + $0x160] sm:$0xff]
          %v2370 = vld [vmem:[%s5 + $0x168] sm:$0xff]
          %v2371 = vld [vmem:[%s5 + $0x170] sm:$0xff]
          %v2372 = vld [vmem:[%s5 + $0x178] sm:$0xff]
          %v2373 = vld [vmem:[%s5 + $0x180] sm:$0xff]
          %v2374 = vld [vmem:[%s5 + $0x188] sm:$0xff]
          %v2375 = vld [vmem:[%s5 + $0x190] sm:$0xff]
          %v2376 = vld [vmem:[%s5 + $0x198] sm:$0xff]
          %v2377 = vld [vmem:[%s5 + $0x1a0] sm:$0xff]
          %v2378 = vld [vmem:[%s5 + $0x1a8] sm:$0xff]
          %v2379 = vld [vmem:[%s5 + $0x1b0] sm:$0xff]
          %v2380 = vld [vmem:[%s5 + $0x1b8] sm:$0xff]
          %v2381 = vld [vmem:[%s5 + $0x1c0] sm:$0xff]
          %v2382 = vld [vmem:[%s5 + $0x1c8] sm:$0xff]
          %v2383 = vld [vmem:[%s5 + $0x1d0] sm:$0xff]
          %v2384 = vld [vmem:[%s5 + $0x1d8] sm:$0xff]
          %v2385 = vld [vmem:[%s5 + $0x1e0] sm:$0xff]
          %v2386 = vld [vmem:[%s5 + $0x1e8] sm:$0xff]
          %v2387 = vld [vmem:[%s5 + $0x1f0] sm:$0xff]
          %v2388 = vld [vmem:[%s5 + $0x1f8] sm:$0xff]
          %v2389 = vld [vmem:[%s5 + $0x200] sm:$0xff]
          %v2390 = vld [vmem:[%s5 + $0x208] sm:$0xff]
          %v2391 = vld [vmem:[%s5 + $0x210] sm:$0xff]
          %v2392 = vld [vmem:[%s5 + $0x218] sm:$0xff]
          %v2393 = vld [vmem:[%s5 + $0x220] sm:$0xff]
          %v2394 = vld [vmem:[%s5 + $0x228] sm:$0xff]
          %v2395 = vld [vmem:[%s5 + $0x230] sm:$0xff]
          %v2396 = vld [vmem:[%s5 + $0x238] sm:$0xff]
          %v2397 = vld [vmem:[%s5 + $0x240] sm:$0xff]
          %v2398 = vld [vmem:[%s5 + $0x248] sm:$0xff]
          %v2399 = vld [vmem:[%s5 + $0x250] sm:$0xff]
          %v2400 = vld [vmem:[%s5 + $0x258] sm:$0xff]
          %v2401 = vld [vmem:[%s5 + $0x260] sm:$0xff]
          %v2402 = vld [vmem:[%s5 + $0x268] sm:$0xff]
          %v2403 = vld [vmem:[%s5 + $0x270] sm:$0xff]
          %v2404 = vld [vmem:[%s5 + $0x278] sm:$0xff]
          %v2405 = vld [vmem:[%s5 + $0x280] sm:$0xff]
          %v2406 = vld [vmem:[%s5 + $0x288] sm:$0xff]
          %v2407 = vld [vmem:[%s5 + $0x290] sm:$0xff]
          %v2408 = vld [vmem:[%s5 + $0x298] sm:$0xff]
          %v2409 = vld [vmem:[%s5 + $0x2a0] sm:$0xff]
          %v2410 = vld [vmem:[%s5 + $0x2a8] sm:$0xff]
          %v2411 = vld [vmem:[%s5 + $0x2b0] sm:$0xff]
          %v2412 = vld [vmem:[%s5 + $0x2b8] sm:$0xff]
          %v2413 = vld [vmem:[%s5 + $0x2c0] sm:$0xff]
          %v2414 = vld [vmem:[%s5 + $0x2c8] sm:$0xff]
          %v2415 = vld [vmem:[%s5 + $0x2d0] sm:$0xff]
          %v2416 = vld [vmem:[%s5 + $0x2d8] sm:$0xff]
          %v2417 = vld [vmem:[%s5 + $0x2e0] sm:$0xff]
          %v2418 = vld [vmem:[%s5 + $0x2e8] sm:$0xff]
          %v2419 = vld [vmem:[%s5 + $0x2f0] sm:$0xff]
          %v2420 = vld [vmem:[%s5 + $0x2f8] sm:$0xff]
          %v2421 = vld [vmem:[%s5 + $0x300] sm:$0xff]
          %v2422 = vld [vmem:[%s5 + $0x308] sm:$0xff]
          %v2423 = vld [vmem:[%s5 + $0x310] sm:$0xff]
          %v2424 = vld [vmem:[%s5 + $0x318] sm:$0xff]
          %v2425 = vld [vmem:[%s5 + $0x320] sm:$0xff]
          %v2426 = vld [vmem:[%s5 + $0x328] sm:$0xff]
          %v2427 = vld [vmem:[%s5 + $0x330] sm:$0xff]
          %v2428 = vld [vmem:[%s5 + $0x338] sm:$0xff]
          %v2429 = vld [vmem:[%s5 + $0x340] sm:$0xff]
          %v2430 = vld [vmem:[%s5 + $0x348] sm:$0xff]
          %v2431 = vld [vmem:[%s5 + $0x350] sm:$0xff]
          %v2432 = vld [vmem:[%s5 + $0x358] sm:$0xff]
          %v2433 = vld [vmem:[%s5 + $0x360] sm:$0xff]
          %v2434 = vld [vmem:[%s5 + $0x368] sm:$0xff]
          %v2435 = vld [vmem:[%s5 + $0x370] sm:$0xff]
          %v2436 = vld [vmem:[%s5 + $0x378] sm:$0xff]
          %v2437 = vld [vmem:[%s5 + $0x380] sm:$0xff]
          %v2438 = vld [vmem:[%s5 + $0x388] sm:$0xff]
          %v2439 = vld [vmem:[%s5 + $0x390] sm:$0xff]
          %v2440 = vld [vmem:[%s5 + $0x398] sm:$0xff]
          %v2441 = vld [vmem:[%s5 + $0x3a0] sm:$0xff]
          %v2442 = vld [vmem:[%s5 + $0x3a8] sm:$0xff]
          %v2443 = vld [vmem:[%s5 + $0x3b0] sm:$0xff]
          %v2444 = vld [vmem:[%s5 + $0x3b8] sm:$0xff]
          %v2445 = vld [vmem:[%s5 + $0x3c0] sm:$0xff]
          %v2446 = vld [vmem:[%s5 + $0x3c8] sm:$0xff]
          %v2447 = vld [vmem:[%s5 + $0x3d0] sm:$0xff]
          %v2448 = vld [vmem:[%s5 + $0x3d8] sm:$0xff]
          %v2449 = vld [vmem:[%s5 + $0x3e0] sm:$0xff]
          %v2450 = vld [vmem:[%s5 + $0x3e8] sm:$0xff]
          %v2451 = vld [vmem:[%s5 + $0x3f0] sm:$0xff]
          %v2452 = vld [vmem:[%s5 + $0x3f8] sm:$0xff]
          %v2453 = vld [vmem:[%s5 + $0x400] sm:$0xff]
          %v2454 = vld [vmem:[%s5 + $0x408] sm:$0xff]
          %v2455 = vld [vmem:[%s5 + $0x410] sm:$0xff]
          %v2456 = vld [vmem:[%s5 + $0x418] sm:$0xff]
          %v2457 = vld [vmem:[%s5 + $0x420] sm:$0xff]
          %v2458 = vld [vmem:[%s5 + $0x428] sm:$0xff]
          %v2459 = vld [vmem:[%s5 + $0x430] sm:$0xff]
          %v2460 = vld [vmem:[%s5 + $0x438] sm:$0xff]
          %v2461 = vld [vmem:[%s5 + $0x440] sm:$0xff]
          %v2462 = vld [vmem:[%s5 + $0x448] sm:$0xff]
          %v2463 = vld [vmem:[%s5 + $0x450] sm:$0xff]
          %v2464 = vld [vmem:[%s5 + $0x458] sm:$0xff]
          %v2465 = vld [vmem:[%s5 + $0x460] sm:$0xff]
          %v2466 = vld [vmem:[%s5 + $0x468] sm:$0xff]
          %v2467 = vld [vmem:[%s5 + $0x470] sm:$0xff]
          %v2468 = vld [vmem:[%s5 + $0x478] sm:$0xff]
          %v2469 = vld [vmem:[%s5 + $0x480] sm:$0xff]
          %v2470 = vld [vmem:[%s5 + $0x488] sm:$0xff]
          %v2471 = vld [vmem:[%s5 + $0x490] sm:$0xff]
          %v2472 = vld [vmem:[%s5 + $0x498] sm:$0xff]
          %v2473 = vld [vmem:[%s5 + $0x4a0] sm:$0xff]
          %v2474 = vld [vmem:[%s5 + $0x4a8] sm:$0xff]
          %v2475 = vld [vmem:[%s5 + $0x4b0] sm:$0xff]
          %v2476 = vld [vmem:[%s5 + $0x4b8] sm:$0xff]
          %v2477 = vld [vmem:[%s5 + $0x4c0] sm:$0xff]
          %v2478 = vld [vmem:[%s5 + $0x4c8] sm:$0xff]
          %v2479 = vld [vmem:[%s5 + $0x4d0] sm:$0xff]
          %v2480 = vld [vmem:[%s5 + $0x4d8] sm:$0xff]
          %v2481 = vld [vmem:[%s5 + $0x4e0] sm:$0xff]
          %v2482 = vld [vmem:[%s5 + $0x4e8] sm:$0xff]
          %v2483 = vld [vmem:[%s5 + $0x4f0] sm:$0xff]
          %v2484 = vld [vmem:[%s5 + $0x4f8] sm:$0xff]
          %v2485 = vld [vmem:[%s5 + $0x500] sm:$0xff]
          %v2486 = vld [vmem:[%s5 + $0x508] sm:$0xff]
          %v2487 = vld [vmem:[%s5 + $0x510] sm:$0xff]
          %v2488 = vld [vmem:[%s5 + $0x518] sm:$0xff]
          %v2489 = vld [vmem:[%s5 + $0x520] sm:$0xff]
          %v2490 = vld [vmem:[%s5 + $0x528] sm:$0xff]
          %v2491 = vld [vmem:[%s5 + $0x530] sm:$0xff]
          %v2492 = vld [vmem:[%s5 + $0x538] sm:$0xff]
          %v2493 = vld [vmem:[%s5 + $0x540] sm:$0xff]
          %v2494 = vld [vmem:[%s5 + $0x548] sm:$0xff]
          %v2495 = vld [vmem:[%s5 + $0x550] sm:$0xff]
          %v2496 = vld [vmem:[%s5 + $0x558] sm:$0xff]
          %v2497 = vld [vmem:[%s5 + $0x560] sm:$0xff]
          %v2498 = vld [vmem:[%s5 + $0x568] sm:$0xff]
          %v2499 = vld [vmem:[%s5 + $0x570] sm:$0xff]
          %v2500 = vld [vmem:[%s5 + $0x578] sm:$0xff]
          %v2501 = vld [vmem:[%s5 + $0x580] sm:$0xff]
          %v2502 = vld [vmem:[%s5 + $0x588] sm:$0xff]
          %v2503 = vld [vmem:[%s5 + $0x590] sm:$0xff]
          %v2504 = vld [vmem:[%s5 + $0x598] sm:$0xff]
          %v2505 = vld [vmem:[%s5 + $0x5a0] sm:$0xff]
          %v2506 = vld [vmem:[%s5 + $0x5a8] sm:$0xff]
          %v2507 = vld [vmem:[%s5 + $0x5b0] sm:$0xff]
          %v2508 = vld [vmem:[%s5 + $0x5b8] sm:$0xff]
          %v2509 = vld [vmem:[%s5 + $0x5c0] sm:$0xff]
          %v2510 = vld [vmem:[%s5 + $0x5c8] sm:$0xff]
          %v2511 = vld [vmem:[%s5 + $0x5d0] sm:$0xff]
          %v2512 = vld [vmem:[%s5 + $0x5d8] sm:$0xff]
          %v2513 = vld [vmem:[%s5 + $0x5e0] sm:$0xff]
          %v2514 = vld [vmem:[%s5 + $0x5e8] sm:$0xff]
          %v2515 = vld [vmem:[%s5 + $0x5f0] sm:$0xff]
          %v2516 = vld [vmem:[%s5 + $0x5f8] sm:$0xff]
          %v2517 = vld [vmem:[%s5 + $0x600] sm:$0xff]
          %v2518 = vld [vmem:[%s5 + $0x608] sm:$0xff]
          %v2519 = vld [vmem:[%s5 + $0x610] sm:$0xff]
          %v2520 = vld [vmem:[%s5 + $0x618] sm:$0xff]
          %v2521 = vld [vmem:[%s5 + $0x620] sm:$0xff]
          %v2522 = vld [vmem:[%s5 + $0x628] sm:$0xff]
          %v2523 = vld [vmem:[%s5 + $0x630] sm:$0xff]
          %v2524 = vld [vmem:[%s5 + $0x638] sm:$0xff]
          %v2525 = vld [vmem:[%s5 + $0x640] sm:$0xff]
          %v2526 = vld [vmem:[%s5 + $0x648] sm:$0xff]
          %v2527 = vld [vmem:[%s5 + $0x650] sm:$0xff]
          %v2528 = vld [vmem:[%s5 + $0x658] sm:$0xff]
          %v2529 = vld [vmem:[%s5 + $0x660] sm:$0xff]
          %v2530 = vld [vmem:[%s5 + $0x668] sm:$0xff]
          %v2531 = vld [vmem:[%s5 + $0x670] sm:$0xff]
          %v2532 = vld [vmem:[%s5 + $0x678] sm:$0xff]
          %v2533 = vld [vmem:[%s5 + $0x680] sm:$0xff]
          %v2534 = vld [vmem:[%s5 + $0x688] sm:$0xff]
          %v2535 = vld [vmem:[%s5 + $0x690] sm:$0xff]
          %v2536 = vld [vmem:[%s5 + $0x698] sm:$0xff]
          %v2537 = vld [vmem:[%s5 + $0x6a0] sm:$0xff]
          %v2538 = vld [vmem:[%s5 + $0x6a8] sm:$0xff]
          %v2539 = vld [vmem:[%s5 + $0x6b0] sm:$0xff]
          %v2540 = vld [vmem:[%s5 + $0x6b8] sm:$0xff]
          %v2541 = vld [vmem:[%s5 + $0x6c0] sm:$0xff]
          %v2542 = vld [vmem:[%s5 + $0x6c8] sm:$0xff]
          %v2543 = vld [vmem:[%s5 + $0x6d0] sm:$0xff]
          %v2544 = vld [vmem:[%s5 + $0x6d8] sm:$0xff]
          %v2545 = vld [vmem:[%s5 + $0x6e0] sm:$0xff]
          %v2546 = vld [vmem:[%s5 + $0x6e8] sm:$0xff]
          %v2547 = vld [vmem:[%s5 + $0x6f0] sm:$0xff]
          %v2548 = vld [vmem:[%s5 + $0x6f8] sm:$0xff]
          %v2549 = vld [vmem:[%s5 + $0x700] sm:$0xff]
          %v2550 = vld [vmem:[%s5 + $0x708] sm:$0xff]
          %v2551 = vld [vmem:[%s5 + $0x710] sm:$0xff]
          %v2552 = vld [vmem:[%s5 + $0x718] sm:$0xff]
          %v2553 = vld [vmem:[%s5 + $0x720] sm:$0xff]
          %v2554 = vld [vmem:[%s5 + $0x728] sm:$0xff]
          %v2555 = vld [vmem:[%s5 + $0x730] sm:$0xff]
          %v2556 = vld [vmem:[%s5 + $0x738] sm:$0xff]
          %v2557 = vld [vmem:[%s5 + $0x740] sm:$0xff]
          %v2558 = vld [vmem:[%s5 + $0x748] sm:$0xff]
          %v2559 = vld [vmem:[%s5 + $0x750] sm:$0xff]
          %v2560 = vld [vmem:[%s5 + $0x758] sm:$0xff]
          %v2561 = vld [vmem:[%s5 + $0x760] sm:$0xff]
          %v2562 = vld [vmem:[%s5 + $0x768] sm:$0xff]
          %v2563 = vld [vmem:[%s5 + $0x770] sm:$0xff]
          %v2564 = vld [vmem:[%s5 + $0x778] sm:$0xff]
          %v2565 = vld [vmem:[%s5 + $0x780] sm:$0xff]
          %v2566 = vld [vmem:[%s5 + $0x788] sm:$0xff]
          %v2567 = vld [vmem:[%s5 + $0x790] sm:$0xff]
          %v2568 = vld [vmem:[%s5 + $0x798] sm:$0xff]
          %v2569 = vld [vmem:[%s5 + $0x7a0] sm:$0xff]
          %v2570 = vld [vmem:[%s5 + $0x7a8] sm:$0xff]
          %v2571 = vld [vmem:[%s5 + $0x7b0] sm:$0xff]
          %v2572 = vld [vmem:[%s5 + $0x7b8] sm:$0xff]
          %v2573 = vld [vmem:[%s5 + $0x7c0] sm:$0xff]
          %v2574 = vld [vmem:[%s5 + $0x7c8] sm:$0xff]
          %v2575 = vld [vmem:[%s5 + $0x7d0] sm:$0xff]
          %v2576 = vld [vmem:[%s5 + $0x7d8] sm:$0xff]
          %v2577 = vld [vmem:[%s5 + $0x7e0] sm:$0xff]
          %v2578 = vld [vmem:[%s5 + $0x7e8] sm:$0xff]
          %v2579 = vld [vmem:[%s5 + $0x7f0] sm:$0xff]
          %v2580 = vld [vmem:[%s5 + $0x7f8] sm:$0xff]
          %v2581 = vld [vmem:[%s5 + $0x800] sm:$0xff]
          %v2582 = vld [vmem:[%s5 + $0x808] sm:$0xff]
          %v2583 = vld [vmem:[%s5 + $0x810] sm:$0xff]
          %v2584 = vld [vmem:[%s5 + $0x818] sm:$0xff]
          %v2585 = vld [vmem:[%s5 + $0x820] sm:$0xff]
          %v2586 = vld [vmem:[%s5 + $0x828] sm:$0xff]
          %v2587 = vld [vmem:[%s5 + $0x830] sm:$0xff]
          %v2588 = vld [vmem:[%s5 + $0x838] sm:$0xff]
          %v2589 = vld [vmem:[%s5 + $0x840] sm:$0xff]
          %v2590 = vld [vmem:[%s5 + $0x848] sm:$0xff]
          %v2591 = vld [vmem:[%s5 + $0x850] sm:$0xff]
          %v2592 = vld [vmem:[%s5 + $0x858] sm:$0xff]
          %v2593 = vld [vmem:[%s5 + $0x860] sm:$0xff]
          %v2594 = vld [vmem:[%s5 + $0x868] sm:$0xff]
          %v2595 = vld [vmem:[%s5 + $0x870] sm:$0xff]
          %v2596 = vld [vmem:[%s5 + $0x878] sm:$0xff]
          %v2597 = vld [vmem:[%s5 + $0x880] sm:$0xff]
          %v2598 = vld [vmem:[%s5 + $0x888] sm:$0xff]
          %v2599 = vld [vmem:[%s5 + $0x890] sm:$0xff]
          %v2600 = vld [vmem:[%s5 + $0x898] sm:$0xff]
          %v2601 = vld [vmem:[%s5 + $0x8a0] sm:$0xff]
          %v2602 = vld [vmem:[%s5 + $0x8a8] sm:$0xff]
          %v2603 = vld [vmem:[%s5 + $0x8b0] sm:$0xff]
          %v2604 = vld [vmem:[%s5 + $0x8b8] sm:$0xff]
          %v2605 = vld [vmem:[%s5 + $0x8c0] sm:$0xff]
          %v2606 = vld [vmem:[%s5 + $0x8c8] sm:$0xff]
          %v2607 = vld [vmem:[%s5 + $0x8d0] sm:$0xff]
          %v2608 = vld [vmem:[%s5 + $0x8d8] sm:$0xff]
          %v2609 = vld [vmem:[%s5 + $0x8e0] sm:$0xff]
          %v2610 = vld [vmem:[%s5 + $0x8e8] sm:$0xff]
          %v2611 = vld [vmem:[%s5 + $0x8f0] sm:$0xff]
          %v2612 = vld [vmem:[%s5 + $0x8f8] sm:$0xff]
          %v2613 = vld [vmem:[%s5 + $0x900] sm:$0xff]
          %v2614 = vld [vmem:[%s5 + $0x908] sm:$0xff]
          %v2615 = vld [vmem:[%s5 + $0x910] sm:$0xff]
          %v2616 = vld [vmem:[%s5 + $0x918] sm:$0xff]
          %v2617 = vld [vmem:[%s5 + $0x920] sm:$0xff]
          %v2618 = vld [vmem:[%s5 + $0x928] sm:$0xff]
          %v2619 = vld [vmem:[%s5 + $0x930] sm:$0xff]
          %v2620 = vld [vmem:[%s5 + $0x938] sm:$0xff]
          %v2621 = vld [vmem:[%s5 + $0x940] sm:$0xff]
          %v2622 = vld [vmem:[%s5 + $0x948] sm:$0xff]
          %v2623 = vld [vmem:[%s5 + $0x950] sm:$0xff]
          %v2624 = vld [vmem:[%s5 + $0x958] sm:$0xff]
          %v2625 = vld [vmem:[%s5 + $0x960] sm:$0xff]
          %v2626 = vld [vmem:[%s5 + $0x968] sm:$0xff]
          %v2627 = vld [vmem:[%s5 + $0x970] sm:$0xff]
          %v2628 = vld [vmem:[%s5 + $0x978] sm:$0xff]
          %v2629 = vld [vmem:[%s5 + $0x980] sm:$0xff]
          %v2630 = vld [vmem:[%s5 + $0x988] sm:$0xff]
          %v2631 = vld [vmem:[%s5 + $0x990] sm:$0xff]
          %v2632 = vld [vmem:[%s5 + $0x998] sm:$0xff]
          %v2633 = vld [vmem:[%s5 + $0x9a0] sm:$0xff]
          %v2634 = vld [vmem:[%s5 + $0x9a8] sm:$0xff]
          %v2635 = vld [vmem:[%s5 + $0x9b0] sm:$0xff]
          %v2636 = vld [vmem:[%s5 + $0x9b8] sm:$0xff]
          %v2637 = vld [vmem:[%s5 + $0x9c0] sm:$0xff]
          %v2638 = vld [vmem:[%s5 + $0x9c8] sm:$0xff]
          %v2639 = vld [vmem:[%s5 + $0x9d0] sm:$0xff]
          %v2640 = vld [vmem:[%s5 + $0x9d8] sm:$0xff]
          %v2641 = vld [vmem:[%s5 + $0x9e0] sm:$0xff]
          %v2642 = vld [vmem:[%s5 + $0x9e8] sm:$0xff]
          %v2643 = vld [vmem:[%s5 + $0x9f0] sm:$0xff]
          %v2644 = vld [vmem:[%s5 + $0x9f8] sm:$0xff]
          %v2645 = vld [vmem:[%s6] sm:$0xf]
          %v2647 = vlaneseq
          %v2648 = vshrl.u32 %v2647, 7
          %v2649 = vsub.s32 0, %v2648
          %v2650 = vrot.slane %v2645, %v2649
          %v2651 = vlaneseq
          %v2652 = vshrl.u32 %v2651, 7
          %v2653 = vsub.s32 1, %v2652
          %v2654 = vrot.slane %v2645, %v2653
          %v2655 = vlaneseq
          %v2656 = vshrl.u32 %v2655, 7
          %v2657 = vsub.s32 2, %v2656
          %v2658 = vrot.slane %v2645, %v2657
          %v2659 = vlaneseq
          %v2660 = vshrl.u32 %v2659, 7
          %v2661 = vsub.s32 3, %v2660
          %v2662 = vrot.slane %v2645, %v2661
          %v2987 = vunpack.c.l.b16 %v2325
          %v2988 = vunpack.c.h.b16 %v2325
          %v2989 = vunpack.c.l.b16 %v2326
          %v2990 = vunpack.c.h.b16 %v2326
          %v2991 = vunpack.c.l.b16 %v2327
          %v2992 = vunpack.c.h.b16 %v2327
          %v2993 = vunpack.c.l.b16 %v2328
          %v2994 = vunpack.c.h.b16 %v2328
          %v2995 = vunpack.c.l.b16 %v2329
          %v2996 = vunpack.c.h.b16 %v2329
          %v2997 = vunpack.c.l.b16 %v2330
          %v2998 = vunpack.c.h.b16 %v2330
          %v2999 = vunpack.c.l.b16 %v2331
          %v3000 = vunpack.c.h.b16 %v2331
          %v3001 = vunpack.c.l.b16 %v2332
          %v3002 = vunpack.c.h.b16 %v2332
          %v3003 = vunpack.c.l.b16 %v2333
          %v3004 = vunpack.c.h.b16 %v2333
          %v3005 = vunpack.c.l.b16 %v2334
          %v3006 = vunpack.c.h.b16 %v2334
          %v3007 = vunpack.c.l.b16 %v2335
          %v3008 = vunpack.c.h.b16 %v2335
          %v3009 = vunpack.c.l.b16 %v2336
          %v3010 = vunpack.c.h.b16 %v2336
          %v3011 = vunpack.c.l.b16 %v2337
          %v3012 = vunpack.c.h.b16 %v2337
          %v3013 = vunpack.c.l.b16 %v2338
          %v3014 = vunpack.c.h.b16 %v2338
          %v3015 = vunpack.c.l.b16 %v2339
          %v3016 = vunpack.c.h.b16 %v2339
          %v3017 = vunpack.c.l.b16 %v2340
          %v3018 = vunpack.c.h.b16 %v2340
          %v3019 = vunpack.c.l.b16 %v2341
          %v3020 = vunpack.c.h.b16 %v2341
          %v3021 = vunpack.c.l.b16 %v2342
          %v3022 = vunpack.c.h.b16 %v2342
          %v3023 = vunpack.c.l.b16 %v2343
          %v3024 = vunpack.c.h.b16 %v2343
          %v3025 = vunpack.c.l.b16 %v2344
          %v3026 = vunpack.c.h.b16 %v2344
          %v3027 = vunpack.c.l.b16 %v2345
          %v3028 = vunpack.c.h.b16 %v2345
          %v3029 = vunpack.c.l.b16 %v2346
          %v3030 = vunpack.c.h.b16 %v2346
          %v3031 = vunpack.c.l.b16 %v2347
          %v3032 = vunpack.c.h.b16 %v2347
          %v3033 = vunpack.c.l.b16 %v2348
          %v3034 = vunpack.c.h.b16 %v2348
          %v3035 = vunpack.c.l.b16 %v2349
          %v3036 = vunpack.c.h.b16 %v2349
          %v3037 = vunpack.c.l.b16 %v2350
          %v3038 = vunpack.c.h.b16 %v2350
          %v3039 = vunpack.c.l.b16 %v2351
          %v3040 = vunpack.c.h.b16 %v2351
          %v3041 = vunpack.c.l.b16 %v2352
          %v3042 = vunpack.c.h.b16 %v2352
          %v3043 = vunpack.c.l.b16 %v2353
          %v3044 = vunpack.c.h.b16 %v2353
          %v3045 = vunpack.c.l.b16 %v2354
          %v3046 = vunpack.c.h.b16 %v2354
          %v3047 = vunpack.c.l.b16 %v2355
          %v3048 = vunpack.c.h.b16 %v2355
          %v3049 = vunpack.c.l.b16 %v2356
          %v3050 = vunpack.c.h.b16 %v2356
          %v3051 = vunpack.c.l.b16 %v2357
          %v3052 = vunpack.c.h.b16 %v2357
          %v3053 = vunpack.c.l.b16 %v2358
          %v3054 = vunpack.c.h.b16 %v2358
          %v3055 = vunpack.c.l.b16 %v2359
          %v3056 = vunpack.c.h.b16 %v2359
          %v3057 = vunpack.c.l.b16 %v2360
          %v3058 = vunpack.c.h.b16 %v2360
          %v3059 = vunpack.c.l.b16 %v2361
          %v3060 = vunpack.c.h.b16 %v2361
          %v3061 = vunpack.c.l.b16 %v2362
          %v3062 = vunpack.c.h.b16 %v2362
          %v3063 = vunpack.c.l.b16 %v2363
          %v3064 = vunpack.c.h.b16 %v2363
          %v3065 = vunpack.c.l.b16 %v2364
          %v3066 = vunpack.c.h.b16 %v2364
          %v3067 = vunpack.c.l.b16 %v2365
          %v3068 = vunpack.c.h.b16 %v2365
          %v3069 = vunpack.c.l.b16 %v2366
          %v3070 = vunpack.c.h.b16 %v2366
          %v3071 = vunpack.c.l.b16 %v2367
          %v3072 = vunpack.c.h.b16 %v2367
          %v3073 = vunpack.c.l.b16 %v2368
          %v3074 = vunpack.c.h.b16 %v2368
          %v3075 = vunpack.c.l.b16 %v2369
          %v3076 = vunpack.c.h.b16 %v2369
          %v3077 = vunpack.c.l.b16 %v2370
          %v3078 = vunpack.c.h.b16 %v2370
          %v3079 = vunpack.c.l.b16 %v2371
          %v3080 = vunpack.c.h.b16 %v2371
          %v3081 = vunpack.c.l.b16 %v2372
          %v3082 = vunpack.c.h.b16 %v2372
          %v3083 = vunpack.c.l.b16 %v2373
          %v3084 = vunpack.c.h.b16 %v2373
          %v3085 = vunpack.c.l.b16 %v2374
          %v3086 = vunpack.c.h.b16 %v2374
          %v3087 = vunpack.c.l.b16 %v2375
          %v3088 = vunpack.c.h.b16 %v2375
          %v3089 = vunpack.c.l.b16 %v2376
          %v3090 = vunpack.c.h.b16 %v2376
          %v3091 = vunpack.c.l.b16 %v2377
          %v3092 = vunpack.c.h.b16 %v2377
          %v3093 = vunpack.c.l.b16 %v2378
          %v3094 = vunpack.c.h.b16 %v2378
          %v3095 = vunpack.c.l.b16 %v2379
          %v3096 = vunpack.c.h.b16 %v2379
          %v3097 = vunpack.c.l.b16 %v2380
          %v3098 = vunpack.c.h.b16 %v2380
          %v3099 = vunpack.c.l.b16 %v2381
          %v3100 = vunpack.c.h.b16 %v2381
          %v3101 = vunpack.c.l.b16 %v2382
          %v3102 = vunpack.c.h.b16 %v2382
          %v3103 = vunpack.c.l.b16 %v2383
          %v3104 = vunpack.c.h.b16 %v2383
          %v3105 = vunpack.c.l.b16 %v2384
          %v3106 = vunpack.c.h.b16 %v2384
          %v3107 = vunpack.c.l.b16 %v2385
          %v3108 = vunpack.c.h.b16 %v2385
          %v3109 = vunpack.c.l.b16 %v2386
          %v3110 = vunpack.c.h.b16 %v2386
          %v3111 = vunpack.c.l.b16 %v2387
          %v3112 = vunpack.c.h.b16 %v2387
          %v3113 = vunpack.c.l.b16 %v2388
          %v3114 = vunpack.c.h.b16 %v2388
          %v3115 = vunpack.c.l.b16 %v2389
          %v3116 = vunpack.c.h.b16 %v2389
          %v3117 = vunpack.c.l.b16 %v2390
          %v3118 = vunpack.c.h.b16 %v2390
          %v3119 = vunpack.c.l.b16 %v2391
          %v3120 = vunpack.c.h.b16 %v2391
          %v3121 = vunpack.c.l.b16 %v2392
          %v3122 = vunpack.c.h.b16 %v2392
          %v3123 = vunpack.c.l.b16 %v2393
          %v3124 = vunpack.c.h.b16 %v2393
          %v3125 = vunpack.c.l.b16 %v2394
          %v3126 = vunpack.c.h.b16 %v2394
          %v3127 = vunpack.c.l.b16 %v2395
          %v3128 = vunpack.c.h.b16 %v2395
          %v3129 = vunpack.c.l.b16 %v2396
          %v3130 = vunpack.c.h.b16 %v2396
          %v3131 = vunpack.c.l.b16 %v2397
          %v3132 = vunpack.c.h.b16 %v2397
          %v3133 = vunpack.c.l.b16 %v2398
          %v3134 = vunpack.c.h.b16 %v2398
          %v3135 = vunpack.c.l.b16 %v2399
          %v3136 = vunpack.c.h.b16 %v2399
          %v3137 = vunpack.c.l.b16 %v2400
          %v3138 = vunpack.c.h.b16 %v2400
          %v3139 = vunpack.c.l.b16 %v2401
          %v3140 = vunpack.c.h.b16 %v2401
          %v3141 = vunpack.c.l.b16 %v2402
          %v3142 = vunpack.c.h.b16 %v2402
          %v3143 = vunpack.c.l.b16 %v2403
          %v3144 = vunpack.c.h.b16 %v2403
          %v3145 = vunpack.c.l.b16 %v2404
          %v3146 = vunpack.c.h.b16 %v2404
          %v3147 = vunpack.c.l.b16 %v2405
          %v3148 = vunpack.c.h.b16 %v2405
          %v3149 = vunpack.c.l.b16 %v2406
          %v3150 = vunpack.c.h.b16 %v2406
          %v3151 = vunpack.c.l.b16 %v2407
          %v3152 = vunpack.c.h.b16 %v2407
          %v3153 = vunpack.c.l.b16 %v2408
          %v3154 = vunpack.c.h.b16 %v2408
          %v3155 = vunpack.c.l.b16 %v2409
          %v3156 = vunpack.c.h.b16 %v2409
          %v3157 = vunpack.c.l.b16 %v2410
          %v3158 = vunpack.c.h.b16 %v2410
          %v3159 = vunpack.c.l.b16 %v2411
          %v3160 = vunpack.c.h.b16 %v2411
          %v3161 = vunpack.c.l.b16 %v2412
          %v3162 = vunpack.c.h.b16 %v2412
          %v3163 = vunpack.c.l.b16 %v2413
          %v3164 = vunpack.c.h.b16 %v2413
          %v3165 = vunpack.c.l.b16 %v2414
          %v3166 = vunpack.c.h.b16 %v2414
          %v3167 = vunpack.c.l.b16 %v2415
          %v3168 = vunpack.c.h.b16 %v2415
          %v3169 = vunpack.c.l.b16 %v2416
          %v3170 = vunpack.c.h.b16 %v2416
          %v3171 = vunpack.c.l.b16 %v2417
          %v3172 = vunpack.c.h.b16 %v2417
          %v3173 = vunpack.c.l.b16 %v2418
          %v3174 = vunpack.c.h.b16 %v2418
          %v3175 = vunpack.c.l.b16 %v2419
          %v3176 = vunpack.c.h.b16 %v2419
          %v3177 = vunpack.c.l.b16 %v2420
          %v3178 = vunpack.c.h.b16 %v2420
          %v3179 = vunpack.c.l.b16 %v2421
          %v3180 = vunpack.c.h.b16 %v2421
          %v3181 = vunpack.c.l.b16 %v2422
          %v3182 = vunpack.c.h.b16 %v2422
          %v3183 = vunpack.c.l.b16 %v2423
          %v3184 = vunpack.c.h.b16 %v2423
          %v3185 = vunpack.c.l.b16 %v2424
          %v3186 = vunpack.c.h.b16 %v2424
          %v3187 = vunpack.c.l.b16 %v2425
          %v3188 = vunpack.c.h.b16 %v2425
          %v3189 = vunpack.c.l.b16 %v2426
          %v3190 = vunpack.c.h.b16 %v2426
          %v3191 = vunpack.c.l.b16 %v2427
          %v3192 = vunpack.c.h.b16 %v2427
          %v3193 = vunpack.c.l.b16 %v2428
          %v3194 = vunpack.c.h.b16 %v2428
          %v3195 = vunpack.c.l.b16 %v2429
          %v3196 = vunpack.c.h.b16 %v2429
          %v3197 = vunpack.c.l.b16 %v2430
          %v3198 = vunpack.c.h.b16 %v2430
          %v3199 = vunpack.c.l.b16 %v2431
          %v3200 = vunpack.c.h.b16 %v2431
          %v3201 = vunpack.c.l.b16 %v2432
          %v3202 = vunpack.c.h.b16 %v2432
          %v3203 = vunpack.c.l.b16 %v2433
          %v3204 = vunpack.c.h.b16 %v2433
          %v3205 = vunpack.c.l.b16 %v2434
          %v3206 = vunpack.c.h.b16 %v2434
          %v3207 = vunpack.c.l.b16 %v2435
          %v3208 = vunpack.c.h.b16 %v2435
          %v3209 = vunpack.c.l.b16 %v2436
          %v3210 = vunpack.c.h.b16 %v2436
          %v3211 = vunpack.c.l.b16 %v2437
          %v3212 = vunpack.c.h.b16 %v2437
          %v3213 = vunpack.c.l.b16 %v2438
          %v3214 = vunpack.c.h.b16 %v2438
          %v3215 = vunpack.c.l.b16 %v2439
          %v3216 = vunpack.c.h.b16 %v2439
          %v3217 = vunpack.c.l.b16 %v2440
          %v3218 = vunpack.c.h.b16 %v2440
          %v3219 = vunpack.c.l.b16 %v2441
          %v3220 = vunpack.c.h.b16 %v2441
          %v3221 = vunpack.c.l.b16 %v2442
          %v3222 = vunpack.c.h.b16 %v2442
          %v3223 = vunpack.c.l.b16 %v2443
          %v3224 = vunpack.c.h.b16 %v2443
          %v3225 = vunpack.c.l.b16 %v2444
          %v3226 = vunpack.c.h.b16 %v2444
          %v3227 = vunpack.c.l.b16 %v2445
          %v3228 = vunpack.c.h.b16 %v2445
          %v3229 = vunpack.c.l.b16 %v2446
          %v3230 = vunpack.c.h.b16 %v2446
          %v3231 = vunpack.c.l.b16 %v2447
          %v3232 = vunpack.c.h.b16 %v2447
          %v3233 = vunpack.c.l.b16 %v2448
          %v3234 = vunpack.c.h.b16 %v2448
          %v3235 = vunpack.c.l.b16 %v2449
          %v3236 = vunpack.c.h.b16 %v2449
          %v3237 = vunpack.c.l.b16 %v2450
          %v3238 = vunpack.c.h.b16 %v2450
          %v3239 = vunpack.c.l.b16 %v2451
          %v3240 = vunpack.c.h.b16 %v2451
          %v3241 = vunpack.c.l.b16 %v2452
          %v3242 = vunpack.c.h.b16 %v2452
          %v3243 = vunpack.c.l.b16 %v2453
          %v3244 = vunpack.c.h.b16 %v2453
          %v3245 = vunpack.c.l.b16 %v2454
          %v3246 = vunpack.c.h.b16 %v2454
          %v3247 = vunpack.c.l.b16 %v2455
          %v3248 = vunpack.c.h.b16 %v2455
          %v3249 = vunpack.c.l.b16 %v2456
          %v3250 = vunpack.c.h.b16 %v2456
          %v3251 = vunpack.c.l.b16 %v2457
          %v3252 = vunpack.c.h.b16 %v2457
          %v3253 = vunpack.c.l.b16 %v2458
          %v3254 = vunpack.c.h.b16 %v2458
          %v3255 = vunpack.c.l.b16 %v2459
          %v3256 = vunpack.c.h.b16 %v2459
          %v3257 = vunpack.c.l.b16 %v2460
          %v3258 = vunpack.c.h.b16 %v2460
          %v3259 = vunpack.c.l.b16 %v2461
          %v3260 = vunpack.c.h.b16 %v2461
          %v3261 = vunpack.c.l.b16 %v2462
          %v3262 = vunpack.c.h.b16 %v2462
          %v3263 = vunpack.c.l.b16 %v2463
          %v3264 = vunpack.c.h.b16 %v2463
          %v3265 = vunpack.c.l.b16 %v2464
          %v3266 = vunpack.c.h.b16 %v2464
          %v3267 = vunpack.c.l.b16 %v2465
          %v3268 = vunpack.c.h.b16 %v2465
          %v3269 = vunpack.c.l.b16 %v2466
          %v3270 = vunpack.c.h.b16 %v2466
          %v3271 = vunpack.c.l.b16 %v2467
          %v3272 = vunpack.c.h.b16 %v2467
          %v3273 = vunpack.c.l.b16 %v2468
          %v3274 = vunpack.c.h.b16 %v2468
          %v3275 = vunpack.c.l.b16 %v2469
          %v3276 = vunpack.c.h.b16 %v2469
          %v3277 = vunpack.c.l.b16 %v2470
          %v3278 = vunpack.c.h.b16 %v2470
          %v3279 = vunpack.c.l.b16 %v2471
          %v3280 = vunpack.c.h.b16 %v2471
          %v3281 = vunpack.c.l.b16 %v2472
          %v3282 = vunpack.c.h.b16 %v2472
          %v3283 = vunpack.c.l.b16 %v2473
          %v3284 = vunpack.c.h.b16 %v2473
          %v3285 = vunpack.c.l.b16 %v2474
          %v3286 = vunpack.c.h.b16 %v2474
          %v3287 = vunpack.c.l.b16 %v2475
          %v3288 = vunpack.c.h.b16 %v2475
          %v3289 = vunpack.c.l.b16 %v2476
          %v3290 = vunpack.c.h.b16 %v2476
          %v3291 = vunpack.c.l.b16 %v2477
          %v3292 = vunpack.c.h.b16 %v2477
          %v3293 = vunpack.c.l.b16 %v2478
          %v3294 = vunpack.c.h.b16 %v2478
          %v3295 = vunpack.c.l.b16 %v2479
          %v3296 = vunpack.c.h.b16 %v2479
          %v3297 = vunpack.c.l.b16 %v2480
          %v3298 = vunpack.c.h.b16 %v2480
          %v3299 = vunpack.c.l.b16 %v2481
          %v3300 = vunpack.c.h.b16 %v2481
          %v3301 = vunpack.c.l.b16 %v2482
          %v3302 = vunpack.c.h.b16 %v2482
          %v3303 = vunpack.c.l.b16 %v2483
          %v3304 = vunpack.c.h.b16 %v2483
          %v3305 = vunpack.c.l.b16 %v2484
          %v3306 = vunpack.c.h.b16 %v2484
          %v3307 = vunpack.c.l.b16 %v2485
          %v3308 = vunpack.c.h.b16 %v2485
          %v3309 = vunpack.c.l.b16 %v2486
          %v3310 = vunpack.c.h.b16 %v2486
          %v3311 = vunpack.c.l.b16 %v2487
          %v3312 = vunpack.c.h.b16 %v2487
          %v3313 = vunpack.c.l.b16 %v2488
          %v3314 = vunpack.c.h.b16 %v2488
          %v3315 = vunpack.c.l.b16 %v2489
          %v3316 = vunpack.c.h.b16 %v2489
          %v3317 = vunpack.c.l.b16 %v2490
          %v3318 = vunpack.c.h.b16 %v2490
          %v3319 = vunpack.c.l.b16 %v2491
          %v3320 = vunpack.c.h.b16 %v2491
          %v3321 = vunpack.c.l.b16 %v2492
          %v3322 = vunpack.c.h.b16 %v2492
          %v3323 = vunpack.c.l.b16 %v2493
          %v3324 = vunpack.c.h.b16 %v2493
          %v3325 = vunpack.c.l.b16 %v2494
          %v3326 = vunpack.c.h.b16 %v2494
          %v3327 = vunpack.c.l.b16 %v2495
          %v3328 = vunpack.c.h.b16 %v2495
          %v3329 = vunpack.c.l.b16 %v2496
          %v3330 = vunpack.c.h.b16 %v2496
          %v3331 = vunpack.c.l.b16 %v2497
          %v3332 = vunpack.c.h.b16 %v2497
          %v3333 = vunpack.c.l.b16 %v2498
          %v3334 = vunpack.c.h.b16 %v2498
          %v3335 = vunpack.c.l.b16 %v2499
          %v3336 = vunpack.c.h.b16 %v2499
          %v3337 = vunpack.c.l.b16 %v2500
          %v3338 = vunpack.c.h.b16 %v2500
          %v3339 = vunpack.c.l.b16 %v2501
          %v3340 = vunpack.c.h.b16 %v2501
          %v3341 = vunpack.c.l.b16 %v2502
          %v3342 = vunpack.c.h.b16 %v2502
          %v3343 = vunpack.c.l.b16 %v2503
          %v3344 = vunpack.c.h.b16 %v2503
          %v3345 = vunpack.c.l.b16 %v2504
          %v3346 = vunpack.c.h.b16 %v2504
          %v3347 = vunpack.c.l.b16 %v2505
          %v3348 = vunpack.c.h.b16 %v2505
          %v3349 = vunpack.c.l.b16 %v2506
          %v3350 = vunpack.c.h.b16 %v2506
          %v3351 = vunpack.c.l.b16 %v2507
          %v3352 = vunpack.c.h.b16 %v2507
          %v3353 = vunpack.c.l.b16 %v2508
          %v3354 = vunpack.c.h.b16 %v2508
          %v3355 = vunpack.c.l.b16 %v2509
          %v3356 = vunpack.c.h.b16 %v2509
          %v3357 = vunpack.c.l.b16 %v2510
          %v3358 = vunpack.c.h.b16 %v2510
          %v3359 = vunpack.c.l.b16 %v2511
          %v3360 = vunpack.c.h.b16 %v2511
          %v3361 = vunpack.c.l.b16 %v2512
          %v3362 = vunpack.c.h.b16 %v2512
          %v3363 = vunpack.c.l.b16 %v2513
          %v3364 = vunpack.c.h.b16 %v2513
          %v3365 = vunpack.c.l.b16 %v2514
          %v3366 = vunpack.c.h.b16 %v2514
          %v3367 = vunpack.c.l.b16 %v2515
          %v3368 = vunpack.c.h.b16 %v2515
          %v3369 = vunpack.c.l.b16 %v2516
          %v3370 = vunpack.c.h.b16 %v2516
          %v3371 = vunpack.c.l.b16 %v2517
          %v3372 = vunpack.c.h.b16 %v2517
          %v3373 = vunpack.c.l.b16 %v2518
          %v3374 = vunpack.c.h.b16 %v2518
          %v3375 = vunpack.c.l.b16 %v2519
          %v3376 = vunpack.c.h.b16 %v2519
          %v3377 = vunpack.c.l.b16 %v2520
          %v3378 = vunpack.c.h.b16 %v2520
          %v3379 = vunpack.c.l.b16 %v2521
          %v3380 = vunpack.c.h.b16 %v2521
          %v3381 = vunpack.c.l.b16 %v2522
          %v3382 = vunpack.c.h.b16 %v2522
          %v3383 = vunpack.c.l.b16 %v2523
          %v3384 = vunpack.c.h.b16 %v2523
          %v3385 = vunpack.c.l.b16 %v2524
          %v3386 = vunpack.c.h.b16 %v2524
          %v3387 = vunpack.c.l.b16 %v2525
          %v3388 = vunpack.c.h.b16 %v2525
          %v3389 = vunpack.c.l.b16 %v2526
          %v3390 = vunpack.c.h.b16 %v2526
          %v3391 = vunpack.c.l.b16 %v2527
          %v3392 = vunpack.c.h.b16 %v2527
          %v3393 = vunpack.c.l.b16 %v2528
          %v3394 = vunpack.c.h.b16 %v2528
          %v3395 = vunpack.c.l.b16 %v2529
          %v3396 = vunpack.c.h.b16 %v2529
          %v3397 = vunpack.c.l.b16 %v2530
          %v3398 = vunpack.c.h.b16 %v2530
          %v3399 = vunpack.c.l.b16 %v2531
          %v3400 = vunpack.c.h.b16 %v2531
          %v3401 = vunpack.c.l.b16 %v2532
          %v3402 = vunpack.c.h.b16 %v2532
          %v3403 = vunpack.c.l.b16 %v2533
          %v3404 = vunpack.c.h.b16 %v2533
          %v3405 = vunpack.c.l.b16 %v2534
          %v3406 = vunpack.c.h.b16 %v2534
          %v3407 = vunpack.c.l.b16 %v2535
          %v3408 = vunpack.c.h.b16 %v2535
          %v3409 = vunpack.c.l.b16 %v2536
          %v3410 = vunpack.c.h.b16 %v2536
          %v3411 = vunpack.c.l.b16 %v2537
          %v3412 = vunpack.c.h.b16 %v2537
          %v3413 = vunpack.c.l.b16 %v2538
          %v3414 = vunpack.c.h.b16 %v2538
          %v3415 = vunpack.c.l.b16 %v2539
          %v3416 = vunpack.c.h.b16 %v2539
          %v3417 = vunpack.c.l.b16 %v2540
          %v3418 = vunpack.c.h.b16 %v2540
          %v3419 = vunpack.c.l.b16 %v2541
          %v3420 = vunpack.c.h.b16 %v2541
          %v3421 = vunpack.c.l.b16 %v2542
          %v3422 = vunpack.c.h.b16 %v2542
          %v3423 = vunpack.c.l.b16 %v2543
          %v3424 = vunpack.c.h.b16 %v2543
          %v3425 = vunpack.c.l.b16 %v2544
          %v3426 = vunpack.c.h.b16 %v2544
          %v3427 = vunpack.c.l.b16 %v2545
          %v3428 = vunpack.c.h.b16 %v2545
          %v3429 = vunpack.c.l.b16 %v2546
          %v3430 = vunpack.c.h.b16 %v2546
          %v3431 = vunpack.c.l.b16 %v2547
          %v3432 = vunpack.c.h.b16 %v2547
          %v3433 = vunpack.c.l.b16 %v2548
          %v3434 = vunpack.c.h.b16 %v2548
          %v3435 = vunpack.c.l.b16 %v2549
          %v3436 = vunpack.c.h.b16 %v2549
          %v3437 = vunpack.c.l.b16 %v2550
          %v3438 = vunpack.c.h.b16 %v2550
          %v3439 = vunpack.c.l.b16 %v2551
          %v3440 = vunpack.c.h.b16 %v2551
          %v3441 = vunpack.c.l.b16 %v2552
          %v3442 = vunpack.c.h.b16 %v2552
          %v3443 = vunpack.c.l.b16 %v2553
          %v3444 = vunpack.c.h.b16 %v2553
          %v3445 = vunpack.c.l.b16 %v2554
          %v3446 = vunpack.c.h.b16 %v2554
          %v3447 = vunpack.c.l.b16 %v2555
          %v3448 = vunpack.c.h.b16 %v2555
          %v3449 = vunpack.c.l.b16 %v2556
          %v3450 = vunpack.c.h.b16 %v2556
          %v3451 = vunpack.c.l.b16 %v2557
          %v3452 = vunpack.c.h.b16 %v2557
          %v3453 = vunpack.c.l.b16 %v2558
          %v3454 = vunpack.c.h.b16 %v2558
          %v3455 = vunpack.c.l.b16 %v2559
          %v3456 = vunpack.c.h.b16 %v2559
          %v3457 = vunpack.c.l.b16 %v2560
          %v3458 = vunpack.c.h.b16 %v2560
          %v3459 = vunpack.c.l.b16 %v2561
          %v3460 = vunpack.c.h.b16 %v2561
          %v3461 = vunpack.c.l.b16 %v2562
          %v3462 = vunpack.c.h.b16 %v2562
          %v3463 = vunpack.c.l.b16 %v2563
          %v3464 = vunpack.c.h.b16 %v2563
          %v3465 = vunpack.c.l.b16 %v2564
          %v3466 = vunpack.c.h.b16 %v2564
          %v3467 = vunpack.c.l.b16 %v2565
          %v3468 = vunpack.c.h.b16 %v2565
          %v3469 = vunpack.c.l.b16 %v2566
          %v3470 = vunpack.c.h.b16 %v2566
          %v3471 = vunpack.c.l.b16 %v2567
          %v3472 = vunpack.c.h.b16 %v2567
          %v3473 = vunpack.c.l.b16 %v2568
          %v3474 = vunpack.c.h.b16 %v2568
          %v3475 = vunpack.c.l.b16 %v2569
          %v3476 = vunpack.c.h.b16 %v2569
          %v3477 = vunpack.c.l.b16 %v2570
          %v3478 = vunpack.c.h.b16 %v2570
          %v3479 = vunpack.c.l.b16 %v2571
          %v3480 = vunpack.c.h.b16 %v2571
          %v3481 = vunpack.c.l.b16 %v2572
          %v3482 = vunpack.c.h.b16 %v2572
          %v3483 = vunpack.c.l.b16 %v2573
          %v3484 = vunpack.c.h.b16 %v2573
          %v3485 = vunpack.c.l.b16 %v2574
          %v3486 = vunpack.c.h.b16 %v2574
          %v3487 = vunpack.c.l.b16 %v2575
          %v3488 = vunpack.c.h.b16 %v2575
          %v3489 = vunpack.c.l.b16 %v2576
          %v3490 = vunpack.c.h.b16 %v2576
          %v3491 = vunpack.c.l.b16 %v2577
          %v3492 = vunpack.c.h.b16 %v2577
          %v3493 = vunpack.c.l.b16 %v2578
          %v3494 = vunpack.c.h.b16 %v2578
          %v3495 = vunpack.c.l.b16 %v2579
          %v3496 = vunpack.c.h.b16 %v2579
          %v3497 = vunpack.c.l.b16 %v2580
          %v3498 = vunpack.c.h.b16 %v2580
          %v3499 = vunpack.c.l.b16 %v2581
          %v3500 = vunpack.c.h.b16 %v2581
          %v3501 = vunpack.c.l.b16 %v2582
          %v3502 = vunpack.c.h.b16 %v2582
          %v3503 = vunpack.c.l.b16 %v2583
          %v3504 = vunpack.c.h.b16 %v2583
          %v3505 = vunpack.c.l.b16 %v2584
          %v3506 = vunpack.c.h.b16 %v2584
          %v3507 = vunpack.c.l.b16 %v2585
          %v3508 = vunpack.c.h.b16 %v2585
          %v3509 = vunpack.c.l.b16 %v2586
          %v3510 = vunpack.c.h.b16 %v2586
          %v3511 = vunpack.c.l.b16 %v2587
          %v3512 = vunpack.c.h.b16 %v2587
          %v3513 = vunpack.c.l.b16 %v2588
          %v3514 = vunpack.c.h.b16 %v2588
          %v3515 = vunpack.c.l.b16 %v2589
          %v3516 = vunpack.c.h.b16 %v2589
          %v3517 = vunpack.c.l.b16 %v2590
          %v3518 = vunpack.c.h.b16 %v2590
          %v3519 = vunpack.c.l.b16 %v2591
          %v3520 = vunpack.c.h.b16 %v2591
          %v3521 = vunpack.c.l.b16 %v2592
          %v3522 = vunpack.c.h.b16 %v2592
          %v3523 = vunpack.c.l.b16 %v2593
          %v3524 = vunpack.c.h.b16 %v2593
          %v3525 = vunpack.c.l.b16 %v2594
          %v3526 = vunpack.c.h.b16 %v2594
          %v3527 = vunpack.c.l.b16 %v2595
          %v3528 = vunpack.c.h.b16 %v2595
          %v3529 = vunpack.c.l.b16 %v2596
          %v3530 = vunpack.c.h.b16 %v2596
          %v3531 = vunpack.c.l.b16 %v2597
          %v3532 = vunpack.c.h.b16 %v2597
          %v3533 = vunpack.c.l.b16 %v2598
          %v3534 = vunpack.c.h.b16 %v2598
          %v3535 = vunpack.c.l.b16 %v2599
          %v3536 = vunpack.c.h.b16 %v2599
          %v3537 = vunpack.c.l.b16 %v2600
          %v3538 = vunpack.c.h.b16 %v2600
          %v3539 = vunpack.c.l.b16 %v2601
          %v3540 = vunpack.c.h.b16 %v2601
          %v3541 = vunpack.c.l.b16 %v2602
          %v3542 = vunpack.c.h.b16 %v2602
          %v3543 = vunpack.c.l.b16 %v2603
          %v3544 = vunpack.c.h.b16 %v2603
          %v3545 = vunpack.c.l.b16 %v2604
          %v3546 = vunpack.c.h.b16 %v2604
          %v3547 = vunpack.c.l.b16 %v2605
          %v3548 = vunpack.c.h.b16 %v2605
          %v3549 = vunpack.c.l.b16 %v2606
          %v3550 = vunpack.c.h.b16 %v2606
          %v3551 = vunpack.c.l.b16 %v2607
          %v3552 = vunpack.c.h.b16 %v2607
          %v3553 = vunpack.c.l.b16 %v2608
          %v3554 = vunpack.c.h.b16 %v2608
          %v3555 = vunpack.c.l.b16 %v2609
          %v3556 = vunpack.c.h.b16 %v2609
          %v3557 = vunpack.c.l.b16 %v2610
          %v3558 = vunpack.c.h.b16 %v2610
          %v3559 = vunpack.c.l.b16 %v2611
          %v3560 = vunpack.c.h.b16 %v2611
          %v3561 = vunpack.c.l.b16 %v2612
          %v3562 = vunpack.c.h.b16 %v2612
          %v3563 = vunpack.c.l.b16 %v2613
          %v3564 = vunpack.c.h.b16 %v2613
          %v3565 = vunpack.c.l.b16 %v2614
          %v3566 = vunpack.c.h.b16 %v2614
          %v3567 = vunpack.c.l.b16 %v2615
          %v3568 = vunpack.c.h.b16 %v2615
          %v3569 = vunpack.c.l.b16 %v2616
          %v3570 = vunpack.c.h.b16 %v2616
          %v3571 = vunpack.c.l.b16 %v2617
          %v3572 = vunpack.c.h.b16 %v2617
          %v3573 = vunpack.c.l.b16 %v2618
          %v3574 = vunpack.c.h.b16 %v2618
          %v3575 = vunpack.c.l.b16 %v2619
          %v3576 = vunpack.c.h.b16 %v2619
          %v3577 = vunpack.c.l.b16 %v2620
          %v3578 = vunpack.c.h.b16 %v2620
          %v3579 = vunpack.c.l.b16 %v2621
          %v3580 = vunpack.c.h.b16 %v2621
          %v3581 = vunpack.c.l.b16 %v2622
          %v3582 = vunpack.c.h.b16 %v2622
          %v3583 = vunpack.c.l.b16 %v2623
          %v3584 = vunpack.c.h.b16 %v2623
          %v3585 = vunpack.c.l.b16 %v2624
          %v3586 = vunpack.c.h.b16 %v2624
          %v3587 = vunpack.c.l.b16 %v2625
          %v3588 = vunpack.c.h.b16 %v2625
          %v3589 = vunpack.c.l.b16 %v2626
          %v3590 = vunpack.c.h.b16 %v2626
          %v3591 = vunpack.c.l.b16 %v2627
          %v3592 = vunpack.c.h.b16 %v2627
          %v3593 = vunpack.c.l.b16 %v2628
          %v3594 = vunpack.c.h.b16 %v2628
          %v3595 = vunpack.c.l.b16 %v2629
          %v3596 = vunpack.c.h.b16 %v2629
          %v3597 = vunpack.c.l.b16 %v2630
          %v3598 = vunpack.c.h.b16 %v2630
          %v3599 = vunpack.c.l.b16 %v2631
          %v3600 = vunpack.c.h.b16 %v2631
          %v3601 = vunpack.c.l.b16 %v2632
          %v3602 = vunpack.c.h.b16 %v2632
          %v3603 = vunpack.c.l.b16 %v2633
          %v3604 = vunpack.c.h.b16 %v2633
          %v3605 = vunpack.c.l.b16 %v2634
          %v3606 = vunpack.c.h.b16 %v2634
          %v3607 = vunpack.c.l.b16 %v2635
          %v3608 = vunpack.c.h.b16 %v2635
          %v3609 = vunpack.c.l.b16 %v2636
          %v3610 = vunpack.c.h.b16 %v2636
          %v3611 = vunpack.c.l.b16 %v2637
          %v3612 = vunpack.c.h.b16 %v2637
          %v3613 = vunpack.c.l.b16 %v2638
          %v3614 = vunpack.c.h.b16 %v2638
          %v3615 = vunpack.c.l.b16 %v2639
          %v3616 = vunpack.c.h.b16 %v2639
          %v3617 = vunpack.c.l.b16 %v2640
          %v3618 = vunpack.c.h.b16 %v2640
          %v3619 = vunpack.c.l.b16 %v2641
          %v3620 = vunpack.c.h.b16 %v2641
          %v3621 = vunpack.c.l.b16 %v2642
          %v3622 = vunpack.c.h.b16 %v2642
          %v3623 = vunpack.c.l.b16 %v2643
          %v3624 = vunpack.c.h.b16 %v2643
          %v3625 = vunpack.c.l.b16 %v2644
          %v3626 = vunpack.c.h.b16 %v2644
          %v3627 = vpack.c.b16 %v2991, %v2987
          %v3628 = vpack.c.b16 %v2992, %v2988
          %v3629 = vpack.c.b16 %v2993, %v2989
          %v3630 = vpack.c.b16 %v2994, %v2990
          %v3631 = vpack.c.b16 %v2999, %v2995
          %v3632 = vpack.c.b16 %v3000, %v2996
          %v3633 = vpack.c.b16 %v3001, %v2997
          %v3634 = vpack.c.b16 %v3002, %v2998
          %v3635 = vpack.c.b16 %v3007, %v3003
          %v3636 = vpack.c.b16 %v3008, %v3004
          %v3637 = vpack.c.b16 %v3009, %v3005
          %v3638 = vpack.c.b16 %v3010, %v3006
          %v3639 = vpack.c.b16 %v3015, %v3011
          %v3640 = vpack.c.b16 %v3016, %v3012
          %v3641 = vpack.c.b16 %v3017, %v3013
          %v3642 = vpack.c.b16 %v3018, %v3014
          %v3643 = vpack.c.b16 %v3023, %v3019
          %v3644 = vpack.c.b16 %v3024, %v3020
          %v3645 = vpack.c.b16 %v3025, %v3021
          %v3646 = vpack.c.b16 %v3026, %v3022
          %v3647 = vpack.c.b16 %v3031, %v3027
          %v3648 = vpack.c.b16 %v3032, %v3028
          %v3649 = vpack.c.b16 %v3033, %v3029
          %v3650 = vpack.c.b16 %v3034, %v3030
          %v3651 = vpack.c.b16 %v3039, %v3035
          %v3652 = vpack.c.b16 %v3040, %v3036
          %v3653 = vpack.c.b16 %v3041, %v3037
          %v3654 = vpack.c.b16 %v3042, %v3038
          %v3655 = vpack.c.b16 %v3047, %v3043
          %v3656 = vpack.c.b16 %v3048, %v3044
          %v3657 = vpack.c.b16 %v3049, %v3045
          %v3658 = vpack.c.b16 %v3050, %v3046
          %v3659 = vpack.c.b16 %v3055, %v3051
          %v3660 = vpack.c.b16 %v3056, %v3052
          %v3661 = vpack.c.b16 %v3057, %v3053
          %v3662 = vpack.c.b16 %v3058, %v3054
          %v3663 = vpack.c.b16 %v3063, %v3059
          %v3664 = vpack.c.b16 %v3064, %v3060
          %v3665 = vpack.c.b16 %v3065, %v3061
          %v3666 = vpack.c.b16 %v3066, %v3062
          %v3667 = vpack.c.b16 %v3071, %v3067
          %v3668 = vpack.c.b16 %v3072, %v3068
          %v3669 = vpack.c.b16 %v3073, %v3069
          %v3670 = vpack.c.b16 %v3074, %v3070
          %v3671 = vpack.c.b16 %v3079, %v3075
          %v3672 = vpack.c.b16 %v3080, %v3076
          %v3673 = vpack.c.b16 %v3081, %v3077
          %v3674 = vpack.c.b16 %v3082, %v3078
          %v3675 = vpack.c.b16 %v3087, %v3083
          %v3676 = vpack.c.b16 %v3088, %v3084
          %v3677 = vpack.c.b16 %v3089, %v3085
          %v3678 = vpack.c.b16 %v3090, %v3086
          %v3679 = vpack.c.b16 %v3095, %v3091
          %v3680 = vpack.c.b16 %v3096, %v3092
          %v3681 = vpack.c.b16 %v3097, %v3093
          %v3682 = vpack.c.b16 %v3098, %v3094
          %v3683 = vpack.c.b16 %v3103, %v3099
          %v3684 = vpack.c.b16 %v3104, %v3100
          %v3685 = vpack.c.b16 %v3105, %v3101
          %v3686 = vpack.c.b16 %v3106, %v3102
          %v3687 = vpack.c.b16 %v3111, %v3107
          %v3688 = vpack.c.b16 %v3112, %v3108
          %v3689 = vpack.c.b16 %v3113, %v3109
          %v3690 = vpack.c.b16 %v3114, %v3110
          %v3691 = vpack.c.b16 %v3119, %v3115
          %v3692 = vpack.c.b16 %v3120, %v3116
          %v3693 = vpack.c.b16 %v3121, %v3117
          %v3694 = vpack.c.b16 %v3122, %v3118
          %v3695 = vpack.c.b16 %v3127, %v3123
          %v3696 = vpack.c.b16 %v3128, %v3124
          %v3697 = vpack.c.b16 %v3129, %v3125
          %v3698 = vpack.c.b16 %v3130, %v3126
          %v3699 = vpack.c.b16 %v3135, %v3131
          %v3700 = vpack.c.b16 %v3136, %v3132
          %v3701 = vpack.c.b16 %v3137, %v3133
          %v3702 = vpack.c.b16 %v3138, %v3134
          %v3703 = vpack.c.b16 %v3143, %v3139
          %v3704 = vpack.c.b16 %v3144, %v3140
          %v3705 = vpack.c.b16 %v3145, %v3141
          %v3706 = vpack.c.b16 %v3146, %v3142
          %v3707 = vpack.c.b16 %v3151, %v3147
          %v3708 = vpack.c.b16 %v3152, %v3148
          %v3709 = vpack.c.b16 %v3153, %v3149
          %v3710 = vpack.c.b16 %v3154, %v3150
          %v3711 = vpack.c.b16 %v3159, %v3155
          %v3712 = vpack.c.b16 %v3160, %v3156
          %v3713 = vpack.c.b16 %v3161, %v3157
          %v3714 = vpack.c.b16 %v3162, %v3158
          %v3715 = vpack.c.b16 %v3167, %v3163
          %v3716 = vpack.c.b16 %v3168, %v3164
          %v3717 = vpack.c.b16 %v3169, %v3165
          %v3718 = vpack.c.b16 %v3170, %v3166
          %v3719 = vpack.c.b16 %v3175, %v3171
          %v3720 = vpack.c.b16 %v3176, %v3172
          %v3721 = vpack.c.b16 %v3177, %v3173
          %v3722 = vpack.c.b16 %v3178, %v3174
          %v3723 = vpack.c.b16 %v3183, %v3179
          %v3724 = vpack.c.b16 %v3184, %v3180
          %v3725 = vpack.c.b16 %v3185, %v3181
          %v3726 = vpack.c.b16 %v3186, %v3182
          %v3727 = vpack.c.b16 %v3191, %v3187
          %v3728 = vpack.c.b16 %v3192, %v3188
          %v3729 = vpack.c.b16 %v3193, %v3189
          %v3730 = vpack.c.b16 %v3194, %v3190
          %v3731 = vpack.c.b16 %v3199, %v3195
          %v3732 = vpack.c.b16 %v3200, %v3196
          %v3733 = vpack.c.b16 %v3201, %v3197
          %v3734 = vpack.c.b16 %v3202, %v3198
          %v3735 = vpack.c.b16 %v3207, %v3203
          %v3736 = vpack.c.b16 %v3208, %v3204
          %v3737 = vpack.c.b16 %v3209, %v3205
          %v3738 = vpack.c.b16 %v3210, %v3206
          %v3739 = vpack.c.b16 %v3215, %v3211
          %v3740 = vpack.c.b16 %v3216, %v3212
          %v3741 = vpack.c.b16 %v3217, %v3213
          %v3742 = vpack.c.b16 %v3218, %v3214
          %v3743 = vpack.c.b16 %v3223, %v3219
          %v3744 = vpack.c.b16 %v3224, %v3220
          %v3745 = vpack.c.b16 %v3225, %v3221
          %v3746 = vpack.c.b16 %v3226, %v3222
          %v3747 = vpack.c.b16 %v3231, %v3227
          %v3748 = vpack.c.b16 %v3232, %v3228
          %v3749 = vpack.c.b16 %v3233, %v3229
          %v3750 = vpack.c.b16 %v3234, %v3230
          %v3751 = vpack.c.b16 %v3239, %v3235
          %v3752 = vpack.c.b16 %v3240, %v3236
          %v3753 = vpack.c.b16 %v3241, %v3237
          %v3754 = vpack.c.b16 %v3242, %v3238
          %v3755 = vpack.c.b16 %v3247, %v3243
          %v3756 = vpack.c.b16 %v3248, %v3244
          %v3757 = vpack.c.b16 %v3249, %v3245
          %v3758 = vpack.c.b16 %v3250, %v3246
          %v3759 = vpack.c.b16 %v3255, %v3251
          %v3760 = vpack.c.b16 %v3256, %v3252
          %v3761 = vpack.c.b16 %v3257, %v3253
          %v3762 = vpack.c.b16 %v3258, %v3254
          %v3763 = vpack.c.b16 %v3263, %v3259
          %v3764 = vpack.c.b16 %v3264, %v3260
          %v3765 = vpack.c.b16 %v3265, %v3261
          %v3766 = vpack.c.b16 %v3266, %v3262
          %v3767 = vpack.c.b16 %v3271, %v3267
          %v3768 = vpack.c.b16 %v3272, %v3268
          %v3769 = vpack.c.b16 %v3273, %v3269
          %v3770 = vpack.c.b16 %v3274, %v3270
          %v3771 = vpack.c.b16 %v3279, %v3275
          %v3772 = vpack.c.b16 %v3280, %v3276
          %v3773 = vpack.c.b16 %v3281, %v3277
          %v3774 = vpack.c.b16 %v3282, %v3278
          %v3775 = vpack.c.b16 %v3287, %v3283
          %v3776 = vpack.c.b16 %v3288, %v3284
          %v3777 = vpack.c.b16 %v3289, %v3285
          %v3778 = vpack.c.b16 %v3290, %v3286
          %v3779 = vpack.c.b16 %v3295, %v3291
          %v3780 = vpack.c.b16 %v3296, %v3292
          %v3781 = vpack.c.b16 %v3297, %v3293
          %v3782 = vpack.c.b16 %v3298, %v3294
          %v3783 = vpack.c.b16 %v3303, %v3299
          %v3784 = vpack.c.b16 %v3304, %v3300
          %v3785 = vpack.c.b16 %v3305, %v3301
          %v3786 = vpack.c.b16 %v3306, %v3302
          %v3787 = vpack.c.b16 %v3311, %v3307
          %v3788 = vpack.c.b16 %v3312, %v3308
          %v3789 = vpack.c.b16 %v3313, %v3309
          %v3790 = vpack.c.b16 %v3314, %v3310
          %v3791 = vpack.c.b16 %v3319, %v3315
          %v3792 = vpack.c.b16 %v3320, %v3316
          %v3793 = vpack.c.b16 %v3321, %v3317
          %v3794 = vpack.c.b16 %v3322, %v3318
          %v3795 = vpack.c.b16 %v3327, %v3323
          %v3796 = vpack.c.b16 %v3328, %v3324
          %v3797 = vpack.c.b16 %v3329, %v3325
          %v3798 = vpack.c.b16 %v3330, %v3326
          %v3799 = vpack.c.b16 %v3335, %v3331
          %v3800 = vpack.c.b16 %v3336, %v3332
          %v3801 = vpack.c.b16 %v3337, %v3333
          %v3802 = vpack.c.b16 %v3338, %v3334
          %v3803 = vpack.c.b16 %v3343, %v3339
          %v3804 = vpack.c.b16 %v3344, %v3340
          %v3805 = vpack.c.b16 %v3345, %v3341
          %v3806 = vpack.c.b16 %v3346, %v3342
          %v3807 = vpack.c.b16 %v3351, %v3347
          %v3808 = vpack.c.b16 %v3352, %v3348
          %v3809 = vpack.c.b16 %v3353, %v3349
          %v3810 = vpack.c.b16 %v3354, %v3350
          %v3811 = vpack.c.b16 %v3359, %v3355
          %v3812 = vpack.c.b16 %v3360, %v3356
          %v3813 = vpack.c.b16 %v3361, %v3357
          %v3814 = vpack.c.b16 %v3362, %v3358
          %v3815 = vpack.c.b16 %v3367, %v3363
          %v3816 = vpack.c.b16 %v3368, %v3364
          %v3817 = vpack.c.b16 %v3369, %v3365
          %v3818 = vpack.c.b16 %v3370, %v3366
          %v3819 = vpack.c.b16 %v3375, %v3371
          %v3820 = vpack.c.b16 %v3376, %v3372
          %v3821 = vpack.c.b16 %v3377, %v3373
          %v3822 = vpack.c.b16 %v3378, %v3374
          %v3823 = vpack.c.b16 %v3383, %v3379
          %v3824 = vpack.c.b16 %v3384, %v3380
          %v3825 = vpack.c.b16 %v3385, %v3381
          %v3826 = vpack.c.b16 %v3386, %v3382
          %v3827 = vpack.c.b16 %v3391, %v3387
          %v3828 = vpack.c.b16 %v3392, %v3388
          %v3829 = vpack.c.b16 %v3393, %v3389
          %v3830 = vpack.c.b16 %v3394, %v3390
          %v3831 = vpack.c.b16 %v3399, %v3395
          %v3832 = vpack.c.b16 %v3400, %v3396
          %v3833 = vpack.c.b16 %v3401, %v3397
          %v3834 = vpack.c.b16 %v3402, %v3398
          %v3835 = vpack.c.b16 %v3407, %v3403
          %v3836 = vpack.c.b16 %v3408, %v3404
          %v3837 = vpack.c.b16 %v3409, %v3405
          %v3838 = vpack.c.b16 %v3410, %v3406
          %v3839 = vpack.c.b16 %v3415, %v3411
          %v3840 = vpack.c.b16 %v3416, %v3412
          %v3841 = vpack.c.b16 %v3417, %v3413
          %v3842 = vpack.c.b16 %v3418, %v3414
          %v3843 = vpack.c.b16 %v3423, %v3419
          %v3844 = vpack.c.b16 %v3424, %v3420
          %v3845 = vpack.c.b16 %v3425, %v3421
          %v3846 = vpack.c.b16 %v3426, %v3422
          %v3847 = vpack.c.b16 %v3431, %v3427
          %v3848 = vpack.c.b16 %v3432, %v3428
          %v3849 = vpack.c.b16 %v3433, %v3429
          %v3850 = vpack.c.b16 %v3434, %v3430
          %v3851 = vpack.c.b16 %v3439, %v3435
          %v3852 = vpack.c.b16 %v3440, %v3436
          %v3853 = vpack.c.b16 %v3441, %v3437
          %v3854 = vpack.c.b16 %v3442, %v3438
          %v3855 = vpack.c.b16 %v3447, %v3443
          %v3856 = vpack.c.b16 %v3448, %v3444
          %v3857 = vpack.c.b16 %v3449, %v3445
          %v3858 = vpack.c.b16 %v3450, %v3446
          %v3859 = vpack.c.b16 %v3455, %v3451
          %v3860 = vpack.c.b16 %v3456, %v3452
          %v3861 = vpack.c.b16 %v3457, %v3453
          %v3862 = vpack.c.b16 %v3458, %v3454
          %v3863 = vpack.c.b16 %v3463, %v3459
          %v3864 = vpack.c.b16 %v3464, %v3460
          %v3865 = vpack.c.b16 %v3465, %v3461
          %v3866 = vpack.c.b16 %v3466, %v3462
          %v3867 = vpack.c.b16 %v3471, %v3467
          %v3868 = vpack.c.b16 %v3472, %v3468
          %v3869 = vpack.c.b16 %v3473, %v3469
          %v3870 = vpack.c.b16 %v3474, %v3470
          %v3871 = vpack.c.b16 %v3479, %v3475
          %v3872 = vpack.c.b16 %v3480, %v3476
          %v3873 = vpack.c.b16 %v3481, %v3477
          %v3874 = vpack.c.b16 %v3482, %v3478
          %v3875 = vpack.c.b16 %v3487, %v3483
          %v3876 = vpack.c.b16 %v3488, %v3484
          %v3877 = vpack.c.b16 %v3489, %v3485
          %v3878 = vpack.c.b16 %v3490, %v3486
          %v3879 = vpack.c.b16 %v3495, %v3491
          %v3880 = vpack.c.b16 %v3496, %v3492
          %v3881 = vpack.c.b16 %v3497, %v3493
          %v3882 = vpack.c.b16 %v3498, %v3494
          %v3883 = vpack.c.b16 %v3503, %v3499
          %v3884 = vpack.c.b16 %v3504, %v3500
          %v3885 = vpack.c.b16 %v3505, %v3501
          %v3886 = vpack.c.b16 %v3506, %v3502
          %v3887 = vpack.c.b16 %v3511, %v3507
          %v3888 = vpack.c.b16 %v3512, %v3508
          %v3889 = vpack.c.b16 %v3513, %v3509
          %v3890 = vpack.c.b16 %v3514, %v3510
          %v3891 = vpack.c.b16 %v3519, %v3515
          %v3892 = vpack.c.b16 %v3520, %v3516
          %v3893 = vpack.c.b16 %v3521, %v3517
          %v3894 = vpack.c.b16 %v3522, %v3518
          %v3895 = vpack.c.b16 %v3527, %v3523
          %v3896 = vpack.c.b16 %v3528, %v3524
          %v3897 = vpack.c.b16 %v3529, %v3525
          %v3898 = vpack.c.b16 %v3530, %v3526
          %v3899 = vpack.c.b16 %v3535, %v3531
          %v3900 = vpack.c.b16 %v3536, %v3532
          %v3901 = vpack.c.b16 %v3537, %v3533
          %v3902 = vpack.c.b16 %v3538, %v3534
          %v3903 = vpack.c.b16 %v3543, %v3539
          %v3904 = vpack.c.b16 %v3544, %v3540
          %v3905 = vpack.c.b16 %v3545, %v3541
          %v3906 = vpack.c.b16 %v3546, %v3542
          %v3907 = vpack.c.b16 %v3551, %v3547
          %v3908 = vpack.c.b16 %v3552, %v3548
          %v3909 = vpack.c.b16 %v3553, %v3549
          %v3910 = vpack.c.b16 %v3554, %v3550
          %v3911 = vpack.c.b16 %v3559, %v3555
          %v3912 = vpack.c.b16 %v3560, %v3556
          %v3913 = vpack.c.b16 %v3561, %v3557
          %v3914 = vpack.c.b16 %v3562, %v3558
          %v3915 = vpack.c.b16 %v3567, %v3563
          %v3916 = vpack.c.b16 %v3568, %v3564
          %v3917 = vpack.c.b16 %v3569, %v3565
          %v3918 = vpack.c.b16 %v3570, %v3566
          %v3919 = vpack.c.b16 %v3575, %v3571
          %v3920 = vpack.c.b16 %v3576, %v3572
          %v3921 = vpack.c.b16 %v3577, %v3573
          %v3922 = vpack.c.b16 %v3578, %v3574
          %v3923 = vpack.c.b16 %v3583, %v3579
          %v3924 = vpack.c.b16 %v3584, %v3580
          %v3925 = vpack.c.b16 %v3585, %v3581
          %v3926 = vpack.c.b16 %v3586, %v3582
          %v3927 = vpack.c.b16 %v3591, %v3587
          %v3928 = vpack.c.b16 %v3592, %v3588
          %v3929 = vpack.c.b16 %v3593, %v3589
          %v3930 = vpack.c.b16 %v3594, %v3590
          %v3931 = vpack.c.b16 %v3599, %v3595
          %v3932 = vpack.c.b16 %v3600, %v3596
          %v3933 = vpack.c.b16 %v3601, %v3597
          %v3934 = vpack.c.b16 %v3602, %v3598
          %v3935 = vpack.c.b16 %v3607, %v3603
          %v3936 = vpack.c.b16 %v3608, %v3604
          %v3937 = vpack.c.b16 %v3609, %v3605
          %v3938 = vpack.c.b16 %v3610, %v3606
          %v3939 = vpack.c.b16 %v3615, %v3611
          %v3940 = vpack.c.b16 %v3616, %v3612
          %v3941 = vpack.c.b16 %v3617, %v3613
          %v3942 = vpack.c.b16 %v3618, %v3614
          %v3943 = vpack.c.b16 %v3623, %v3619
          %v3944 = vpack.c.b16 %v3624, %v3620
          %v3945 = vpack.c.b16 %v3625, %v3621
          %v3946 = vpack.c.b16 %v3626, %v3622
          %4267 = vmatprep.subr.bf16.mxu0 %v3628
          %4268 = vmatpush1.bf16.msra.mxu0 %v3627
          %4269 = vmatprep.subr.bf16.mxu0 %v3632
          %4270 = vmatpush1.bf16.msra.mxu0 %v3631
          %4271 = vmatprep.subr.bf16.mxu0 %v3636
          %4272 = vmatpush1.bf16.msra.mxu0 %v3635
          %4273 = vmatprep.subr.bf16.mxu0 %v3640
          %4274 = vmatpush1.bf16.msra.mxu0 %v3639
          %4275 = vmatprep.subr.bf16.mxu0 %v3644
          %4276 = vmatpush1.bf16.msra.mxu0 %v3643
          %4277 = vmatprep.subr.bf16.mxu0 %v3648
          %4278 = vmatpush1.bf16.msra.mxu0 %v3647
          %4279 = vmatprep.subr.bf16.mxu0 %v3652
          %4280 = vmatpush1.bf16.msra.mxu0 %v3651
          %4281 = vmatprep.subr.bf16.mxu0 %v3656
          %4282 = vmatpush1.bf16.msra.mxu0 %v3655
          %4283 = vmatprep.subr.bf16.mxu0 %v3660
          %4284 = vmatpush1.bf16.msra.mxu0 %v3659
          %4285 = vmatprep.subr.bf16.mxu0 %v3664
          %4286 = vmatpush1.bf16.msra.mxu0 %v3663
          %4287 = vmatprep.subr.bf16.mxu0 %v3668
          %4288 = vmatpush1.bf16.msra.mxu0 %v3667
          %4289 = vmatprep.subr.bf16.mxu0 %v3672
          %4290 = vmatpush1.bf16.msra.mxu0 %v3671
          %4291 = vmatprep.subr.bf16.mxu0 %v3676
          %4292 = vmatpush1.bf16.msra.mxu0 %v3675
          %4293 = vmatprep.subr.bf16.mxu0 %v3680
          %4294 = vmatpush1.bf16.msra.mxu0 %v3679
          %4295 = vmatprep.subr.bf16.mxu0 %v3684
          %4296 = vmatpush1.bf16.msra.mxu0 %v3683
          %4297 = vmatprep.subr.bf16.mxu0 %v3688
          %4298 = vmatpush1.bf16.msra.mxu0 %v3687
          %4299 = vmatprep.mubr.bf16.mxu0 %v2316
          %4300 = vmatmul.mubr.bf16.gmra.mrb[0].mxu0 %v2315
          %v4301 = vpop.f32.mrb[0].mxu0
          %v4302 = vadd.f32 %v2650, %v4301
          %v4303 = vpop.f32.mrb[0].mxu0
          %v4304 = vadd.f32 %v2654, %v4303
          %v4305 = vpop.f32.mrb[0].mxu0
          %v4306 = vpop.f32.mrb[0].mxu0
          %4307 = vdwg.mxu0
          %4308 = vmatprep.subr.bf16.mxu0 %v3692
          %4309 = vmatpush1.bf16.msra.mxu0 %v3691
          %4310 = vmatprep.subr.bf16.mxu0 %v3696
          %4311 = vmatpush1.bf16.msra.mxu0 %v3695
          %4312 = vmatprep.subr.bf16.mxu0 %v3700
          %4313 = vmatpush1.bf16.msra.mxu0 %v3699
          %4314 = vmatprep.subr.bf16.mxu0 %v3704
          %4315 = vmatpush1.bf16.msra.mxu0 %v3703
          %4316 = vmatprep.subr.bf16.mxu0 %v3708
          %4317 = vmatpush1.bf16.msra.mxu0 %v3707
          %4318 = vmatprep.subr.bf16.mxu0 %v3712
          %4319 = vmatpush1.bf16.msra.mxu0 %v3711
          %4320 = vmatprep.subr.bf16.mxu0 %v3716
          %4321 = vmatpush1.bf16.msra.mxu0 %v3715
          %4322 = vmatprep.subr.bf16.mxu0 %v3720
          %4323 = vmatpush1.bf16.msra.mxu0 %v3719
          %4324 = vmatprep.subr.bf16.mxu0 %v3724
          %4325 = vmatpush1.bf16.msra.mxu0 %v3723
          %4326 = vmatprep.subr.bf16.mxu0 %v3728
          %4327 = vmatpush1.bf16.msra.mxu0 %v3727
          %4328 = vmatprep.subr.bf16.mxu0 %v3732
          %4329 = vmatpush1.bf16.msra.mxu0 %v3731
          %4330 = vmatprep.subr.bf16.mxu0 %v3736
          %4331 = vmatpush1.bf16.msra.mxu0 %v3735
          %4332 = vmatprep.subr.bf16.mxu0 %v3740
          %4333 = vmatpush1.bf16.msra.mxu0 %v3739
          %4334 = vmatprep.subr.bf16.mxu0 %v3744
          %4335 = vmatpush1.bf16.msra.mxu0 %v3743
          %4336 = vmatprep.subr.bf16.mxu0 %v3748
          %4337 = vmatpush1.bf16.msra.mxu0 %v3747
          %4338 = vmatprep.subr.bf16.mxu0 %v3752
          %4339 = vmatpush1.bf16.msra.mxu0 %v3751
          %4340 = vmatprep.mubr.bf16.mxu0 %v2318
          %4341 = vmatmul.mubr.bf16.gmra.mrb[0].mxu0 %v2317
          %v4342 = vpop.f32.mrb[0].mxu0
          %v4343 = vadd.f32 %v4302, %v4342
          %v4344 = vpop.f32.mrb[0].mxu0
          %v4345 = vadd.f32 %v4304, %v4344
          %v4346 = vpop.f32.mrb[0].mxu0
          %v4347 = vpop.f32.mrb[0].mxu0
          %4348 = vdwg.mxu0
          %4349 = vmatprep.subr.bf16.mxu0 %v3756
          %4350 = vmatpush1.bf16.msra.mxu0 %v3755
          %4351 = vmatprep.subr.bf16.mxu0 %v3760
          %4352 = vmatpush1.bf16.msra.mxu0 %v3759
          %4353 = vmatprep.subr.bf16.mxu0 %v3764
          %4354 = vmatpush1.bf16.msra.mxu0 %v3763
          %4355 = vmatprep.subr.bf16.mxu0 %v3768
          %4356 = vmatpush1.bf16.msra.mxu0 %v3767
          %4357 = vmatprep.subr.bf16.mxu0 %v3772
          %4358 = vmatpush1.bf16.msra.mxu0 %v3771
          %4359 = vmatprep.subr.bf16.mxu0 %v3776
          %4360 = vmatpush1.bf16.msra.mxu0 %v3775
          %4361 = vmatprep.subr.bf16.mxu0 %v3780
          %4362 = vmatpush1.bf16.msra.mxu0 %v3779
          %4363 = vmatprep.subr.bf16.mxu0 %v3784
          %4364 = vmatpush1.bf16.msra.mxu0 %v3783
          %4365 = vmatprep.subr.bf16.mxu0 %v3788
          %4366 = vmatpush1.bf16.msra.mxu0 %v3787
          %4367 = vmatprep.subr.bf16.mxu0 %v3792
          %4368 = vmatpush1.bf16.msra.mxu0 %v3791
          %4369 = vmatprep.subr.bf16.mxu0 %v3796
          %4370 = vmatpush1.bf16.msra.mxu0 %v3795
          %4371 = vmatprep.subr.bf16.mxu0 %v3800
          %4372 = vmatpush1.bf16.msra.mxu0 %v3799
          %4373 = vmatprep.subr.bf16.mxu0 %v3804
          %4374 = vmatpush1.bf16.msra.mxu0 %v3803
          %4375 = vmatprep.subr.bf16.mxu0 %v3808
          %4376 = vmatpush1.bf16.msra.mxu0 %v3807
          %4377 = vmatprep.subr.bf16.mxu0 %v3812
          %4378 = vmatpush1.bf16.msra.mxu0 %v3811
          %4379 = vmatprep.subr.bf16.mxu0 %v3816
          %4380 = vmatpush1.bf16.msra.mxu0 %v3815
          %4381 = vmatprep.mubr.bf16.mxu0 %v2320
          %4382 = vmatmul.mubr.bf16.gmra.mrb[0].mxu0 %v2319
          %v4383 = vpop.f32.mrb[0].mxu0
          %v4384 = vadd.f32 %v4343, %v4383
          %v4385 = vpop.f32.mrb[0].mxu0
          %v4386 = vadd.f32 %v4345, %v4385
          %v4387 = vpop.f32.mrb[0].mxu0
          %v4388 = vpop.f32.mrb[0].mxu0
          %4389 = vdwg.mxu0
          %4390 = vmatprep.subr.bf16.mxu0 %v3820
          %4391 = vmatpush1.bf16.msra.mxu0 %v3819
          %4392 = vmatprep.subr.bf16.mxu0 %v3824
          %4393 = vmatpush1.bf16.msra.mxu0 %v3823
          %4394 = vmatprep.subr.bf16.mxu0 %v3828
          %4395 = vmatpush1.bf16.msra.mxu0 %v3827
          %4396 = vmatprep.subr.bf16.mxu0 %v3832
          %4397 = vmatpush1.bf16.msra.mxu0 %v3831
          %4398 = vmatprep.subr.bf16.mxu0 %v3836
          %4399 = vmatpush1.bf16.msra.mxu0 %v3835
          %4400 = vmatprep.subr.bf16.mxu0 %v3840
          %4401 = vmatpush1.bf16.msra.mxu0 %v3839
          %4402 = vmatprep.subr.bf16.mxu0 %v3844
          %4403 = vmatpush1.bf16.msra.mxu0 %v3843
          %4404 = vmatprep.subr.bf16.mxu0 %v3848
          %4405 = vmatpush1.bf16.msra.mxu0 %v3847
          %4406 = vmatprep.subr.bf16.mxu0 %v3852
          %4407 = vmatpush1.bf16.msra.mxu0 %v3851
          %4408 = vmatprep.subr.bf16.mxu0 %v3856
          %4409 = vmatpush1.bf16.msra.mxu0 %v3855
          %4410 = vmatprep.subr.bf16.mxu0 %v3860
          %4411 = vmatpush1.bf16.msra.mxu0 %v3859
          %4412 = vmatprep.subr.bf16.mxu0 %v3864
          %4413 = vmatpush1.bf16.msra.mxu0 %v3863
          %4414 = vmatprep.subr.bf16.mxu0 %v3868
          %4415 = vmatpush1.bf16.msra.mxu0 %v3867
          %4416 = vmatprep.subr.bf16.mxu0 %v3872
          %4417 = vmatpush1.bf16.msra.mxu0 %v3871
          %4418 = vmatprep.subr.bf16.mxu0 %v3876
          %4419 = vmatpush1.bf16.msra.mxu0 %v3875
          %4420 = vmatprep.subr.bf16.mxu0 %v3880
          %4421 = vmatpush1.bf16.msra.mxu0 %v3879
          %4422 = vmatprep.mubr.bf16.mxu0 %v2322
          %4423 = vmatmul.mubr.bf16.gmra.mrb[0].mxu0 %v2321
          %v4424 = vpop.f32.mrb[0].mxu0
          %v4425 = vadd.f32 %v4384, %v4424
          %v4426 = vpop.f32.mrb[0].mxu0
          %v4427 = vadd.f32 %v4386, %v4426
          %v4428 = vpop.f32.mrb[0].mxu0
          %v4429 = vpop.f32.mrb[0].mxu0
          %4430 = vdwg.mxu0
          %4431 = vmatprep.subr.bf16.mxu0 %v3884
          %4432 = vmatpush1.bf16.msra.mxu0 %v3883
          %4433 = vmatprep.subr.bf16.mxu0 %v3888
          %4434 = vmatpush1.bf16.msra.mxu0 %v3887
          %4435 = vmatprep.subr.bf16.mxu0 %v3892
          %4436 = vmatpush1.bf16.msra.mxu0 %v3891
          %4437 = vmatprep.subr.bf16.mxu0 %v3896
          %4438 = vmatpush1.bf16.msra.mxu0 %v3895
          %4439 = vmatprep.subr.bf16.mxu0 %v3900
          %4440 = vmatpush1.bf16.msra.mxu0 %v3899
          %4441 = vmatprep.subr.bf16.mxu0 %v3904
          %4442 = vmatpush1.bf16.msra.mxu0 %v3903
          %4443 = vmatprep.subr.bf16.mxu0 %v3908
          %4444 = vmatpush1.bf16.msra.mxu0 %v3907
          %4445 = vmatprep.subr.bf16.mxu0 %v3912
          %4446 = vmatpush1.bf16.msra.mxu0 %v3911
          %4447 = vmatprep.subr.bf16.mxu0 %v3916
          %4448 = vmatpush1.bf16.msra.mxu0 %v3915
          %4449 = vmatprep.subr.bf16.mxu0 %v3920
          %4450 = vmatpush1.bf16.msra.mxu0 %v3919
          %4451 = vmatprep.subr.bf16.mxu0 %v3924
          %4452 = vmatpush1.bf16.msra.mxu0 %v3923
          %4453 = vmatprep.subr.bf16.mxu0 %v3928
          %4454 = vmatpush1.bf16.msra.mxu0 %v3927
          %4455 = vmatprep.subr.bf16.mxu0 %v3932
          %4456 = vmatpush1.bf16.msra.mxu0 %v3931
          %4457 = vmatprep.subr.bf16.mxu0 %v3936
          %4458 = vmatpush1.bf16.msra.mxu0 %v3935
          %4459 = vmatprep.subr.bf16.mxu0 %v3940
          %4460 = vmatpush1.bf16.msra.mxu0 %v3939
          %4461 = vmatprep.subr.bf16.mxu0 %v3944
          %4462 = vmatpush1.bf16.msra.mxu0 %v3943
          %4463 = vmatprep.mubr.bf16.mxu0 %v2324
          %4464 = vmatmul.mubr.bf16.gmra.mrb[0].mxu0 %v2323
          %v4465 = vpop.f32.mrb[0].mxu0
          %v4466 = vadd.f32 %v4425, %v4465
          %v4467 = vpop.f32.mrb[0].mxu0
          %v4468 = vadd.f32 %v4427, %v4467
          %v4469 = vpop.f32.mrb[0].mxu0
          %v4470 = vpop.f32.mrb[0].mxu0
          %4471 = vdwg.mxu0
          %4472 = vmatprep.subr.bf16.mxu0 %v3630
          %4473 = vmatpush1.bf16.msra.mxu0 %v3629
          %4474 = vmatprep.subr.bf16.mxu0 %v3634
          %4475 = vmatpush1.bf16.msra.mxu0 %v3633
          %4476 = vmatprep.subr.bf16.mxu0 %v3638
          %4477 = vmatpush1.bf16.msra.mxu0 %v3637
          %4478 = vmatprep.subr.bf16.mxu0 %v3642
          %4479 = vmatpush1.bf16.msra.mxu0 %v3641
          %4480 = vmatprep.subr.bf16.mxu0 %v3646
          %4481 = vmatpush1.bf16.msra.mxu0 %v3645
          %4482 = vmatprep.subr.bf16.mxu0 %v3650
          %4483 = vmatpush1.bf16.msra.mxu0 %v3649
          %4484 = vmatprep.subr.bf16.mxu0 %v3654
          %4485 = vmatpush1.bf16.msra.mxu0 %v3653
          %4486 = vmatprep.subr.bf16.mxu0 %v3658
          %4487 = vmatpush1.bf16.msra.mxu0 %v3657
          %4488 = vmatprep.subr.bf16.mxu0 %v3662
          %4489 = vmatpush1.bf16.msra.mxu0 %v3661
          %4490 = vmatprep.subr.bf16.mxu0 %v3666
          %4491 = vmatpush1.bf16.msra.mxu0 %v3665
          %4492 = vmatprep.subr.bf16.mxu0 %v3670
          %4493 = vmatpush1.bf16.msra.mxu0 %v3669
          %4494 = vmatprep.subr.bf16.mxu0 %v3674
          %4495 = vmatpush1.bf16.msra.mxu0 %v3673
          %4496 = vmatprep.subr.bf16.mxu0 %v3678
          %4497 = vmatpush1.bf16.msra.mxu0 %v3677
          %4498 = vmatprep.subr.bf16.mxu0 %v3682
          %4499 = vmatpush1.bf16.msra.mxu0 %v3681
          %4500 = vmatprep.subr.bf16.mxu0 %v3686
          %4501 = vmatpush1.bf16.msra.mxu0 %v3685
          %4502 = vmatprep.subr.bf16.mxu0 %v3690
          %4503 = vmatpush1.bf16.msra.mxu0 %v3689
          %4504 = vmatprep.mubr.bf16.mxu0 %v2316
          %4505 = vmatmul.mubr.bf16.gmra.mrb[0].mxu0 %v2315
          %v4506 = vpop.f32.mrb[0].mxu0
          %v4507 = vadd.f32 %v2658, %v4506
          %v4508 = vpop.f32.mrb[0].mxu0
          %v4509 = vadd.f32 %v2662, %v4508
          %v4510 = vpop.f32.mrb[0].mxu0
          %v4511 = vpop.f32.mrb[0].mxu0
          %4512 = vdwg.mxu0
          %4513 = vmatprep.subr.bf16.mxu0 %v3694
          %4514 = vmatpush1.bf16.msra.mxu0 %v3693
          %4515 = vmatprep.subr.bf16.mxu0 %v3698
          %4516 = vmatpush1.bf16.msra.mxu0 %v3697
          %4517 = vmatprep.subr.bf16.mxu0 %v3702
          %4518 = vmatpush1.bf16.msra.mxu0 %v3701
          %4519 = vmatprep.subr.bf16.mxu0 %v3706
          %4520 = vmatpush1.bf16.msra.mxu0 %v3705
          %4521 = vmatprep.subr.bf16.mxu0 %v3710
          %4522 = vmatpush1.bf16.msra.mxu0 %v3709
          %4523 = vmatprep.subr.bf16.mxu0 %v3714
          %4524 = vmatpush1.bf16.msra.mxu0 %v3713
          %4525 = vmatprep.subr.bf16.mxu0 %v3718
          %4526 = vmatpush1.bf16.msra.mxu0 %v3717
          %4527 = vmatprep.subr.bf16.mxu0 %v3722
          %4528 = vmatpush1.bf16.msra.mxu0 %v3721
          %4529 = vmatprep.subr.bf16.mxu0 %v3726
          %4530 = vmatpush1.bf16.msra.mxu0 %v3725
          %4531 = vmatprep.subr.bf16.mxu0 %v3730
          %4532 = vmatpush1.bf16.msra.mxu0 %v3729
          %4533 = vmatprep.subr.bf16.mxu0 %v3734
          %4534 = vmatpush1.bf16.msra.mxu0 %v3733
          %4535 = vmatprep.subr.bf16.mxu0 %v3738
          %4536 = vmatpush1.bf16.msra.mxu0 %v3737
          %4537 = vmatprep.subr.bf16.mxu0 %v3742
          %4538 = vmatpush1.bf16.msra.mxu0 %v3741
          %4539 = vmatprep.subr.bf16.mxu0 %v3746
          %4540 = vmatpush1.bf16.msra.mxu0 %v3745
          %4541 = vmatprep.subr.bf16.mxu0 %v3750
          %4542 = vmatpush1.bf16.msra.mxu0 %v3749
          %4543 = vmatprep.subr.bf16.mxu0 %v3754
          %4544 = vmatpush1.bf16.msra.mxu0 %v3753
          %4545 = vmatprep.mubr.bf16.mxu0 %v2318
          %4546 = vmatmul.mubr.bf16.gmra.mrb[0].mxu0 %v2317
          %v4547 = vpop.f32.mrb[0].mxu0
          %v4548 = vadd.f32 %v4507, %v4547
          %v4549 = vpop.f32.mrb[0].mxu0
          %v4550 = vadd.f32 %v4509, %v4549
          %v4551 = vpop.f32.mrb[0].mxu0
          %v4552 = vpop.f32.mrb[0].mxu0
          %4553 = vdwg.mxu0
          %4554 = vmatprep.subr.bf16.mxu0 %v3758
          %4555 = vmatpush1.bf16.msra.mxu0 %v3757
          %4556 = vmatprep.subr.bf16.mxu0 %v3762
          %4557 = vmatpush1.bf16.msra.mxu0 %v3761
          %4558 = vmatprep.subr.bf16.mxu0 %v3766
          %4559 = vmatpush1.bf16.msra.mxu0 %v3765
          %4560 = vmatprep.subr.bf16.mxu0 %v3770
          %4561 = vmatpush1.bf16.msra.mxu0 %v3769
          %4562 = vmatprep.subr.bf16.mxu0 %v3774
          %4563 = vmatpush1.bf16.msra.mxu0 %v3773
          %4564 = vmatprep.subr.bf16.mxu0 %v3778
          %4565 = vmatpush1.bf16.msra.mxu0 %v3777
          %4566 = vmatprep.subr.bf16.mxu0 %v3782
          %4567 = vmatpush1.bf16.msra.mxu0 %v3781
          %4568 = vmatprep.subr.bf16.mxu0 %v3786
          %4569 = vmatpush1.bf16.msra.mxu0 %v3785
          %4570 = vmatprep.subr.bf16.mxu0 %v3790
          %4571 = vmatpush1.bf16.msra.mxu0 %v3789
          %4572 = vmatprep.subr.bf16.mxu0 %v3794
          %4573 = vmatpush1.bf16.msra.mxu0 %v3793
          %4574 = vmatprep.subr.bf16.mxu0 %v3798
          %4575 = vmatpush1.bf16.msra.mxu0 %v3797
          %4576 = vmatprep.subr.bf16.mxu0 %v3802
          %4577 = vmatpush1.bf16.msra.mxu0 %v3801
          %4578 = vmatprep.subr.bf16.mxu0 %v3806
          %4579 = vmatpush1.bf16.msra.mxu0 %v3805
          %4580 = vmatprep.subr.bf16.mxu0 %v3810
          %4581 = vmatpush1.bf16.msra.mxu0 %v3809
          %4582 = vmatprep.subr.bf16.mxu0 %v3814
          %4583 = vmatpush1.bf16.msra.mxu0 %v3813
          %4584 = vmatprep.subr.bf16.mxu0 %v3818
          %4585 = vmatpush1.bf16.msra.mxu0 %v3817
          %4586 = vmatprep.mubr.bf16.mxu0 %v2320
          %4587 = vmatmul.mubr.bf16.gmra.mrb[0].mxu0 %v2319
          %v4588 = vpop.f32.mrb[0].mxu0
          %v4589 = vadd.f32 %v4548, %v4588
          %v4590 = vpop.f32.mrb[0].mxu0
          %v4591 = vadd.f32 %v4550, %v4590
          %v4592 = vpop.f32.mrb[0].mxu0
          %v4593 = vpop.f32.mrb[0].mxu0
          %4594 = vdwg.mxu0
          %4595 = vmatprep.subr.bf16.mxu0 %v3822
          %4596 = vmatpush1.bf16.msra.mxu0 %v3821
          %4597 = vmatprep.subr.bf16.mxu0 %v3826
          %4598 = vmatpush1.bf16.msra.mxu0 %v3825
          %4599 = vmatprep.subr.bf16.mxu0 %v3830
          %4600 = vmatpush1.bf16.msra.mxu0 %v3829
          %4601 = vmatprep.subr.bf16.mxu0 %v3834
          %4602 = vmatpush1.bf16.msra.mxu0 %v3833
          %4603 = vmatprep.subr.bf16.mxu0 %v3838
          %4604 = vmatpush1.bf16.msra.mxu0 %v3837
          %4605 = vmatprep.subr.bf16.mxu0 %v3842
          %4606 = vmatpush1.bf16.msra.mxu0 %v3841
          %4607 = vmatprep.subr.bf16.mxu0 %v3846
          %4608 = vmatpush1.bf16.msra.mxu0 %v3845
          %4609 = vmatprep.subr.bf16.mxu0 %v3850
          %4610 = vmatpush1.bf16.msra.mxu0 %v3849
          %4611 = vmatprep.subr.bf16.mxu0 %v3854
          %4612 = vmatpush1.bf16.msra.mxu0 %v3853
          %4613 = vmatprep.subr.bf16.mxu0 %v3858
          %4614 = vmatpush1.bf16.msra.mxu0 %v3857
          %4615 = vmatprep.subr.bf16.mxu0 %v3862
          %4616 = vmatpush1.bf16.msra.mxu0 %v3861
          %4617 = vmatprep.subr.bf16.mxu0 %v3866
          %4618 = vmatpush1.bf16.msra.mxu0 %v3865
          %4619 = vmatprep.subr.bf16.mxu0 %v3870
          %4620 = vmatpush1.bf16.msra.mxu0 %v3869
          %4621 = vmatprep.subr.bf16.mxu0 %v3874
          %4622 = vmatpush1.bf16.msra.mxu0 %v3873
          %4623 = vmatprep.subr.bf16.mxu0 %v3878
          %4624 = vmatpush1.bf16.msra.mxu0 %v3877
          %4625 = vmatprep.subr.bf16.mxu0 %v3882
          %4626 = vmatpush1.bf16.msra.mxu0 %v3881
          %4627 = vmatprep.mubr.bf16.mxu0 %v2322
          %4628 = vmatmul.mubr.bf16.gmra.mrb[0].mxu0 %v2321
          %v4629 = vpop.f32.mrb[0].mxu0
          %v4630 = vadd.f32 %v4589, %v4629
          %v4631 = vpop.f32.mrb[0].mxu0
          %v4632 = vadd.f32 %v4591, %v4631
          %v4633 = vpop.f32.mrb[0].mxu0
          %v4634 = vpop.f32.mrb[0].mxu0
          %4635 = vdwg.mxu0
          %4636 = vmatprep.subr.bf16.mxu0 %v3886
          %4637 = vmatpush1.bf16.msra.mxu0 %v3885
          %4638 = vmatprep.subr.bf16.mxu0 %v3890
          %4639 = vmatpush1.bf16.msra.mxu0 %v3889
          %4640 = vmatprep.subr.bf16.mxu0 %v3894
          %4641 = vmatpush1.bf16.msra.mxu0 %v3893
          %4642 = vmatprep.subr.bf16.mxu0 %v3898
          %4643 = vmatpush1.bf16.msra.mxu0 %v3897
          %4644 = vmatprep.subr.bf16.mxu0 %v3902
          %4645 = vmatpush1.bf16.msra.mxu0 %v3901
          %4646 = vmatprep.subr.bf16.mxu0 %v3906
          %4647 = vmatpush1.bf16.msra.mxu0 %v3905
          %4648 = vmatprep.subr.bf16.mxu0 %v3910
          %4649 = vmatpush1.bf16.msra.mxu0 %v3909
          %4650 = vmatprep.subr.bf16.mxu0 %v3914
          %4651 = vmatpush1.bf16.msra.mxu0 %v3913
          %4652 = vmatprep.subr.bf16.mxu0 %v3918
          %4653 = vmatpush1.bf16.msra.mxu0 %v3917
          %4654 = vmatprep.subr.bf16.mxu0 %v3922
          %4655 = vmatpush1.bf16.msra.mxu0 %v3921
          %4656 = vmatprep.subr.bf16.mxu0 %v3926
          %4657 = vmatpush1.bf16.msra.mxu0 %v3925
          %4658 = vmatprep.subr.bf16.mxu0 %v3930
          %4659 = vmatpush1.bf16.msra.mxu0 %v3929
          %4660 = vmatprep.subr.bf16.mxu0 %v3934
          %4661 = vmatpush1.bf16.msra.mxu0 %v3933
          %4662 = vmatprep.subr.bf16.mxu0 %v3938
          %4663 = vmatpush1.bf16.msra.mxu0 %v3937
          %4664 = vmatprep.subr.bf16.mxu0 %v3942
          %4665 = vmatpush1.bf16.msra.mxu0 %v3941
          %4666 = vmatprep.subr.bf16.mxu0 %v3946
          %4667 = vmatpush1.bf16.msra.mxu0 %v3945
          %4668 = vmatprep.mubr.bf16.mxu0 %v2324
          %4669 = vmatmul.mubr.bf16.gmra.mrb[0].mxu0 %v2323
          %v4670 = vpop.f32.mrb[0].mxu0
          %v4671 = vadd.f32 %v4630, %v4670
          %v4672 = vpop.f32.mrb[0].mxu0
          %v4673 = vadd.f32 %v4632, %v4672
          %v4674 = vpop.f32.mrb[0].mxu0
          %v4675 = vpop.f32.mrb[0].mxu0
          %4676 = vdwg.mxu0
          %v4677 = vmax.f32 %v4466, 0.0
          %v4678 = vmax.f32 %v4468, 0.0
          %v4679 = vmax.f32 %v4671, 0.0
          %v4680 = vmax.f32 %v4673, 0.0
          %4681 = vst [vmem:[%s291] sm:$0xff] %v4677
          %4682 = vst [vmem:[%s291 + $0x8] sm:$0xff] %v4678
          %4683 = vst [vmem:[%s291 + $0x10] sm:$0xff] %v4679
          %4684 = vst [vmem:[%s291 + $0x18] sm:$0xff] %v4680
        $region56: #{efficientnet_backbone_forward.1} parent=47 // pred_fallthru
          _
        %s4685 = sand.u32 %s195, 1
        %s4686 = scalar_lea.sflag [#allocation4], %s4685
        %s4687 = sand.u32 %s195, 1
        %s4688 = smul.addr %s4687, 32
        %s4689 = scalar_lea.vmem [#allocation3], %s4688
        // Predicated region
        $region57: #{efficientnet_backbone_forward.1} parent=47 // pred_check
          %p4690 = pneg %p205
        $region58: #{efficientnet_backbone_forward.1} parent=47 // pred_check_branch
          %4692 = sbr.rel (%p4690) target = $region60
        $region59: #{efficientnet_backbone_forward.1} parent=47 // pred_region
          %s4694 = ssub.s32 512, 512
          %4695 = vsyncadd %s4686, %s4694
          %s4696 = smul.addr %s25, 4
          %s4697 = smul.addr %s4696, 128
          %s4698 = scalar_lea.hbm %s7, %s4697
          %s4700 = sshll.u32 %s4689, 4
          %s4701 = int_to_ptr.vmem [resolvable:$true] %s4700
          %4703 = dma.vmem_to_hbm [thread:$0]  %s4701, 512, %s4698, %s4686
        $region60: #{efficientnet_backbone_forward.1} parent=47 // pred_fallthru
          _
      $region48: #{efficientnet_backbone_forward.1} parent=5 // pred_fallthru
        _
      %p4704 = scmp.le.s32.totalorder 2, %s16
      // Predicated region
      $region61: #{efficientnet_backbone_forward.1} parent=5 // pred_check
        %p4705 = pneg %p4704
      $region62: #{efficientnet_backbone_forward.1} parent=5 // pred_check_branch
        %4707 = sbr.rel (%p4705) target = $region64
      $region63: #{efficientnet_backbone_forward.1} parent=5 // pred_region
        %s4708 = ssub.s32 %s16, 2
        // Predicated region
        $region65: #{efficientnet_backbone_forward.1} parent=63 // pred_check
          %p4709 = pneg %p211
        $region66: #{efficientnet_backbone_forward.1} parent=63 // pred_check_branch
          %4711 = sbr.rel (%p4709) target = $region68
        $region67: #{efficientnet_backbone_forward.1} parent=63 // pred_region
          %s4712 = sand.u32 %s196, 1
          %s4713 = scalar_lea.sflag [#allocation4], %s4712
          %s4714 = sand.u32 %s196, 1
          %s4715 = smul.addr %s4714, 32
          %s4716 = scalar_lea.vmem [#allocation3], %s4715
          %4717 = dma.done %s4713, 512
        $region68: #{efficientnet_backbone_forward.1} parent=63 // pred_fallthru
          _
      $region64: #{efficientnet_backbone_forward.1} parent=5 // pred_fallthru
        _
    $region6: #{efficientnet_backbone_forward.1} parent=1 // loop_footer
      %s20 = sadd.s32 1, %s16
    $region7: #{efficientnet_backbone_forward.1} parent=1 // loop_footer_branch
      %15 = sbr.rel target = $region3
    $region8: #{efficientnet_backbone_forward.1} parent=1 // loop_exit
      _
    %4718 = vsyncpa [#allocation4], 1
    %s4719 = scalar_lea.sflag [#allocation4], 1
    %4720 = vsyncpa %s4719, 1

</llo_original>
